<compile_context>
chip_gen: v6e
topology: v6e:2x2x1
jax: 0.10.0
libtpu: 0.0.40
codegen_flags: <defaults>
</compile_context>

<pallas_src>
import jax
import jax.numpy as jnp
from jax import lax
from jax.experimental import pallas as pl
from jax.experimental.pallas import tpu as pltpu


def _round_up(x, m):
    return ((x + m - 1) // m) * m


# ----------------------------------------------------------------------------
# Fused kernel: embedders -> GRU input projection -> sequential GRU recurrence
#               -> shortcut obs embedding -> policy MLP -> actions.
# grid = (batch_tiles [parallel], time_tiles [arbitrary]); hidden state carried
# in VMEM scratch across the time axis; all intermediates stay in VMEM.
# ----------------------------------------------------------------------------
def _actor_rnn_kernel(
    # sequence inputs, blocked (TT, TB, dim)
    a_ref, r_ref, o_ref,
    # embedder weights
    wa_ref, ba_ref, wr_ref, br_ref, wo_ref, bo_ref,
    # GRU input projection W_ih split by input source (rows); gates packed (3H)
    wih_a_ref, wih_r_ref, wih_o_ref, bih_ref,
    # GRU recurrent weights, gates packed (H, 3H)
    whh_ref, bhh_ref,
    # shortcut obs embedder
    wc_ref, bc_ref,
    # policy MLP (layer-1 split by input source: hidden vs shortcut embedding)
    wp1h_ref, wp1c_ref, bp1_ref, wp2_ref, bp2_ref, wpo_ref, bpo_ref,
    # output (TT, TB, A)
    out_ref,
    # scratch
    gi_ref,      # (TT, TB, 3H) precomputed input-gate projections
    hseq_ref,    # (TT, TB, H)  per-timestep hidden states
    h_ref,       # (TB, H)      carried hidden state
):
    f32 = jnp.float32
    tt, tb, a_dim = a_ref.shape
    o_dim = o_ref.shape[-1]
    h_dim = h_ref.shape[-1]
    n = tt * tb

    a = a_ref[...].reshape(n, a_dim)
    r = r_ref[...].reshape(n, 1)
    o = o_ref[...].reshape(n, o_dim)

    # --- embedders (batched over every timestep of the block) ---
    emb_a = jax.nn.relu(jnp.dot(a, wa_ref[...], preferred_element_type=f32) + ba_ref[...])
    # reward embedder is a K=1 outer product -> VPU broadcast multiply-add
    emb_r = jax.nn.relu(r * wr_ref[...] + br_ref[...])
    emb_o = jax.nn.relu(jnp.dot(o, wo_ref[...], preferred_element_type=f32) + bo_ref[...])

    # --- GRU input projection x@W_ih; concat eliminated via row-split weights ---
    gi = (jnp.dot(emb_a, wih_a_ref[...], preferred_element_type=f32)
          + jnp.dot(emb_r, wih_r_ref[...], preferred_element_type=f32)
          + jnp.dot(emb_o, wih_o_ref[...], preferred_element_type=f32)
          + bih_ref[...])
    gi_ref[...] = gi.reshape(tt, tb, 3 * h_dim)

    # --- sequential GRU recurrence: one packed (TB,H)x(H,3H) dot per step ---
    @pl.when(pl.program_id(1) == 0)
    def _():
        h_ref[...] = jnp.zeros_like(h_ref)

    whh = whh_ref[...]
    bhh = bhh_ref[...]

    def step(i, h):
        gh = jnp.dot(h, whh, preferred_element_type=f32) + bhh
        gi_t = gi_ref[i]
        r_g = jax.nn.sigmoid(gi_t[:, :h_dim] + gh[:, :h_dim])
        z_g = jax.nn.sigmoid(gi_t[:, h_dim:2 * h_dim] + gh[:, h_dim:2 * h_dim])
        n_g = jnp.tanh(gi_t[:, 2 * h_dim:] + r_g * gh[:, 2 * h_dim:])
        h_new = (1.0 - z_g) * n_g + z_g * h
        hseq_ref[i] = h_new
        return h_new

    # capped unroll: keeps LLO scheduler visibility without blowing vregs
    h_ref[...] = lax.fori_loop(0, tt, step, h_ref[...], unroll=min(tt, 8))

    # --- shortcut obs embedding + policy MLP (batched, after the recurrence) ---
    curr = jax.nn.relu(jnp.dot(o, wc_ref[...], preferred_element_type=f32) + bc_ref[...])
    hs = hseq_ref[...].reshape(n, h_dim)
    p = jax.nn.relu(jnp.dot(hs, wp1h_ref[...], preferred_element_type=f32)
                    + jnp.dot(curr, wp1c_ref[...], preferred_element_type=f32)
                    + bp1_ref[...])
    p = jax.nn.relu(jnp.dot(p, wp2_ref[...], preferred_element_type=f32) + bp2_ref[...])
    act = jnp.tanh(jnp.dot(p, wpo_ref[...], preferred_element_type=f32) + bpo_ref[...])
    out_ref[...] = act.reshape(tt, tb, -1).astype(out_ref.dtype)


# ------------------------------ param prep -----------------------------------
def prepare_params(params):
    """One-time weight preprocessing (hoisted out of the per-call forward)."""
    H = params["whh"].shape[0]
    Ae = params["wa"].shape[1]
    Re = params["wr"].shape[1]
    wih = params["wih"]
    return dict(
        wa=params["wa"], ba=params["ba"],
        wr=params["wr"], br=params["br"],
        wo=params["wo"], bo=params["bo"],
        wih_a=wih[:Ae], wih_r=wih[Ae:Ae + Re], wih_o=wih[Ae + Re:],
        bih=params["bih"], whh=params["whh"], bhh=params["bhh"],
        wc=params["wc"], bc=params["bc"],
        wp1h=params["wp1"][:H], wp1c=params["wp1"][H:],
        bp1=params["bp1"], wp2=params["wp2"], bp2=params["bp2"],
        wpo=params["wpo"], bpo=params["bpo"],
    )


# ------------------------------ tile selection --------------------------------
def _choose_tb(B):
    b8 = _round_up(max(B, 1), 8)
    if b8 <= 8:
        return 8, 8
    # >=2 batch tiles when possible (v7x megacore), TB a multiple of 8, <=128
    tb = min(128, _round_up(b8 // 2, 8))
    return tb, _round_up(b8, tb)


def _choose_tt(T, TB, dims, budget_bytes=20 * 1024 * 1024, max_tt=32):
    A, O, Ae, Re, Oe, H, Ce, P1, P2 = dims

    def est_bytes(tt):
        n = tt * TB
        per_row = (2 * (A + 1 + O)                       # double-buffered inputs
                   + 2 * A                               # double-buffered output
                   + 3 * H + H                           # gi / hseq scratch
                   + (Ae + Re + Oe) + 3 * H + Ce + P1 + P2)  # VMEM temporaries
        return 4 * n * per_row

    tt = min(T, max_tt)
    while tt > 1 and (T % tt != 0 or est_bytes(tt) > budget_bytes):
        tt -= 1
    return tt


# ------------------------------ forward ---------------------------------------
def actor_rnn_forward(prepped, prev_actions, rewards, observs):
    """prev_actions (T,B,A), rewards (T,B,1), observs (T,B,O) -> actions (T,B,A)."""
    T, B, A = prev_actions.shape
    O = observs.shape[-1]
    H = prepped["whh"].shape[0]
    Ae = prepped["wa"].shape[1]
    Re = prepped["wr"].shape[1]
    Oe = prepped["wo"].shape[1]
    Ce = prepped["wc"].shape[1]
    P1 = prepped["wp2"].shape[0]
    P2 = prepped["wp2"].shape[1]

    TB, B_pad = _choose_tb(B)
    if B_pad != B:
        pad = [(0, 0), (0, B_pad - B), (0, 0)]
        prev_actions = jnp.pad(prev_actions, pad)
        rewards = jnp.pad(rewards, pad)
        observs = jnp.pad(observs, pad)
    nb = B_pad // TB

    TT = _choose_tt(T, TB, (A, O, Ae, Re, Oe, H, Ce, P1, P2))
    nt = T // TT

    def seq_spec(dim):
        return pl.BlockSpec((TT, TB, dim), lambda b, t: (t, b, 0))

    def w_spec(w):
        # Constant index map -> block-invariant, fetched once.
        return pl.BlockSpec(w.shape, lambda b, t: (0,) * w.ndim)

    weights = [
        prepped["wa"], prepped["ba"], prepped["wr"], prepped["br"],
        prepped["wo"], prepped["bo"],
        prepped["wih_a"], prepped["wih_r"], prepped["wih_o"], prepped["bih"],
        prepped["whh"], prepped["bhh"],
        prepped["wc"], prepped["bc"],
        prepped["wp1h"], prepped["wp1c"], prepped["bp1"],
        prepped["wp2"], prepped["bp2"], prepped["wpo"], prepped["bpo"],
    ]

    out = pl.pallas_call(
        _actor_rnn_kernel,
        out_shape=jax.ShapeDtypeStruct((T, B_pad, A), jnp.float32),
        grid_spec=pltpu.PrefetchScalarGridSpec(
            num_scalar_prefetch=0,
            grid=(nb, nt),
            in_specs=[seq_spec(A), seq_spec(1), seq_spec(O)]
                     + [w_spec(w) for w in weights],
            out_specs=seq_spec(A),
            scratch_shapes=[
                pltpu.VMEM((TT, TB, 3 * H), jnp.float32),   # gi
                pltpu.VMEM((TT, TB, H), jnp.float32),       # hidden-state sequence
                pltpu.VMEM((TB, H), jnp.float32),           # carried hidden state
            ],
        ),
        compiler_params=pltpu.CompilerParams(
            dimension_semantics=("parallel", "arbitrary"),
            vmem_limit_bytes=48 * 1024 * 1024,
        ),
    )(prev_actions, rewards, observs, *weights)

    return out[:, :B, :] if B_pad != B else out


actor_rnn_forward_jit = jax.jit(actor_rnn_forward)


# ------------------------- pure-JAX reference --------------------------------
def actor_rnn_reference(params, a_seq, r_seq, o_seq):
    relu = jax.nn.relu
    emb_a = relu(a_seq @ params["wa"] + params["ba"])
    emb_r = relu(r_seq @ params["wr"] + params["br"])
    emb_o = relu(o_seq @ params["wo"] + params["bo"])
    x_seq = jnp.concatenate([emb_a, emb_r, emb_o], axis=-1)

    H = params["whh"].shape[0]
    B = a_seq.shape[1]

    def gru_step(h, x):
        gi = x @ params["wih"] + params["bih"]
        gh = h @ params["whh"] + params["bhh"]
        i_r, i_z, i_n = gi[:, :H], gi[:, H:2 * H], gi[:, 2 * H:]
        h_r, h_z, h_n = gh[:, :H], gh[:, H:2 * H], gh[:, 2 * H:]
        rg = jax.nn.sigmoid(i_r + h_r)
        zg = jax.nn.sigmoid(i_z + h_z)
        ng = jnp.tanh(i_n + rg * h_n)
        h_new = (1.0 - zg) * ng + zg * h
        return h_new, h_new

    _, hs = lax.scan(gru_step, jnp.zeros((B, H), jnp.float32), x_seq)

    curr = relu(o_seq @ params["wc"] + params["bc"])
    joint = jnp.concatenate([hs, curr], axis=-1)
    p = relu(joint @ params["wp1"] + params["bp1"])
    p = relu(p @ params["wp2"] + params["bp2"])
    return jnp.tanh(p @ params["wpo"] + params["bpo"])


# ------------------------------- setup ---------------------------------------
def init_params(key, obs_dim, action_dim, act_emb, obs_emb, rew_emb, hidden, policy_layers):
    ks = jax.random.split(key, 12)

    def lin(k, n_in, n_out):
        w = jax.random.normal(k, (n_in, n_out), jnp.float32) / jnp.sqrt(n_in)
        b = jnp.zeros((1, n_out), jnp.float32)
        return w, b

    rnn_in = act_emb + obs_emb + rew_emb
    wa, ba = lin(ks[0], action_dim, act_emb)
    wr, br = lin(ks[1], 1, rew_emb)
    wo, bo = lin(ks[2], obs_dim, obs_emb)
    # GRU weights: scaled normal, zero biases (module inits biases to 0)
    wih = jax.random.normal(ks[3], (rnn_in, 3 * hidden), jnp.float32) / jnp.sqrt(rnn_in)
    whh = jax.random.normal(ks[4], (hidden, 3 * hidden), jnp.float32) / jnp.sqrt(hidden)
    bih = jnp.zeros((1, 3 * hidden), jnp.float32)
    bhh = jnp.zeros((1, 3 * hidden), jnp.float32)
    wc, bc = lin(ks[5], obs_dim, obs_emb)
    p1, p2 = policy_layers
    wp1, bp1 = lin(ks[6], hidden + obs_emb, p1)
    wp2, bp2 = lin(ks[7], p1, p2)
    wpo, bpo = lin(ks[8], p2, action_dim)
    return dict(wa=wa, ba=ba, wr=wr, br=br, wo=wo, bo=bo,
                wih=wih, bih=bih, whh=whh, bhh=bhh,
                wc=wc, bc=bc,
                wp1=wp1, bp1=bp1, wp2=wp2, bp2=bp2, wpo=wpo, bpo=bpo)


if __name__ == "__main__":
    # small, module-consistent shapes
    T, B = 8, 4                    # sequence length (T+1), batch
    obs_dim, action_dim = 16, 4
    act_emb, obs_emb, rew_emb = 8, 16, 8
    hidden = 32
    policy_layers = (32, 32)

    key = jax.random.PRNGKey(0)
    kp, ka, kr, ko = jax.random.split(key, 4)
    params = init_params(kp, obs_dim, action_dim, act_emb, obs_emb, rew_emb,
                         hidden, policy_layers)
    prepped = prepare_params(params)   # one-time weight prep (outside jit)

    prev_actions = jax.random.normal(ka, (T, B, action_dim), jnp.float32)
    rewards = jax.random.normal(kr, (T, B, 1), jnp.float32)
    observs = jax.random.normal(ko, (T, B, obs_dim), jnp.float32)

    out = actor_rnn_forward_jit(prepped, prev_actions, rewards, observs)
    out = jax.block_until_ready(out)

    ref = jax.block_until_ready(actor_rnn_reference(params, prev_actions, rewards, observs))
    assert out.shape == (T, B, action_dim)
    assert bool(jnp.all(jnp.isfinite(out)))
    err = float(jnp.max(jnp.abs(out - ref)))
    assert err < 1e-3, err

    print("KERNEL_OK")
</pallas_src>

<mosaic_0001>
module attributes {stable_mosaic.version = 11 : i64} {
  func.func @_actor_rnn_kernel(%arg0: i32, %arg1: i32, %arg2: memref<8x8x4xf32, #tpu.memory_space<vmem>>, %arg3: memref<8x8x1xf32, #tpu.memory_space<vmem>>, %arg4: memref<8x8x16xf32, #tpu.memory_space<vmem>>, %arg5: memref<4x8xf32, #tpu.memory_space<vmem>>, %arg6: memref<1x8xf32, #tpu.memory_space<vmem>>, %arg7: memref<1x8xf32, #tpu.memory_space<vmem>>, %arg8: memref<1x8xf32, #tpu.memory_space<vmem>>, %arg9: memref<16x16xf32, #tpu.memory_space<vmem>>, %arg10: memref<1x16xf32, #tpu.memory_space<vmem>>, %arg11: memref<8x96xf32, #tpu.memory_space<vmem>>, %arg12: memref<8x96xf32, #tpu.memory_space<vmem>>, %arg13: memref<16x96xf32, #tpu.memory_space<vmem>>, %arg14: memref<1x96xf32, #tpu.memory_space<vmem>>, %arg15: memref<32x96xf32, #tpu.memory_space<vmem>>, %arg16: memref<1x96xf32, #tpu.memory_space<vmem>>, %arg17: memref<16x16xf32, #tpu.memory_space<vmem>>, %arg18: memref<1x16xf32, #tpu.memory_space<vmem>>, %arg19: memref<32x32xf32, #tpu.memory_space<vmem>>, %arg20: memref<16x32xf32, #tpu.memory_space<vmem>>, %arg21: memref<1x32xf32, #tpu.memory_space<vmem>>, %arg22: memref<32x32xf32, #tpu.memory_space<vmem>>, %arg23: memref<1x32xf32, #tpu.memory_space<vmem>>, %arg24: memref<32x4xf32, #tpu.memory_space<vmem>>, %arg25: memref<1x4xf32, #tpu.memory_space<vmem>>, %arg26: memref<8x8x4xf32, #tpu.memory_space<vmem>>, %arg27: memref<8x8x96xf32, #tpu.memory_space<vmem>>, %arg28: memref<8x8x32xf32, #tpu.memory_space<vmem>>, %arg29: memref<8x32xf32, #tpu.memory_space<vmem>>) attributes {dimension_semantics = [#tpu.dimension_semantics<parallel>, #tpu.dimension_semantics<arbitrary>], iteration_bounds = array<i64: 1, 1>, scalar_prefetch = 0 : i64, scratch_operands = 3 : i64, tpu.core_type = #tpu.core_type<tc>, window_params = [{transform_indices = @transform_0, window_bounds = array<i64: 8, 8, 4>}, {transform_indices = @transform_1, window_bounds = array<i64: 8, 8, 1>}, {transform_indices = @transform_2, window_bounds = array<i64: 8, 8, 16>}, {pipeline_mode = #tpu.pipeline_mode<synchronous>, transform_indices = @transform_3, window_bounds = array<i64: 4, 8>}, {pipeline_mode = #tpu.pipeline_mode<synchronous>, transform_indices = @transform_4, window_bounds = array<i64: 1, 8>}, {pipeline_mode = #tpu.pipeline_mode<synchronous>, transform_indices = @transform_5, window_bounds = array<i64: 1, 8>}, {pipeline_mode = #tpu.pipeline_mode<synchronous>, transform_indices = @transform_6, window_bounds = array<i64: 1, 8>}, {pipeline_mode = #tpu.pipeline_mode<synchronous>, transform_indices = @transform_7, window_bounds = array<i64: 16, 16>}, {pipeline_mode = #tpu.pipeline_mode<synchronous>, transform_indices = @transform_8, window_bounds = array<i64: 1, 16>}, {pipeline_mode = #tpu.pipeline_mode<synchronous>, transform_indices = @transform_9, window_bounds = array<i64: 8, 96>}, {pipeline_mode = #tpu.pipeline_mode<synchronous>, transform_indices = @transform_10, window_bounds = array<i64: 8, 96>}, {pipeline_mode = #tpu.pipeline_mode<synchronous>, transform_indices = @transform_11, window_bounds = array<i64: 16, 96>}, {pipeline_mode = #tpu.pipeline_mode<synchronous>, transform_indices = @transform_12, window_bounds = array<i64: 1, 96>}, {pipeline_mode = #tpu.pipeline_mode<synchronous>, transform_indices = @transform_13, window_bounds = array<i64: 32, 96>}, {pipeline_mode = #tpu.pipeline_mode<synchronous>, transform_indices = @transform_14, window_bounds = array<i64: 1, 96>}, {pipeline_mode = #tpu.pipeline_mode<synchronous>, transform_indices = @transform_15, window_bounds = array<i64: 16, 16>}, {pipeline_mode = #tpu.pipeline_mode<synchronous>, transform_indices = @transform_16, window_bounds = array<i64: 1, 16>}, {pipeline_mode = #tpu.pipeline_mode<synchronous>, transform_indices = @transform_17, window_bounds = array<i64: 32, 32>}, {pipeline_mode = #tpu.pipeline_mode<synchronous>, transform_indices = @transform_18, window_bounds = array<i64: 16, 32>}, {pipeline_mode = #tpu.pipeline_mode<synchronous>, transform_indices = @transform_19, window_bounds = array<i64: 1, 32>}, {pipeline_mode = #tpu.pipeline_mode<synchronous>, transform_indices = @transform_20, window_bounds = array<i64: 32, 32>}, {pipeline_mode = #tpu.pipeline_mode<synchronous>, transform_indices = @transform_21, window_bounds = array<i64: 1, 32>}, {pipeline_mode = #tpu.pipeline_mode<synchronous>, transform_indices = @transform_22, window_bounds = array<i64: 32, 4>}, {pipeline_mode = #tpu.pipeline_mode<synchronous>, transform_indices = @transform_23, window_bounds = array<i64: 1, 4>}, {transform_indices = @transform_24, window_bounds = array<i64: 8, 8, 4>}]} {
    %c0 = arith.constant 0 : index
    %c0_0 = arith.constant 0 : index
    %c0_1 = arith.constant 0 : index
    %0 = vector.load %arg2[%c0, %c0_0, %c0_1] : memref<8x8x4xf32, #tpu.memory_space<vmem>>, vector<8x8x4xf32>
    %1 = vector.shape_cast %0 : vector<8x8x4xf32> to vector<64x4xf32>
    %c0_2 = arith.constant 0 : index
    %c0_3 = arith.constant 0 : index
    %c0_4 = arith.constant 0 : index
    %2 = vector.load %arg3[%c0_2, %c0_3, %c0_4] : memref<8x8x1xf32, #tpu.memory_space<vmem>>, vector<8x8x1xf32>
    %3 = vector.shape_cast %2 : vector<8x8x1xf32> to vector<64x1xf32>
    %c0_5 = arith.constant 0 : index
    %c0_6 = arith.constant 0 : index
    %c0_7 = arith.constant 0 : index
    %4 = vector.load %arg4[%c0_5, %c0_6, %c0_7] : memref<8x8x16xf32, #tpu.memory_space<vmem>>, vector<8x8x16xf32>
    %5 = vector.shape_cast %4 : vector<8x8x16xf32> to vector<64x16xf32>
    %c0_8 = arith.constant 0 : index
    %c0_9 = arith.constant 0 : index
    %6 = vector.load %arg5[%c0_8, %c0_9] : memref<4x8xf32, #tpu.memory_space<vmem>>, vector<4x8xf32>
    %cst = arith.constant dense<0.000000e+00> : vector<64x8xf32>
    %7 = tpu.matmul %1, %6, %cst {dimension_numbers = #tpu.dot_dimension_numbers<[1], [0], [0], [1], [0, 0, 1, 1], [], []>} : vector<64x4xf32>, vector<4x8xf32>, vector<64x8xf32> -> vector<64x8xf32>
    %c0_10 = arith.constant 0 : index
    %c0_11 = arith.constant 0 : index
    %8 = vector.load %arg6[%c0_10, %c0_11] : memref<1x8xf32, #tpu.memory_space<vmem>>, vector<1x8xf32>
    %9 = vector.broadcast %8 : vector<1x8xf32> to vector<64x8xf32>
    %10 = arith.addf %7, %9 : vector<64x8xf32>
    %cst_12 = arith.constant 0.000000e+00 : f32
    %11 = vector.broadcast %cst_12 : f32 to vector<64x8xf32>
    %12 = arith.maximumf %10, %11 : vector<64x8xf32>
    %c0_13 = arith.constant 0 : index
    %c0_14 = arith.constant 0 : index
    %13 = vector.load %arg7[%c0_13, %c0_14] : memref<1x8xf32, #tpu.memory_space<vmem>>, vector<1x8xf32>
    %14 = vector.broadcast %3 : vector<64x1xf32> to vector<64x8xf32>
    %15 = vector.broadcast %13 : vector<1x8xf32> to vector<64x8xf32>
    %16 = arith.mulf %14, %15 : vector<64x8xf32>
    %c0_15 = arith.constant 0 : index
    %c0_16 = arith.constant 0 : index
    %17 = vector.load %arg8[%c0_15, %c0_16] : memref<1x8xf32, #tpu.memory_space<vmem>>, vector<1x8xf32>
    %18 = vector.broadcast %17 : vector<1x8xf32> to vector<64x8xf32>
    %19 = arith.addf %16, %18 : vector<64x8xf32>
    %cst_17 = arith.constant 0.000000e+00 : f32
    %20 = vector.broadcast %cst_17 : f32 to vector<64x8xf32>
    %21 = arith.maximumf %19, %20 : vector<64x8xf32>
    %c0_18 = arith.constant 0 : index
    %c0_19 = arith.constant 0 : index
    %22 = vector.load %arg9[%c0_18, %c0_19] : memref<16x16xf32, #tpu.memory_space<vmem>>, vector<16x16xf32>
    %cst_20 = arith.constant dense<0.000000e+00> : vector<64x16xf32>
    %23 = tpu.matmul %5, %22, %cst_20 {dimension_numbers = #tpu.dot_dimension_numbers<[1], [0], [0], [1], [0, 0, 1, 1], [], []>} : vector<64x16xf32>, vector<16x16xf32>, vector<64x16xf32> -> vector<64x16xf32>
    %c0_21 = arith.constant 0 : index
    %c0_22 = arith.constant 0 : index
    %24 = vector.load %arg10[%c0_21, %c0_22] : memref<1x16xf32, #tpu.memory_space<vmem>>, vector<1x16xf32>
    %25 = vector.broadcast %24 : vector<1x16xf32> to vector<64x16xf32>
    %26 = arith.addf %23, %25 : vector<64x16xf32>
    %cst_23 = arith.constant 0.000000e+00 : f32
    %27 = vector.broadcast %cst_23 : f32 to vector<64x16xf32>
    %28 = arith.maximumf %26, %27 : vector<64x16xf32>
    %c0_24 = arith.constant 0 : index
    %c0_25 = arith.constant 0 : index
    %29 = vector.load %arg11[%c0_24, %c0_25] : memref<8x96xf32, #tpu.memory_space<vmem>>, vector<8x96xf32>
    %cst_26 = arith.constant dense<0.000000e+00> : vector<64x96xf32>
    %30 = tpu.matmul %12, %29, %cst_26 {dimension_numbers = #tpu.dot_dimension_numbers<[1], [0], [0], [1], [0, 0, 1, 1], [], []>} : vector<64x8xf32>, vector<8x96xf32>, vector<64x96xf32> -> vector<64x96xf32>
    %c0_27 = arith.constant 0 : index
    %c0_28 = arith.constant 0 : index
    %31 = vector.load %arg12[%c0_27, %c0_28] : memref<8x96xf32, #tpu.memory_space<vmem>>, vector<8x96xf32>
    %cst_29 = arith.constant dense<0.000000e+00> : vector<64x96xf32>
    %32 = tpu.matmul %21, %31, %cst_29 {dimension_numbers = #tpu.dot_dimension_numbers<[1], [0], [0], [1], [0, 0, 1, 1], [], []>} : vector<64x8xf32>, vector<8x96xf32>, vector<64x96xf32> -> vector<64x96xf32>
    %33 = arith.addf %30, %32 : vector<64x96xf32>
    %c0_30 = arith.constant 0 : index
    %c0_31 = arith.constant 0 : index
    %34 = vector.load %arg13[%c0_30, %c0_31] : memref<16x96xf32, #tpu.memory_space<vmem>>, vector<16x96xf32>
    %cst_32 = arith.constant dense<0.000000e+00> : vector<64x96xf32>
    %35 = tpu.matmul %28, %34, %cst_32 {dimension_numbers = #tpu.dot_dimension_numbers<[1], [0], [0], [1], [0, 0, 1, 1], [], []>} : vector<64x16xf32>, vector<16x96xf32>, vector<64x96xf32> -> vector<64x96xf32>
    %36 = arith.addf %33, %35 : vector<64x96xf32>
    %c0_33 = arith.constant 0 : index
    %c0_34 = arith.constant 0 : index
    %37 = vector.load %arg14[%c0_33, %c0_34] : memref<1x96xf32, #tpu.memory_space<vmem>>, vector<1x96xf32>
    %38 = vector.broadcast %37 : vector<1x96xf32> to vector<64x96xf32>
    %39 = arith.addf %36, %38 : vector<64x96xf32>
    %40 = vector.shape_cast %39 : vector<64x96xf32> to vector<8x8x96xf32>
    %c0_35 = arith.constant 0 : index
    %c0_36 = arith.constant 0 : index
    %c0_37 = arith.constant 0 : index
    %41 = vector.load %arg27[%c0_35, %c0_36, %c0_37] : memref<8x8x96xf32, #tpu.memory_space<vmem>>, vector<8x8x96xf32>
    tpu.vector_store %arg27[%c0_35, %c0_36, %c0_37], %40 {strides = array<i32>} : memref<8x8x96xf32, #tpu.memory_space<vmem>>, vector<8x8x96xf32>,
    %c0_i32 = arith.constant 0 : i32
    %42 = arith.cmpi eq, %arg1, %c0_i32 : i32
    %43 = arith.extui %42 : i1 to i32
    %c0_i32_38 = arith.constant 0 : i32
    %44 = arith.cmpi ne, %43, %c0_i32_38 : i32
    scf.if %44 {
      %cst_144 = arith.constant 0.000000e+00 : f32
      %371 = vector.broadcast %cst_144 : f32 to vector<8x32xf32>
      %c0_145 = arith.constant 0 : index
      %c0_146 = arith.constant 0 : index
      %372 = vector.load %arg29[%c0_145, %c0_146] : memref<8x32xf32, #tpu.memory_space<vmem>>, vector<8x32xf32>
      tpu.vector_store %arg29[%c0_145, %c0_146], %371 {strides = array<i32>} : memref<8x32xf32, #tpu.memory_space<vmem>>, vector<8x32xf32>,
    } else {
    }
    %c0_39 = arith.constant 0 : index
    %c0_40 = arith.constant 0 : index
    %45 = vector.load %arg15[%c0_39, %c0_40] : memref<32x96xf32, #tpu.memory_space<vmem>>, vector<32x96xf32>
    %c0_41 = arith.constant 0 : index
    %c0_42 = arith.constant 0 : index
    %46 = vector.load %arg16[%c0_41, %c0_42] : memref<1x96xf32, #tpu.memory_space<vmem>>, vector<1x96xf32>
    %c0_43 = arith.constant 0 : index
    %c0_44 = arith.constant 0 : index
    %47 = vector.load %arg29[%c0_43, %c0_44] : memref<8x32xf32, #tpu.memory_space<vmem>>, vector<8x32xf32>
    %c0_i32_45 = arith.constant 0 : i32
    %cst_46 = arith.constant dense<0.000000e+00> : vector<8x96xf32>
    %48 = tpu.matmul %47, %45, %cst_46 {dimension_numbers = #tpu.dot_dimension_numbers<[1], [0], [0], [1], [0, 0, 1, 1], [], []>} : vector<8x32xf32>, vector<32x96xf32>, vector<8x96xf32> -> vector<8x96xf32>
    %49 = vector.broadcast %46 : vector<1x96xf32> to vector<8x96xf32>
    %50 = arith.addf %48, %49 : vector<8x96xf32>
    %51 = arith.index_cast %c0_i32_45 : i32 to index
    %c0_47 = arith.constant 0 : index
    %c0_48 = arith.constant 0 : index
    %52 = vector.load %arg27[%51, %c0_47, %c0_48] : memref<8x8x96xf32, #tpu.memory_space<vmem>>, vector<1x8x96xf32>
    %53 = vector.shape_cast %52 : vector<1x8x96xf32> to vector<8x96xf32>
    %54 = vector.extract_strided_slice %53 {offsets = [0, 0], sizes = [8, 32], strides = [1, 1]} : vector<8x96xf32> to vector<8x32xf32>
    %55 = vector.extract_strided_slice %50 {offsets = [0, 0], sizes = [8, 32], strides = [1, 1]} : vector<8x96xf32> to vector<8x32xf32>
    %56 = arith.addf %54, %55 : vector<8x32xf32>
    %57 = arith.negf %56 : vector<8x32xf32>
    %58 = math.exp %57 : vector<8x32xf32>
    %cst_49 = arith.constant 1.000000e+00 : f32
    %59 = vector.broadcast %cst_49 : f32 to vector<8x32xf32>
    %60 = arith.addf %59, %58 : vector<8x32xf32>
    %61 = arith.divf %59, %60 : vector<8x32xf32>
    %62 = vector.extract_strided_slice %53 {offsets = [0, 32], sizes = [8, 32], strides = [1, 1]} : vector<8x96xf32> to vector<8x32xf32>
    %63 = vector.extract_strided_slice %50 {offsets = [0, 32], sizes = [8, 32], strides = [1, 1]} : vector<8x96xf32> to vector<8x32xf32>
    %64 = arith.addf %62, %63 : vector<8x32xf32>
    %65 = arith.negf %64 : vector<8x32xf32>
    %66 = math.exp %65 : vector<8x32xf32>
    %cst_50 = arith.constant 1.000000e+00 : f32
    %67 = vector.broadcast %cst_50 : f32 to vector<8x32xf32>
    %68 = arith.addf %67, %66 : vector<8x32xf32>
    %69 = arith.divf %67, %68 : vector<8x32xf32>
    %70 = vector.extract_strided_slice %53 {offsets = [0, 64], sizes = [8, 32], strides = [1, 1]} : vector<8x96xf32> to vector<8x32xf32>
    %71 = vector.extract_strided_slice %50 {offsets = [0, 64], sizes = [8, 32], strides = [1, 1]} : vector<8x96xf32> to vector<8x32xf32>
    %72 = arith.mulf %61, %71 : vector<8x32xf32>
    %73 = arith.addf %70, %72 : vector<8x32xf32>
    %74 = math.tanh %73 : vector<8x32xf32>
    %cst_51 = arith.constant 1.000000e+00 : f32
    %75 = vector.broadcast %cst_51 : f32 to vector<8x32xf32>
    %76 = arith.subf %75, %69 : vector<8x32xf32>
    %77 = arith.mulf %76, %74 : vector<8x32xf32>
    %78 = arith.mulf %69, %47 : vector<8x32xf32>
    %79 = arith.addf %77, %78 : vector<8x32xf32>
    %80 = arith.index_cast %c0_i32_45 : i32 to index
    %c0_52 = arith.constant 0 : index
    %c0_53 = arith.constant 0 : index
    %81 = vector.load %arg28[%80, %c0_52, %c0_53] : memref<8x8x32xf32, #tpu.memory_space<vmem>>, vector<1x8x32xf32>
    %82 = vector.shape_cast %81 : vector<1x8x32xf32> to vector<8x32xf32>
    %83 = vector.shape_cast %79 : vector<8x32xf32> to vector<1x8x32xf32>
    tpu.vector_store %arg28[%80, %c0_52, %c0_53], %83 {strides = array<i32>} : memref<8x8x32xf32, #tpu.memory_space<vmem>>, vector<1x8x32xf32>,
    %c1_i32 = arith.constant 1 : i32
    %cst_54 = arith.constant dense<0.000000e+00> : vector<8x96xf32>
    %84 = tpu.matmul %79, %45, %cst_54 {dimension_numbers = #tpu.dot_dimension_numbers<[1], [0], [0], [1], [0, 0, 1, 1], [], []>} : vector<8x32xf32>, vector<32x96xf32>, vector<8x96xf32> -> vector<8x96xf32>
    %85 = vector.broadcast %46 : vector<1x96xf32> to vector<8x96xf32>
    %86 = arith.addf %84, %85 : vector<8x96xf32>
    %87 = arith.index_cast %c1_i32 : i32 to index
    %c0_55 = arith.constant 0 : index
    %c0_56 = arith.constant 0 : index
    %88 = vector.load %arg27[%87, %c0_55, %c0_56] : memref<8x8x96xf32, #tpu.memory_space<vmem>>, vector<1x8x96xf32>
    %89 = vector.shape_cast %88 : vector<1x8x96xf32> to vector<8x96xf32>
    %90 = vector.extract_strided_slice %89 {offsets = [0, 0], sizes = [8, 32], strides = [1, 1]} : vector<8x96xf32> to vector<8x32xf32>
    %91 = vector.extract_strided_slice %86 {offsets = [0, 0], sizes = [8, 32], strides = [1, 1]} : vector<8x96xf32> to vector<8x32xf32>
    %92 = arith.addf %90, %91 : vector<8x32xf32>
    %93 = arith.negf %92 : vector<8x32xf32>
    %94 = math.exp %93 : vector<8x32xf32>
    %cst_57 = arith.constant 1.000000e+00 : f32
    %95 = vector.broadcast %cst_57 : f32 to vector<8x32xf32>
    %96 = arith.addf %95, %94 : vector<8x32xf32>
    %97 = arith.divf %95, %96 : vector<8x32xf32>
    %98 = vector.extract_strided_slice %89 {offsets = [0, 32], sizes = [8, 32], strides = [1, 1]} : vector<8x96xf32> to vector<8x32xf32>
    %99 = vector.extract_strided_slice %86 {offsets = [0, 32], sizes = [8, 32], strides = [1, 1]} : vector<8x96xf32> to vector<8x32xf32>
    %100 = arith.addf %98, %99 : vector<8x32xf32>
    %101 = arith.negf %100 : vector<8x32xf32>
    %102 = math.exp %101 : vector<8x32xf32>
    %cst_58 = arith.constant 1.000000e+00 : f32
    %103 = vector.broadcast %cst_58 : f32 to vector<8x32xf32>
    %104 = arith.addf %103, %102 : vector<8x32xf32>
    %105 = arith.divf %103, %104 : vector<8x32xf32>
    %106 = vector.extract_strided_slice %89 {offsets = [0, 64], sizes = [8, 32], strides = [1, 1]} : vector<8x96xf32> to vector<8x32xf32>
    %107 = vector.extract_strided_slice %86 {offsets = [0, 64], sizes = [8, 32], strides = [1, 1]} : vector<8x96xf32> to vector<8x32xf32>
    %108 = arith.mulf %97, %107 : vector<8x32xf32>
    %109 = arith.addf %106, %108 : vector<8x32xf32>
    %110 = math.tanh %109 : vector<8x32xf32>
    %cst_59 = arith.constant 1.000000e+00 : f32
    %111 = vector.broadcast %cst_59 : f32 to vector<8x32xf32>
    %112 = arith.subf %111, %105 : vector<8x32xf32>
    %113 = arith.mulf %112, %110 : vector<8x32xf32>
    %114 = arith.mulf %105, %79 : vector<8x32xf32>
    %115 = arith.addf %113, %114 : vector<8x32xf32>
    %116 = arith.index_cast %c1_i32 : i32 to index
    %c0_60 = arith.constant 0 : index
    %c0_61 = arith.constant 0 : index
    %117 = vector.load %arg28[%116, %c0_60, %c0_61] : memref<8x8x32xf32, #tpu.memory_space<vmem>>, vector<1x8x32xf32>
    %118 = vector.shape_cast %117 : vector<1x8x32xf32> to vector<8x32xf32>
    %119 = vector.shape_cast %115 : vector<8x32xf32> to vector<1x8x32xf32>
    tpu.vector_store %arg28[%116, %c0_60, %c0_61], %119 {strides = array<i32>} : memref<8x8x32xf32, #tpu.memory_space<vmem>>, vector<1x8x32xf32>,
    %c2_i32 = arith.constant 2 : i32
    %cst_62 = arith.constant dense<0.000000e+00> : vector<8x96xf32>
    %120 = tpu.matmul %115, %45, %cst_62 {dimension_numbers = #tpu.dot_dimension_numbers<[1], [0], [0], [1], [0, 0, 1, 1], [], []>} : vector<8x32xf32>, vector<32x96xf32>, vector<8x96xf32> -> vector<8x96xf32>
    %121 = vector.broadcast %46 : vector<1x96xf32> to vector<8x96xf32>
    %122 = arith.addf %120, %121 : vector<8x96xf32>
    %123 = arith.index_cast %c2_i32 : i32 to index
    %c0_63 = arith.constant 0 : index
    %c0_64 = arith.constant 0 : index
    %124 = vector.load %arg27[%123, %c0_63, %c0_64] : memref<8x8x96xf32, #tpu.memory_space<vmem>>, vector<1x8x96xf32>
    %125 = vector.shape_cast %124 : vector<1x8x96xf32> to vector<8x96xf32>
    %126 = vector.extract_strided_slice %125 {offsets = [0, 0], sizes = [8, 32], strides = [1, 1]} : vector<8x96xf32> to vector<8x32xf32>
    %127 = vector.extract_strided_slice %122 {offsets = [0, 0], sizes = [8, 32], strides = [1, 1]} : vector<8x96xf32> to vector<8x32xf32>
    %128 = arith.addf %126, %127 : vector<8x32xf32>
    %129 = arith.negf %128 : vector<8x32xf32>
    %130 = math.exp %129 : vector<8x32xf32>
    %cst_65 = arith.constant 1.000000e+00 : f32
    %131 = vector.broadcast %cst_65 : f32 to vector<8x32xf32>
    %132 = arith.addf %131, %130 : vector<8x32xf32>
    %133 = arith.divf %131, %132 : vector<8x32xf32>
    %134 = vector.extract_strided_slice %125 {offsets = [0, 32], sizes = [8, 32], strides = [1, 1]} : vector<8x96xf32> to vector<8x32xf32>
    %135 = vector.extract_strided_slice %122 {offsets = [0, 32], sizes = [8, 32], strides = [1, 1]} : vector<8x96xf32> to vector<8x32xf32>
    %136 = arith.addf %134, %135 : vector<8x32xf32>
    %137 = arith.negf %136 : vector<8x32xf32>
    %138 = math.exp %137 : vector<8x32xf32>
    %cst_66 = arith.constant 1.000000e+00 : f32
    %139 = vector.broadcast %cst_66 : f32 to vector<8x32xf32>
    %140 = arith.addf %139, %138 : vector<8x32xf32>
    %141 = arith.divf %139, %140 : vector<8x32xf32>
    %142 = vector.extract_strided_slice %125 {offsets = [0, 64], sizes = [8, 32], strides = [1, 1]} : vector<8x96xf32> to vector<8x32xf32>
    %143 = vector.extract_strided_slice %122 {offsets = [0, 64], sizes = [8, 32], strides = [1, 1]} : vector<8x96xf32> to vector<8x32xf32>
    %144 = arith.mulf %133, %143 : vector<8x32xf32>
    %145 = arith.addf %142, %144 : vector<8x32xf32>
    %146 = math.tanh %145 : vector<8x32xf32>
    %cst_67 = arith.constant 1.000000e+00 : f32
    %147 = vector.broadcast %cst_67 : f32 to vector<8x32xf32>
    %148 = arith.subf %147, %141 : vector<8x32xf32>
    %149 = arith.mulf %148, %146 : vector<8x32xf32>
    %150 = arith.mulf %141, %115 : vector<8x32xf32>
    %151 = arith.addf %149, %150 : vector<8x32xf32>
    %152 = arith.index_cast %c2_i32 : i32 to index
    %c0_68 = arith.constant 0 : index
    %c0_69 = arith.constant 0 : index
    %153 = vector.load %arg28[%152, %c0_68, %c0_69] : memref<8x8x32xf32, #tpu.memory_space<vmem>>, vector<1x8x32xf32>
    %154 = vector.shape_cast %153 : vector<1x8x32xf32> to vector<8x32xf32>
    %155 = vector.shape_cast %151 : vector<8x32xf32> to vector<1x8x32xf32>
    tpu.vector_store %arg28[%152, %c0_68, %c0_69], %155 {strides = array<i32>} : memref<8x8x32xf32, #tpu.memory_space<vmem>>, vector<1x8x32xf32>,
    %c3_i32 = arith.constant 3 : i32
    %cst_70 = arith.constant dense<0.000000e+00> : vector<8x96xf32>
    %156 = tpu.matmul %151, %45, %cst_70 {dimension_numbers = #tpu.dot_dimension_numbers<[1], [0], [0], [1], [0, 0, 1, 1], [], []>} : vector<8x32xf32>, vector<32x96xf32>, vector<8x96xf32> -> vector<8x96xf32>
    %157 = vector.broadcast %46 : vector<1x96xf32> to vector<8x96xf32>
    %158 = arith.addf %156, %157 : vector<8x96xf32>
    %159 = arith.index_cast %c3_i32 : i32 to index
    %c0_71 = arith.constant 0 : index
    %c0_72 = arith.constant 0 : index
    %160 = vector.load %arg27[%159, %c0_71, %c0_72] : memref<8x8x96xf32, #tpu.memory_space<vmem>>, vector<1x8x96xf32>
    %161 = vector.shape_cast %160 : vector<1x8x96xf32> to vector<8x96xf32>
    %162 = vector.extract_strided_slice %161 {offsets = [0, 0], sizes = [8, 32], strides = [1, 1]} : vector<8x96xf32> to vector<8x32xf32>
    %163 = vector.extract_strided_slice %158 {offsets = [0, 0], sizes = [8, 32], strides = [1, 1]} : vector<8x96xf32> to vector<8x32xf32>
    %164 = arith.addf %162, %163 : vector<8x32xf32>
    %165 = arith.negf %164 : vector<8x32xf32>
    %166 = math.exp %165 : vector<8x32xf32>
    %cst_73 = arith.constant 1.000000e+00 : f32
    %167 = vector.broadcast %cst_73 : f32 to vector<8x32xf32>
    %168 = arith.addf %167, %166 : vector<8x32xf32>
    %169 = arith.divf %167, %168 : vector<8x32xf32>
    %170 = vector.extract_strided_slice %161 {offsets = [0, 32], sizes = [8, 32], strides = [1, 1]} : vector<8x96xf32> to vector<8x32xf32>
    %171 = vector.extract_strided_slice %158 {offsets = [0, 32], sizes = [8, 32], strides = [1, 1]} : vector<8x96xf32> to vector<8x32xf32>
    %172 = arith.addf %170, %171 : vector<8x32xf32>
    %173 = arith.negf %172 : vector<8x32xf32>
    %174 = math.exp %173 : vector<8x32xf32>
    %cst_74 = arith.constant 1.000000e+00 : f32
    %175 = vector.broadcast %cst_74 : f32 to vector<8x32xf32>
    %176 = arith.addf %175, %174 : vector<8x32xf32>
    %177 = arith.divf %175, %176 : vector<8x32xf32>
    %178 = vector.extract_strided_slice %161 {offsets = [0, 64], sizes = [8, 32], strides = [1, 1]} : vector<8x96xf32> to vector<8x32xf32>
    %179 = vector.extract_strided_slice %158 {offsets = [0, 64], sizes = [8, 32], strides = [1, 1]} : vector<8x96xf32> to vector<8x32xf32>
    %180 = arith.mulf %169, %179 : vector<8x32xf32>
    %181 = arith.addf %178, %180 : vector<8x32xf32>
    %182 = math.tanh %181 : vector<8x32xf32>
    %cst_75 = arith.constant 1.000000e+00 : f32
    %183 = vector.broadcast %cst_75 : f32 to vector<8x32xf32>
    %184 = arith.subf %183, %177 : vector<8x32xf32>
    %185 = arith.mulf %184, %182 : vector<8x32xf32>
    %186 = arith.mulf %177, %151 : vector<8x32xf32>
    %187 = arith.addf %185, %186 : vector<8x32xf32>
    %188 = arith.index_cast %c3_i32 : i32 to index
    %c0_76 = arith.constant 0 : index
    %c0_77 = arith.constant 0 : index
    %189 = vector.load %arg28[%188, %c0_76, %c0_77] : memref<8x8x32xf32, #tpu.memory_space<vmem>>, vector<1x8x32xf32>
    %190 = vector.shape_cast %189 : vector<1x8x32xf32> to vector<8x32xf32>
    %191 = vector.shape_cast %187 : vector<8x32xf32> to vector<1x8x32xf32>
    tpu.vector_store %arg28[%188, %c0_76, %c0_77], %191 {strides = array<i32>} : memref<8x8x32xf32, #tpu.memory_space<vmem>>, vector<1x8x32xf32>,
    %c4_i32 = arith.constant 4 : i32
    %cst_78 = arith.constant dense<0.000000e+00> : vector<8x96xf32>
    %192 = tpu.matmul %187, %45, %cst_78 {dimension_numbers = #tpu.dot_dimension_numbers<[1], [0], [0], [1], [0, 0, 1, 1], [], []>} : vector<8x32xf32>, vector<32x96xf32>, vector<8x96xf32> -> vector<8x96xf32>
    %193 = vector.broadcast %46 : vector<1x96xf32> to vector<8x96xf32>
    %194 = arith.addf %192, %193 : vector<8x96xf32>
    %195 = arith.index_cast %c4_i32 : i32 to index
    %c0_79 = arith.constant 0 : index
    %c0_80 = arith.constant 0 : index
    %196 = vector.load %arg27[%195, %c0_79, %c0_80] : memref<8x8x96xf32, #tpu.memory_space<vmem>>, vector<1x8x96xf32>
    %197 = vector.shape_cast %196 : vector<1x8x96xf32> to vector<8x96xf32>
    %198 = vector.extract_strided_slice %197 {offsets = [0, 0], sizes = [8, 32], strides = [1, 1]} : vector<8x96xf32> to vector<8x32xf32>
    %199 = vector.extract_strided_slice %194 {offsets = [0, 0], sizes = [8, 32], strides = [1, 1]} : vector<8x96xf32> to vector<8x32xf32>
    %200 = arith.addf %198, %199 : vector<8x32xf32>
    %201 = arith.negf %200 : vector<8x32xf32>
    %202 = math.exp %201 : vector<8x32xf32>
    %cst_81 = arith.constant 1.000000e+00 : f32
    %203 = vector.broadcast %cst_81 : f32 to vector<8x32xf32>
    %204 = arith.addf %203, %202 : vector<8x32xf32>
    %205 = arith.divf %203, %204 : vector<8x32xf32>
    %206 = vector.extract_strided_slice %197 {offsets = [0, 32], sizes = [8, 32], strides = [1, 1]} : vector<8x96xf32> to vector<8x32xf32>
    %207 = vector.extract_strided_slice %194 {offsets = [0, 32], sizes = [8, 32], strides = [1, 1]} : vector<8x96xf32> to vector<8x32xf32>
    %208 = arith.addf %206, %207 : vector<8x32xf32>
    %209 = arith.negf %208 : vector<8x32xf32>
    %210 = math.exp %209 : vector<8x32xf32>
    %cst_82 = arith.constant 1.000000e+00 : f32
    %211 = vector.broadcast %cst_82 : f32 to vector<8x32xf32>
    %212 = arith.addf %211, %210 : vector<8x32xf32>
    %213 = arith.divf %211, %212 : vector<8x32xf32>
    %214 = vector.extract_strided_slice %197 {offsets = [0, 64], sizes = [8, 32], strides = [1, 1]} : vector<8x96xf32> to vector<8x32xf32>
    %215 = vector.extract_strided_slice %194 {offsets = [0, 64], sizes = [8, 32], strides = [1, 1]} : vector<8x96xf32> to vector<8x32xf32>
    %216 = arith.mulf %205, %215 : vector<8x32xf32>
    %217 = arith.addf %214, %216 : vector<8x32xf32>
    %218 = math.tanh %217 : vector<8x32xf32>
    %cst_83 = arith.constant 1.000000e+00 : f32
    %219 = vector.broadcast %cst_83 : f32 to vector<8x32xf32>
    %220 = arith.subf %219, %213 : vector<8x32xf32>
    %221 = arith.mulf %220, %218 : vector<8x32xf32>
    %222 = arith.mulf %213, %187 : vector<8x32xf32>
    %223 = arith.addf %221, %222 : vector<8x32xf32>
    %224 = arith.index_cast %c4_i32 : i32 to index
    %c0_84 = arith.constant 0 : index
    %c0_85 = arith.constant 0 : index
    %225 = vector.load %arg28[%224, %c0_84, %c0_85] : memref<8x8x32xf32, #tpu.memory_space<vmem>>, vector<1x8x32xf32>
    %226 = vector.shape_cast %225 : vector<1x8x32xf32> to vector<8x32xf32>
    %227 = vector.shape_cast %223 : vector<8x32xf32> to vector<1x8x32xf32>
    tpu.vector_store %arg28[%224, %c0_84, %c0_85], %227 {strides = array<i32>} : memref<8x8x32xf32, #tpu.memory_space<vmem>>, vector<1x8x32xf32>,
    %c5_i32 = arith.constant 5 : i32
    %cst_86 = arith.constant dense<0.000000e+00> : vector<8x96xf32>
    %228 = tpu.matmul %223, %45, %cst_86 {dimension_numbers = #tpu.dot_dimension_numbers<[1], [0], [0], [1], [0, 0, 1, 1], [], []>} : vector<8x32xf32>, vector<32x96xf32>, vector<8x96xf32> -> vector<8x96xf32>
    %229 = vector.broadcast %46 : vector<1x96xf32> to vector<8x96xf32>
    %230 = arith.addf %228, %229 : vector<8x96xf32>
    %231 = arith.index_cast %c5_i32 : i32 to index
    %c0_87 = arith.constant 0 : index
    %c0_88 = arith.constant 0 : index
    %232 = vector.load %arg27[%231, %c0_87, %c0_88] : memref<8x8x96xf32, #tpu.memory_space<vmem>>, vector<1x8x96xf32>
    %233 = vector.shape_cast %232 : vector<1x8x96xf32> to vector<8x96xf32>
    %234 = vector.extract_strided_slice %233 {offsets = [0, 0], sizes = [8, 32], strides = [1, 1]} : vector<8x96xf32> to vector<8x32xf32>
    %235 = vector.extract_strided_slice %230 {offsets = [0, 0], sizes = [8, 32], strides = [1, 1]} : vector<8x96xf32> to vector<8x32xf32>
    %236 = arith.addf %234, %235 : vector<8x32xf32>
    %237 = arith.negf %236 : vector<8x32xf32>
    %238 = math.exp %237 : vector<8x32xf32>
    %cst_89 = arith.constant 1.000000e+00 : f32
    %239 = vector.broadcast %cst_89 : f32 to vector<8x32xf32>
    %240 = arith.addf %239, %238 : vector<8x32xf32>
    %241 = arith.divf %239, %240 : vector<8x32xf32>
    %242 = vector.extract_strided_slice %233 {offsets = [0, 32], sizes = [8, 32], strides = [1, 1]} : vector<8x96xf32> to vector<8x32xf32>
    %243 = vector.extract_strided_slice %230 {offsets = [0, 32], sizes = [8, 32], strides = [1, 1]} : vector<8x96xf32> to vector<8x32xf32>
    %244 = arith.addf %242, %243 : vector<8x32xf32>
    %245 = arith.negf %244 : vector<8x32xf32>
    %246 = math.exp %245 : vector<8x32xf32>
    %cst_90 = arith.constant 1.000000e+00 : f32
    %247 = vector.broadcast %cst_90 : f32 to vector<8x32xf32>
    %248 = arith.addf %247, %246 : vector<8x32xf32>
    %249 = arith.divf %247, %248 : vector<8x32xf32>
    %250 = vector.extract_strided_slice %233 {offsets = [0, 64], sizes = [8, 32], strides = [1, 1]} : vector<8x96xf32> to vector<8x32xf32>
    %251 = vector.extract_strided_slice %230 {offsets = [0, 64], sizes = [8, 32], strides = [1, 1]} : vector<8x96xf32> to vector<8x32xf32>
    %252 = arith.mulf %241, %251 : vector<8x32xf32>
    %253 = arith.addf %250, %252 : vector<8x32xf32>
    %254 = math.tanh %253 : vector<8x32xf32>
    %cst_91 = arith.constant 1.000000e+00 : f32
    %255 = vector.broadcast %cst_91 : f32 to vector<8x32xf32>
    %256 = arith.subf %255, %249 : vector<8x32xf32>
    %257 = arith.mulf %256, %254 : vector<8x32xf32>
    %258 = arith.mulf %249, %223 : vector<8x32xf32>
    %259 = arith.addf %257, %258 : vector<8x32xf32>
    %260 = arith.index_cast %c5_i32 : i32 to index
    %c0_92 = arith.constant 0 : index
    %c0_93 = arith.constant 0 : index
    %261 = vector.load %arg28[%260, %c0_92, %c0_93] : memref<8x8x32xf32, #tpu.memory_space<vmem>>, vector<1x8x32xf32>
    %262 = vector.shape_cast %261 : vector<1x8x32xf32> to vector<8x32xf32>
    %263 = vector.shape_cast %259 : vector<8x32xf32> to vector<1x8x32xf32>
    tpu.vector_store %arg28[%260, %c0_92, %c0_93], %263 {strides = array<i32>} : memref<8x8x32xf32, #tpu.memory_space<vmem>>, vector<1x8x32xf32>,
    %c6_i32 = arith.constant 6 : i32
    %cst_94 = arith.constant dense<0.000000e+00> : vector<8x96xf32>
    %264 = tpu.matmul %259, %45, %cst_94 {dimension_numbers = #tpu.dot_dimension_numbers<[1], [0], [0], [1], [0, 0, 1, 1], [], []>} : vector<8x32xf32>, vector<32x96xf32>, vector<8x96xf32> -> vector<8x96xf32>
    %265 = vector.broadcast %46 : vector<1x96xf32> to vector<8x96xf32>
    %266 = arith.addf %264, %265 : vector<8x96xf32>
    %267 = arith.index_cast %c6_i32 : i32 to index
    %c0_95 = arith.constant 0 : index
    %c0_96 = arith.constant 0 : index
    %268 = vector.load %arg27[%267, %c0_95, %c0_96] : memref<8x8x96xf32, #tpu.memory_space<vmem>>, vector<1x8x96xf32>
    %269 = vector.shape_cast %268 : vector<1x8x96xf32> to vector<8x96xf32>
    %270 = vector.extract_strided_slice %269 {offsets = [0, 0], sizes = [8, 32], strides = [1, 1]} : vector<8x96xf32> to vector<8x32xf32>
    %271 = vector.extract_strided_slice %266 {offsets = [0, 0], sizes = [8, 32], strides = [1, 1]} : vector<8x96xf32> to vector<8x32xf32>
    %272 = arith.addf %270, %271 : vector<8x32xf32>
    %273 = arith.negf %272 : vector<8x32xf32>
    %274 = math.exp %273 : vector<8x32xf32>
    %cst_97 = arith.constant 1.000000e+00 : f32
    %275 = vector.broadcast %cst_97 : f32 to vector<8x32xf32>
    %276 = arith.addf %275, %274 : vector<8x32xf32>
    %277 = arith.divf %275, %276 : vector<8x32xf32>
    %278 = vector.extract_strided_slice %269 {offsets = [0, 32], sizes = [8, 32], strides = [1, 1]} : vector<8x96xf32> to vector<8x32xf32>
    %279 = vector.extract_strided_slice %266 {offsets = [0, 32], sizes = [8, 32], strides = [1, 1]} : vector<8x96xf32> to vector<8x32xf32>
    %280 = arith.addf %278, %279 : vector<8x32xf32>
    %281 = arith.negf %280 : vector<8x32xf32>
    %282 = math.exp %281 : vector<8x32xf32>
    %cst_98 = arith.constant 1.000000e+00 : f32
    %283 = vector.broadcast %cst_98 : f32 to vector<8x32xf32>
    %284 = arith.addf %283, %282 : vector<8x32xf32>
    %285 = arith.divf %283, %284 : vector<8x32xf32>
    %286 = vector.extract_strided_slice %269 {offsets = [0, 64], sizes = [8, 32], strides = [1, 1]} : vector<8x96xf32> to vector<8x32xf32>
    %287 = vector.extract_strided_slice %266 {offsets = [0, 64], sizes = [8, 32], strides = [1, 1]} : vector<8x96xf32> to vector<8x32xf32>
    %288 = arith.mulf %277, %287 : vector<8x32xf32>
    %289 = arith.addf %286, %288 : vector<8x32xf32>
    %290 = math.tanh %289 : vector<8x32xf32>
    %cst_99 = arith.constant 1.000000e+00 : f32
    %291 = vector.broadcast %cst_99 : f32 to vector<8x32xf32>
    %292 = arith.subf %291, %285 : vector<8x32xf32>
    %293 = arith.mulf %292, %290 : vector<8x32xf32>
    %294 = arith.mulf %285, %259 : vector<8x32xf32>
    %295 = arith.addf %293, %294 : vector<8x32xf32>
    %296 = arith.index_cast %c6_i32 : i32 to index
    %c0_100 = arith.constant 0 : index
    %c0_101 = arith.constant 0 : index
    %297 = vector.load %arg28[%296, %c0_100, %c0_101] : memref<8x8x32xf32, #tpu.memory_space<vmem>>, vector<1x8x32xf32>
    %298 = vector.shape_cast %297 : vector<1x8x32xf32> to vector<8x32xf32>
    %299 = vector.shape_cast %295 : vector<8x32xf32> to vector<1x8x32xf32>
    tpu.vector_store %arg28[%296, %c0_100, %c0_101], %299 {strides = array<i32>} : memref<8x8x32xf32, #tpu.memory_space<vmem>>, vector<1x8x32xf32>,
    %c7_i32 = arith.constant 7 : i32
    %cst_102 = arith.constant dense<0.000000e+00> : vector<8x96xf32>
    %300 = tpu.matmul %295, %45, %cst_102 {dimension_numbers = #tpu.dot_dimension_numbers<[1], [0], [0], [1], [0, 0, 1, 1], [], []>} : vector<8x32xf32>, vector<32x96xf32>, vector<8x96xf32> -> vector<8x96xf32>
    %301 = vector.broadcast %46 : vector<1x96xf32> to vector<8x96xf32>
    %302 = arith.addf %300, %301 : vector<8x96xf32>
    %303 = arith.index_cast %c7_i32 : i32 to index
    %c0_103 = arith.constant 0 : index
    %c0_104 = arith.constant 0 : index
    %304 = vector.load %arg27[%303, %c0_103, %c0_104] : memref<8x8x96xf32, #tpu.memory_space<vmem>>, vector<1x8x96xf32>
    %305 = vector.shape_cast %304 : vector<1x8x96xf32> to vector<8x96xf32>
    %306 = vector.extract_strided_slice %305 {offsets = [0, 0], sizes = [8, 32], strides = [1, 1]} : vector<8x96xf32> to vector<8x32xf32>
    %307 = vector.extract_strided_slice %302 {offsets = [0, 0], sizes = [8, 32], strides = [1, 1]} : vector<8x96xf32> to vector<8x32xf32>
    %308 = arith.addf %306, %307 : vector<8x32xf32>
    %309 = arith.negf %308 : vector<8x32xf32>
    %310 = math.exp %309 : vector<8x32xf32>
    %cst_105 = arith.constant 1.000000e+00 : f32
    %311 = vector.broadcast %cst_105 : f32 to vector<8x32xf32>
    %312 = arith.addf %311, %310 : vector<8x32xf32>
    %313 = arith.divf %311, %312 : vector<8x32xf32>
    %314 = vector.extract_strided_slice %305 {offsets = [0, 32], sizes = [8, 32], strides = [1, 1]} : vector<8x96xf32> to vector<8x32xf32>
    %315 = vector.extract_strided_slice %302 {offsets = [0, 32], sizes = [8, 32], strides = [1, 1]} : vector<8x96xf32> to vector<8x32xf32>
    %316 = arith.addf %314, %315 : vector<8x32xf32>
    %317 = arith.negf %316 : vector<8x32xf32>
    %318 = math.exp %317 : vector<8x32xf32>
    %cst_106 = arith.constant 1.000000e+00 : f32
    %319 = vector.broadcast %cst_106 : f32 to vector<8x32xf32>
    %320 = arith.addf %319, %318 : vector<8x32xf32>
    %321 = arith.divf %319, %320 : vector<8x32xf32>
    %322 = vector.extract_strided_slice %305 {offsets = [0, 64], sizes = [8, 32], strides = [1, 1]} : vector<8x96xf32> to vector<8x32xf32>
    %323 = vector.extract_strided_slice %302 {offsets = [0, 64], sizes = [8, 32], strides = [1, 1]} : vector<8x96xf32> to vector<8x32xf32>
    %324 = arith.mulf %313, %323 : vector<8x32xf32>
    %325 = arith.addf %322, %324 : vector<8x32xf32>
    %326 = math.tanh %325 : vector<8x32xf32>
    %cst_107 = arith.constant 1.000000e+00 : f32
    %327 = vector.broadcast %cst_107 : f32 to vector<8x32xf32>
    %328 = arith.subf %327, %321 : vector<8x32xf32>
    %329 = arith.mulf %328, %326 : vector<8x32xf32>
    %330 = arith.mulf %321, %295 : vector<8x32xf32>
    %331 = arith.addf %329, %330 : vector<8x32xf32>
    %332 = arith.index_cast %c7_i32 : i32 to index
    %c0_108 = arith.constant 0 : index
    %c0_109 = arith.constant 0 : index
    %333 = vector.load %arg28[%332, %c0_108, %c0_109] : memref<8x8x32xf32, #tpu.memory_space<vmem>>, vector<1x8x32xf32>
    %334 = vector.shape_cast %333 : vector<1x8x32xf32> to vector<8x32xf32>
    %335 = vector.shape_cast %331 : vector<8x32xf32> to vector<1x8x32xf32>
    tpu.vector_store %arg28[%332, %c0_108, %c0_109], %335 {strides = array<i32>} : memref<8x8x32xf32, #tpu.memory_space<vmem>>, vector<1x8x32xf32>,
    %c8_i32 = arith.constant 8 : i32
    %c0_110 = arith.constant 0 : index
    %c0_111 = arith.constant 0 : index
    %336 = vector.load %arg29[%c0_110, %c0_111] : memref<8x32xf32, #tpu.memory_space<vmem>>, vector<8x32xf32>
    tpu.vector_store %arg29[%c0_110, %c0_111], %331 {strides = array<i32>} : memref<8x32xf32, #tpu.memory_space<vmem>>, vector<8x32xf32>,
    %c0_112 = arith.constant 0 : index
    %c0_113 = arith.constant 0 : index
    %337 = vector.load %arg17[%c0_112, %c0_113] : memref<16x16xf32, #tpu.memory_space<vmem>>, vector<16x16xf32>
    %cst_114 = arith.constant dense<0.000000e+00> : vector<64x16xf32>
    %338 = tpu.matmul %5, %337, %cst_114 {dimension_numbers = #tpu.dot_dimension_numbers<[1], [0], [0], [1], [0, 0, 1, 1], [], []>} : vector<64x16xf32>, vector<16x16xf32>, vector<64x16xf32> -> vector<64x16xf32>
    %c0_115 = arith.constant 0 : index
    %c0_116 = arith.constant 0 : index
    %339 = vector.load %arg18[%c0_115, %c0_116] : memref<1x16xf32, #tpu.memory_space<vmem>>, vector<1x16xf32>
    %340 = vector.broadcast %339 : vector<1x16xf32> to vector<64x16xf32>
    %341 = arith.addf %338, %340 : vector<64x16xf32>
    %cst_117 = arith.constant 0.000000e+00 : f32
    %342 = vector.broadcast %cst_117 : f32 to vector<64x16xf32>
    %343 = arith.maximumf %341, %342 : vector<64x16xf32>
    %c0_118 = arith.constant 0 : index
    %c0_119 = arith.constant 0 : index
    %c0_120 = arith.constant 0 : index
    %344 = vector.load %arg28[%c0_118, %c0_119, %c0_120] : memref<8x8x32xf32, #tpu.memory_space<vmem>>, vector<8x8x32xf32>
    %345 = vector.shape_cast %344 : vector<8x8x32xf32> to vector<64x32xf32>
    %c0_121 = arith.constant 0 : index
    %c0_122 = arith.constant 0 : index
    %346 = vector.load %arg19[%c0_121, %c0_122] : memref<32x32xf32, #tpu.memory_space<vmem>>, vector<32x32xf32>
    %cst_123 = arith.constant dense<0.000000e+00> : vector<64x32xf32>
    %347 = tpu.matmul %345, %346, %cst_123 {dimension_numbers = #tpu.dot_dimension_numbers<[1], [0], [0], [1], [0, 0, 1, 1], [], []>} : vector<64x32xf32>, vector<32x32xf32>, vector<64x32xf32> -> vector<64x32xf32>
    %c0_124 = arith.constant 0 : index
    %c0_125 = arith.constant 0 : index
    %348 = vector.load %arg20[%c0_124, %c0_125] : memref<16x32xf32, #tpu.memory_space<vmem>>, vector<16x32xf32>
    %cst_126 = arith.constant dense<0.000000e+00> : vector<64x32xf32>
    %349 = tpu.matmul %343, %348, %cst_126 {dimension_numbers = #tpu.dot_dimension_numbers<[1], [0], [0], [1], [0, 0, 1, 1], [], []>} : vector<64x16xf32>, vector<16x32xf32>, vector<64x32xf32> -> vector<64x32xf32>
    %350 = arith.addf %347, %349 : vector<64x32xf32>
    %c0_127 = arith.constant 0 : index
    %c0_128 = arith.constant 0 : index
    %351 = vector.load %arg21[%c0_127, %c0_128] : memref<1x32xf32, #tpu.memory_space<vmem>>, vector<1x32xf32>
    %352 = vector.broadcast %351 : vector<1x32xf32> to vector<64x32xf32>
    %353 = arith.addf %350, %352 : vector<64x32xf32>
    %cst_129 = arith.constant 0.000000e+00 : f32
    %354 = vector.broadcast %cst_129 : f32 to vector<64x32xf32>
    %355 = arith.maximumf %353, %354 : vector<64x32xf32>
    %c0_130 = arith.constant 0 : index
    %c0_131 = arith.constant 0 : index
    %356 = vector.load %arg22[%c0_130, %c0_131] : memref<32x32xf32, #tpu.memory_space<vmem>>, vector<32x32xf32>
    %cst_132 = arith.constant dense<0.000000e+00> : vector<64x32xf32>
    %357 = tpu.matmul %355, %356, %cst_132 {dimension_numbers = #tpu.dot_dimension_numbers<[1], [0], [0], [1], [0, 0, 1, 1], [], []>} : vector<64x32xf32>, vector<32x32xf32>, vector<64x32xf32> -> vector<64x32xf32>
    %c0_133 = arith.constant 0 : index
    %c0_134 = arith.constant 0 : index
    %358 = vector.load %arg23[%c0_133, %c0_134] : memref<1x32xf32, #tpu.memory_space<vmem>>, vector<1x32xf32>
    %359 = vector.broadcast %358 : vector<1x32xf32> to vector<64x32xf32>
    %360 = arith.addf %357, %359 : vector<64x32xf32>
    %cst_135 = arith.constant 0.000000e+00 : f32
    %361 = vector.broadcast %cst_135 : f32 to vector<64x32xf32>
    %362 = arith.maximumf %360, %361 : vector<64x32xf32>
    %c0_136 = arith.constant 0 : index
    %c0_137 = arith.constant 0 : index
    %363 = vector.load %arg24[%c0_136, %c0_137] : memref<32x4xf32, #tpu.memory_space<vmem>>, vector<32x4xf32>
    %cst_138 = arith.constant dense<0.000000e+00> : vector<64x4xf32>
    %364 = tpu.matmul %362, %363, %cst_138 {dimension_numbers = #tpu.dot_dimension_numbers<[1], [0], [0], [1], [0, 0, 1, 1], [], []>} : vector<64x32xf32>, vector<32x4xf32>, vector<64x4xf32> -> vector<64x4xf32>
    %c0_139 = arith.constant 0 : index
    %c0_140 = arith.constant 0 : index
    %365 = vector.load %arg25[%c0_139, %c0_140] : memref<1x4xf32, #tpu.memory_space<vmem>>, vector<1x4xf32>
    %366 = vector.broadcast %365 : vector<1x4xf32> to vector<64x4xf32>
    %367 = arith.addf %364, %366 : vector<64x4xf32>
    %368 = math.tanh %367 : vector<64x4xf32>
    %369 = vector.shape_cast %368 : vector<64x4xf32> to vector<8x8x4xf32>
    %c0_141 = arith.constant 0 : index
    %c0_142 = arith.constant 0 : index
    %c0_143 = arith.constant 0 : index
    %370 = vector.load %arg26[%c0_141, %c0_142, %c0_143] : memref<8x8x4xf32, #tpu.memory_space<vmem>>, vector<8x8x4xf32>
    tpu.vector_store %arg26[%c0_141, %c0_142, %c0_143], %369 {strides = array<i32>} : memref<8x8x4xf32, #tpu.memory_space<vmem>>, vector<8x8x4xf32>,
    return
  }
  func.func @transform_0(%arg0: i32, %arg1: i32) -> (i32, i32, i32) {
    %c0_i32 = arith.constant 0 : i32
    %c0_i32_0 = arith.constant 0 : i32
    return %arg1, %arg0, %c0_i32 : i32, i32, i32
  }
  func.func @transform_1(%arg0: i32, %arg1: i32) -> (i32, i32, i32) {
    %c0_i32 = arith.constant 0 : i32
    %c0_i32_0 = arith.constant 0 : i32
    return %arg1, %arg0, %c0_i32 : i32, i32, i32
  }
  func.func @transform_2(%arg0: i32, %arg1: i32) -> (i32, i32, i32) {
    %c0_i32 = arith.constant 0 : i32
    %c0_i32_0 = arith.constant 0 : i32
    return %arg1, %arg0, %c0_i32 : i32, i32, i32
  }
  func.func @transform_3(%arg0: i32, %arg1: i32) -> (i32, i32) {
    %c0_i32 = arith.constant 0 : i32
    %c0_i32_0 = arith.constant 0 : i32
    %c0_i32_1 = arith.constant 0 : i32
    return %c0_i32, %c0_i32_0 : i32, i32
  }
  func.func @transform_4(%arg0: i32, %arg1: i32) -> (i32, i32) {
    %c0_i32 = arith.constant 0 : i32
    %c0_i32_0 = arith.constant 0 : i32
    %c0_i32_1 = arith.constant 0 : i32
    return %c0_i32, %c0_i32_0 : i32, i32
  }
  func.func @transform_5(%arg0: i32, %arg1: i32) -> (i32, i32) {
    %c0_i32 = arith.constant 0 : i32
    %c0_i32_0 = arith.constant 0 : i32
    %c0_i32_1 = arith.constant 0 : i32
    return %c0_i32, %c0_i32_0 : i32, i32
  }
  func.func @transform_6(%arg0: i32, %arg1: i32) -> (i32, i32) {
    %c0_i32 = arith.constant 0 : i32
    %c0_i32_0 = arith.constant 0 : i32
    %c0_i32_1 = arith.constant 0 : i32
    return %c0_i32, %c0_i32_0 : i32, i32
  }
  func.func @transform_7(%arg0: i32, %arg1: i32) -> (i32, i32) {
    %c0_i32 = arith.constant 0 : i32
    %c0_i32_0 = arith.constant 0 : i32
    %c0_i32_1 = arith.constant 0 : i32
    return %c0_i32, %c0_i32_0 : i32, i32
  }
  func.func @transform_8(%arg0: i32, %arg1: i32) -> (i32, i32) {
    %c0_i32 = arith.constant 0 : i32
    %c0_i32_0 = arith.constant 0 : i32
    %c0_i32_1 = arith.constant 0 : i32
    return %c0_i32, %c0_i32_0 : i32, i32
  }
  func.func @transform_9(%arg0: i32, %arg1: i32) -> (i32, i32) {
    %c0_i32 = arith.constant 0 : i32
    %c0_i32_0 = arith.constant 0 : i32
    %c0_i32_1 = arith.constant 0 : i32
    return %c0_i32, %c0_i32_0 : i32, i32
  }
  func.func @transform_10(%arg0: i32, %arg1: i32) -> (i32, i32) {
    %c0_i32 = arith.constant 0 : i32
    %c0_i32_0 = arith.constant 0 : i32
    %c0_i32_1 = arith.constant 0 : i32
    return %c0_i32, %c0_i32_0 : i32, i32
  }
  func.func @transform_11(%arg0: i32, %arg1: i32) -> (i32, i32) {
    %c0_i32 = arith.constant 0 : i32
    %c0_i32_0 = arith.constant 0 : i32
    %c0_i32_1 = arith.constant 0 : i32
    return %c0_i32, %c0_i32_0 : i32, i32
  }
  func.func @transform_12(%arg0: i32, %arg1: i32) -> (i32, i32) {
    %c0_i32 = arith.constant 0 : i32
    %c0_i32_0 = arith.constant 0 : i32
    %c0_i32_1 = arith.constant 0 : i32
    return %c0_i32, %c0_i32_0 : i32, i32
  }
  func.func @transform_13(%arg0: i32, %arg1: i32) -> (i32, i32) {
    %c0_i32 = arith.constant 0 : i32
    %c0_i32_0 = arith.constant 0 : i32
    %c0_i32_1 = arith.constant 0 : i32
    return %c0_i32, %c0_i32_0 : i32, i32
  }
  func.func @transform_14(%arg0: i32, %arg1: i32) -> (i32, i32) {
    %c0_i32 = arith.constant 0 : i32
    %c0_i32_0 = arith.constant 0 : i32
    %c0_i32_1 = arith.constant 0 : i32
    return %c0_i32, %c0_i32_0 : i32, i32
  }
  func.func @transform_15(%arg0: i32, %arg1: i32) -> (i32, i32) {
    %c0_i32 = arith.constant 0 : i32
    %c0_i32_0 = arith.constant 0 : i32
    %c0_i32_1 = arith.constant 0 : i32
    return %c0_i32, %c0_i32_0 : i32, i32
  }
  func.func @transform_16(%arg0: i32, %arg1: i32) -> (i32, i32) {
    %c0_i32 = arith.constant 0 : i32
    %c0_i32_0 = arith.constant 0 : i32
    %c0_i32_1 = arith.constant 0 : i32
    return %c0_i32, %c0_i32_0 : i32, i32
  }
  func.func @transform_17(%arg0: i32, %arg1: i32) -> (i32, i32) {
    %c0_i32 = arith.constant 0 : i32
    %c0_i32_0 = arith.constant 0 : i32
    %c0_i32_1 = arith.constant 0 : i32
    return %c0_i32, %c0_i32_0 : i32, i32
  }
  func.func @transform_18(%arg0: i32, %arg1: i32) -> (i32, i32) {
    %c0_i32 = arith.constant 0 : i32
    %c0_i32_0 = arith.constant 0 : i32
    %c0_i32_1 = arith.constant 0 : i32
    return %c0_i32, %c0_i32_0 : i32, i32
  }
  func.func @transform_19(%arg0: i32, %arg1: i32) -> (i32, i32) {
    %c0_i32 = arith.constant 0 : i32
    %c0_i32_0 = arith.constant 0 : i32
    %c0_i32_1 = arith.constant 0 : i32
    return %c0_i32, %c0_i32_0 : i32, i32
  }
  func.func @transform_20(%arg0: i32, %arg1: i32) -> (i32, i32) {
    %c0_i32 = arith.constant 0 : i32
    %c0_i32_0 = arith.constant 0 : i32
    %c0_i32_1 = arith.constant 0 : i32
    return %c0_i32, %c0_i32_0 : i32, i32
  }
  func.func @transform_21(%arg0: i32, %arg1: i32) -> (i32, i32) {
    %c0_i32 = arith.constant 0 : i32
    %c0_i32_0 = arith.constant 0 : i32
    %c0_i32_1 = arith.constant 0 : i32
    return %c0_i32, %c0_i32_0 : i32, i32
  }
  func.func @transform_22(%arg0: i32, %arg1: i32) -> (i32, i32) {
    %c0_i32 = arith.constant 0 : i32
    %c0_i32_0 = arith.constant 0 : i32
    %c0_i32_1 = arith.constant 0 : i32
    return %c0_i32, %c0_i32_0 : i32, i32
  }
  func.func @transform_23(%arg0: i32, %arg1: i32) -> (i32, i32) {
    %c0_i32 = arith.constant 0 : i32
    %c0_i32_0 = arith.constant 0 : i32
    %c0_i32_1 = arith.constant 0 : i32
    return %c0_i32, %c0_i32_0 : i32, i32
  }
  func.func @transform_24(%arg0: i32, %arg1: i32) -> (i32, i32, i32) {
    %c0_i32 = arith.constant 0 : i32
    %c0_i32_0 = arith.constant 0 : i32
    return %arg1, %arg0, %c0_i32 : i32, i32, i32
  }
}

</mosaic_0001>

<llo_original>
// kernel: actor_rnn_forward.1
$region0: #{actor_rnn_forward.1}
  #allocation0 [shape = 'u32[]', space=smem, size = 0x4, offset = 0x4, fixed_abs, tag = 'smem constant byte address 0x4 - core index']
  #allocation1 [shape = 'u32[144,128]{1,0:T(1,128)}', space=vmem, size = 0x12000, scoped, tag = 'internal scratch']
  #allocation2 [shape = 'f32[8,8,96]{2,1,0:T(8,128)}', space=vmem, size = 0x8000, scoped, tag = 'scratch operand']
  #allocation3 [shape = 'f32[8,8,32]{2,1,0:T(8,128)}', space=vmem, size = 0x8000, scoped, tag = 'scratch operand']
  #allocation4 [shape = 'f32[8,32]{1,0:T(8,128)}', space=vmem, size = 0x1000, scoped, tag = 'scratch operand']
  %s0 = inlined_call_operand.vmem [shape: f32[8,8,4], index: 0, kind: input, shape index: {}]
  %s1 = inlined_call_operand.vmem [shape: f32[8,8,1], index: 1, kind: input, shape index: {}]
  %s2 = inlined_call_operand.vmem [shape: f32[8,8,16], index: 2, kind: input, shape index: {}]
  %s3 = inlined_call_operand.vmem [shape: f32[4,8], index: 3, kind: input, shape index: {}]
  %s4 = inlined_call_operand.vmem [shape: f32[1,8], index: 4, kind: input, shape index: {}]
  %s5 = inlined_call_operand.vmem [shape: f32[1,8], index: 5, kind: input, shape index: {}]
  %s6 = inlined_call_operand.vmem [shape: f32[1,8], index: 6, kind: input, shape index: {}]
  %s7 = inlined_call_operand.vmem [shape: f32[16,16], index: 7, kind: input, shape index: {}]
  %s8 = inlined_call_operand.vmem [shape: f32[1,16], index: 8, kind: input, shape index: {}]
  %s9 = inlined_call_operand.vmem [shape: f32[8,96], index: 9, kind: input, shape index: {}]
  %s10 = inlined_call_operand.vmem [shape: f32[8,96], index: 10, kind: input, shape index: {}]
  %s11 = inlined_call_operand.vmem [shape: f32[16,96], index: 11, kind: input, shape index: {}]
  %s12 = inlined_call_operand.vmem [shape: f32[1,96], index: 12, kind: input, shape index: {}]
  %s13 = inlined_call_operand.vmem [shape: f32[32,96], index: 13, kind: input, shape index: {}]
  %s14 = inlined_call_operand.vmem [shape: f32[1,96], index: 14, kind: input, shape index: {}]
  %s15 = inlined_call_operand.vmem [shape: f32[16,16], index: 15, kind: input, shape index: {}]
  %s16 = inlined_call_operand.vmem [shape: f32[1,16], index: 16, kind: input, shape index: {}]
  %s17 = inlined_call_operand.vmem [shape: f32[32,32], index: 17, kind: input, shape index: {}]
  %s18 = inlined_call_operand.vmem [shape: f32[16,32], index: 18, kind: input, shape index: {}]
  %s19 = inlined_call_operand.vmem [shape: f32[1,32], index: 19, kind: input, shape index: {}]
  %s20 = inlined_call_operand.vmem [shape: f32[32,32], index: 20, kind: input, shape index: {}]
  %s21 = inlined_call_operand.vmem [shape: f32[1,32], index: 21, kind: input, shape index: {}]
  %s22 = inlined_call_operand.vmem [shape: f32[32,4], index: 22, kind: input, shape index: {}]
  %s23 = inlined_call_operand.vmem [shape: f32[1,4], index: 23, kind: input, shape index: {}]
  %s24 = inlined_call_operand.vmem [shape: f32[8,8,4], index: 24, kind: output, shape index: {}]
  %s25 = sld [smem:[#allocation0]]
  $region110: #{actor_rnn_forward.1} parent=0
    _
  %s27 = ssub.s32 1, %s25
  %s28 = scalar_select 0, %s27, %s25
  // Predicated region
  $region2: #{actor_rnn_forward.1} parent=0 // pred_check
    _
  $region3: #{actor_rnn_forward.1} parent=0 // pred_check_branch
    %30 = sbr.rel (0) target = $region5
  $region4: #{actor_rnn_forward.1} parent=0 // pred_region
    _
  $region5: #{actor_rnn_forward.1} parent=0 // pred_fallthru
    _
  // Predicated region
  $region6: #{actor_rnn_forward.1} parent=0 // pred_check
    _
  $region7: #{actor_rnn_forward.1} parent=0 // pred_check_branch
    %32 = sbr.rel (0) target = $region9
  $region8: #{actor_rnn_forward.1} parent=0 // pred_region
    _
  $region9: #{actor_rnn_forward.1} parent=0 // pred_fallthru
    _
  // Predicated region
  $region10: #{actor_rnn_forward.1} parent=0 // pred_check
    _
  $region11: #{actor_rnn_forward.1} parent=0 // pred_check_branch
    %34 = sbr.rel (0) target = $region13
  $region12: #{actor_rnn_forward.1} parent=0 // pred_region
    _
  $region13: #{actor_rnn_forward.1} parent=0 // pred_fallthru
    _
  // Predicated region
  $region14: #{actor_rnn_forward.1} parent=0 // pred_check
    _
  $region15: #{actor_rnn_forward.1} parent=0 // pred_check_branch
    %36 = sbr.rel (0) target = $region17
  $region16: #{actor_rnn_forward.1} parent=0 // pred_region
    _
  $region17: #{actor_rnn_forward.1} parent=0 // pred_fallthru
    _
  // Predicated region
  $region18: #{actor_rnn_forward.1} parent=0 // pred_check
    _
  $region19: #{actor_rnn_forward.1} parent=0 // pred_check_branch
    %38 = sbr.rel (0) target = $region21
  $region20: #{actor_rnn_forward.1} parent=0 // pred_region
    _
  $region21: #{actor_rnn_forward.1} parent=0 // pred_fallthru
    _
  // Predicated region
  $region22: #{actor_rnn_forward.1} parent=0 // pred_check
    _
  $region23: #{actor_rnn_forward.1} parent=0 // pred_check_branch
    %40 = sbr.rel (0) target = $region25
  $region24: #{actor_rnn_forward.1} parent=0 // pred_region
    _
  $region25: #{actor_rnn_forward.1} parent=0 // pred_fallthru
    _
  // Predicated region
  $region26: #{actor_rnn_forward.1} parent=0 // pred_check
    _
  $region27: #{actor_rnn_forward.1} parent=0 // pred_check_branch
    %42 = sbr.rel (0) target = $region29
  $region28: #{actor_rnn_forward.1} parent=0 // pred_region
    _
  $region29: #{actor_rnn_forward.1} parent=0 // pred_fallthru
    _
  // Predicated region
  $region30: #{actor_rnn_forward.1} parent=0 // pred_check
    _
  $region31: #{actor_rnn_forward.1} parent=0 // pred_check_branch
    %44 = sbr.rel (0) target = $region33
  $region32: #{actor_rnn_forward.1} parent=0 // pred_region
    _
  $region33: #{actor_rnn_forward.1} parent=0 // pred_fallthru
    _
  // Predicated region
  $region34: #{actor_rnn_forward.1} parent=0 // pred_check
    _
  $region35: #{actor_rnn_forward.1} parent=0 // pred_check_branch
    %46 = sbr.rel (0) target = $region37
  $region36: #{actor_rnn_forward.1} parent=0 // pred_region
    _
  $region37: #{actor_rnn_forward.1} parent=0 // pred_fallthru
    _
  // Predicated region
  $region38: #{actor_rnn_forward.1} parent=0 // pred_check
    _
  $region39: #{actor_rnn_forward.1} parent=0 // pred_check_branch
    %48 = sbr.rel (0) target = $region41
  $region40: #{actor_rnn_forward.1} parent=0 // pred_region
    _
  $region41: #{actor_rnn_forward.1} parent=0 // pred_fallthru
    _
  // Predicated region
  $region42: #{actor_rnn_forward.1} parent=0 // pred_check
    _
  $region43: #{actor_rnn_forward.1} parent=0 // pred_check_branch
    %50 = sbr.rel (0) target = $region45
  $region44: #{actor_rnn_forward.1} parent=0 // pred_region
    _
  $region45: #{actor_rnn_forward.1} parent=0 // pred_fallthru
    _
  // Predicated region
  $region46: #{actor_rnn_forward.1} parent=0 // pred_check
    _
  $region47: #{actor_rnn_forward.1} parent=0 // pred_check_branch
    %52 = sbr.rel (0) target = $region49
  $region48: #{actor_rnn_forward.1} parent=0 // pred_region
    _
  $region49: #{actor_rnn_forward.1} parent=0 // pred_fallthru
    _
  // Predicated region
  $region50: #{actor_rnn_forward.1} parent=0 // pred_check
    _
  $region51: #{actor_rnn_forward.1} parent=0 // pred_check_branch
    %54 = sbr.rel (0) target = $region53
  $region52: #{actor_rnn_forward.1} parent=0 // pred_region
    _
  $region53: #{actor_rnn_forward.1} parent=0 // pred_fallthru
    _
  // Predicated region
  $region54: #{actor_rnn_forward.1} parent=0 // pred_check
    _
  $region55: #{actor_rnn_forward.1} parent=0 // pred_check_branch
    %56 = sbr.rel (0) target = $region57
  $region56: #{actor_rnn_forward.1} parent=0 // pred_region
    _
  $region57: #{actor_rnn_forward.1} parent=0 // pred_fallthru
    _
  // Predicated region
  $region58: #{actor_rnn_forward.1} parent=0 // pred_check
    _
  $region59: #{actor_rnn_forward.1} parent=0 // pred_check_branch
    %58 = sbr.rel (0) target = $region61
  $region60: #{actor_rnn_forward.1} parent=0 // pred_region
    _
  $region61: #{actor_rnn_forward.1} parent=0 // pred_fallthru
    _
  // Predicated region
  $region62: #{actor_rnn_forward.1} parent=0 // pred_check
    _
  $region63: #{actor_rnn_forward.1} parent=0 // pred_check_branch
    %60 = sbr.rel (0) target = $region65
  $region64: #{actor_rnn_forward.1} parent=0 // pred_region
    _
  $region65: #{actor_rnn_forward.1} parent=0 // pred_fallthru
    _
  // Predicated region
  $region66: #{actor_rnn_forward.1} parent=0 // pred_check
    _
  $region67: #{actor_rnn_forward.1} parent=0 // pred_check_branch
    %62 = sbr.rel (0) target = $region69
  $region68: #{actor_rnn_forward.1} parent=0 // pred_region
    _
  $region69: #{actor_rnn_forward.1} parent=0 // pred_fallthru
    _
  // Predicated region
  $region70: #{actor_rnn_forward.1} parent=0 // pred_check
    _
  $region71: #{actor_rnn_forward.1} parent=0 // pred_check_branch
    %64 = sbr.rel (0) target = $region73
  $region72: #{actor_rnn_forward.1} parent=0 // pred_region
    _
  $region73: #{actor_rnn_forward.1} parent=0 // pred_fallthru
    _
  // Predicated region
  $region74: #{actor_rnn_forward.1} parent=0 // pred_check
    _
  $region75: #{actor_rnn_forward.1} parent=0 // pred_check_branch
    %66 = sbr.rel (0) target = $region77
  $region76: #{actor_rnn_forward.1} parent=0 // pred_region
    _
  $region77: #{actor_rnn_forward.1} parent=0 // pred_fallthru
    _
  // Predicated region
  $region78: #{actor_rnn_forward.1} parent=0 // pred_check
    _
  $region79: #{actor_rnn_forward.1} parent=0 // pred_check_branch
    %68 = sbr.rel (0) target = $region81
  $region80: #{actor_rnn_forward.1} parent=0 // pred_region
    _
  $region81: #{actor_rnn_forward.1} parent=0 // pred_fallthru
    _
  // Predicated region
  $region82: #{actor_rnn_forward.1} parent=0 // pred_check
    _
  $region83: #{actor_rnn_forward.1} parent=0 // pred_check_branch
    %70 = sbr.rel (0) target = $region85
  $region84: #{actor_rnn_forward.1} parent=0 // pred_region
    _
  $region85: #{actor_rnn_forward.1} parent=0 // pred_fallthru
    _
  // Predicated region
  $region86: #{actor_rnn_forward.1} parent=0 // pred_check
    _
  $region87: #{actor_rnn_forward.1} parent=0 // pred_check_branch
    %72 = sbr.rel (0) target = $region89
  $region88: #{actor_rnn_forward.1} parent=0 // pred_region
    _
  $region89: #{actor_rnn_forward.1} parent=0 // pred_fallthru
    _
  // Predicated region
  $region90: #{actor_rnn_forward.1} parent=0 // pred_check
    _
  $region91: #{actor_rnn_forward.1} parent=0 // pred_check_branch
    %74 = sbr.rel (0) target = $region93
  $region92: #{actor_rnn_forward.1} parent=0 // pred_region
    _
  $region93: #{actor_rnn_forward.1} parent=0 // pred_fallthru
    _
  // Predicated region
  $region94: #{actor_rnn_forward.1} parent=0 // pred_check
    _
  $region95: #{actor_rnn_forward.1} parent=0 // pred_check_branch
    %76 = sbr.rel (0) target = $region97
  $region96: #{actor_rnn_forward.1} parent=0 // pred_region
    _
  $region97: #{actor_rnn_forward.1} parent=0 // pred_fallthru
    _
  %v77 = vld [vmem:[%s0] sm:$0xff]
  %v78 = vld [vmem:[%s0 + $0x8] sm:$0xff]
  %v79 = vld [vmem:[%s0 + $0x10] sm:$0xff]
  %v80 = vld [vmem:[%s0 + $0x18] sm:$0xff]
  %v81 = vld [vmem:[%s0 + $0x20] sm:$0xff]
  %v82 = vld [vmem:[%s0 + $0x28] sm:$0xff]
  %v83 = vld [vmem:[%s0 + $0x30] sm:$0xff]
  %v84 = vld [vmem:[%s0 + $0x38] sm:$0xff]
  %v85 = vld [vmem:[%s1] sm:$0xff]
  %v86 = vld [vmem:[%s1 + $0x8] sm:$0xff]
  %v87 = vld [vmem:[%s1 + $0x10] sm:$0xff]
  %v88 = vld [vmem:[%s1 + $0x18] sm:$0xff]
  %v89 = vld [vmem:[%s1 + $0x20] sm:$0xff]
  %v90 = vld [vmem:[%s1 + $0x28] sm:$0xff]
  %v91 = vld [vmem:[%s1 + $0x30] sm:$0xff]
  %v92 = vld [vmem:[%s1 + $0x38] sm:$0xff]
  %v93 = vld [vmem:[%s2] sm:$0xff]
  %v94 = vld [vmem:[%s2 + $0x8] sm:$0xff]
  %v95 = vld [vmem:[%s2 + $0x10] sm:$0xff]
  %v96 = vld [vmem:[%s2 + $0x18] sm:$0xff]
  %v97 = vld [vmem:[%s2 + $0x20] sm:$0xff]
  %v98 = vld [vmem:[%s2 + $0x28] sm:$0xff]
  %v99 = vld [vmem:[%s2 + $0x30] sm:$0xff]
  %v100 = vld [vmem:[%s2 + $0x38] sm:$0xff]
  %v101 = vld [vmem:[%s3] sm:$0xf]
  %v102 = vld [vmem:[%s4] sm:$0x1]
  %v104 = vlaneseq
  %v105 = vshrl.u32 %v104, 7
  %v106 = vsub.s32 0, %v105
  %v107 = vrot.slane %v102, %v106
  %vm109 = vcmask 31744
  %v111 = vsel %vm109, %v77, 0
  %v114 = vsel %vm109, %v78, 0
  %v117 = vsel %vm109, %v79, 0
  %v120 = vsel %vm109, %v80, 0
  %v123 = vsel %vm109, %v81, 0
  %v126 = vsel %vm109, %v82, 0
  %v129 = vsel %vm109, %v83, 0
  %v132 = vsel %vm109, %v84, 0
  %vm134 = vcmask 1043456
  %v136 = vsel %vm134, %v101, 0
  %138 = vmatprep.subr.mxu0 0.0
  %139 = vmatpush1.msra.mxu0 0.0
  %140 = vmatprep.subr.mxu0 0.0
  %141 = vmatpush1.msra.mxu0 0.0
  %142 = vmatprep.subr.mxu0 0.0
  %143 = vmatpush1.msra.mxu0 0.0
  %144 = vmatprep.subr.mxu0 0.0
  %145 = vmatpush1.msra.mxu0 0.0
  %146 = vmatprep.subr.mxu0 0.0
  %147 = vmatpush1.msra.mxu0 0.0
  %148 = vmatprep.subr.mxu0 0.0
  %149 = vmatpush1.msra.mxu0 0.0
  %150 = vmatprep.subr.mxu0 0.0
  %151 = vmatpush1.msra.mxu0 0.0
  %152 = vmatprep.subr.mxu0 0.0
  %153 = vmatpush1.msra.mxu0 0.0
  %154 = vmatprep.subr.mxu0 0.0
  %155 = vmatpush1.msra.mxu0 0.0
  %156 = vmatprep.subr.mxu0 0.0
  %157 = vmatpush1.msra.mxu0 0.0
  %158 = vmatprep.subr.mxu0 0.0
  %159 = vmatpush1.msra.mxu0 0.0
  %160 = vmatprep.subr.mxu0 0.0
  %161 = vmatpush1.msra.mxu0 0.0
  %162 = vmatprep.subr.mxu0 0.0
  %163 = vmatpush1.msra.mxu0 0.0
  %164 = vmatprep.subr.mxu0 0.0
  %165 = vmatpush1.msra.mxu0 0.0
  %166 = vmatprep.subr.mxu0 0.0
  %167 = vmatpush1.msra.mxu0 0.0
  %168 = vmatprep.subr.mxu0 0.0
  %169 = vmatpush1.msra.mxu0 %v136
  %170 = vmatprep.subr.mxu0 0.0
  %171 = vmatpush2.msra.mxu0 0.0
  %172 = vmatprep.subr.mxu0 0.0
  %173 = vmatpush2.msra.mxu0 0.0
  %174 = vmatprep.subr.mxu0 0.0
  %175 = vmatpush2.msra.mxu0 0.0
  %176 = vmatprep.subr.mxu0 0.0
  %177 = vmatpush2.msra.mxu0 0.0
  %178 = vmatprep.subr.mxu0 0.0
  %179 = vmatpush2.msra.mxu0 0.0
  %180 = vmatprep.subr.mxu0 0.0
  %181 = vmatpush2.msra.mxu0 0.0
  %182 = vmatprep.subr.mxu0 0.0
  %183 = vmatpush2.msra.mxu0 0.0
  %184 = vmatprep.subr.mxu0 0.0
  %185 = vmatpush2.msra.mxu0 0.0
  %186 = vmatprep.subr.mxu0 0.0
  %187 = vmatpush2.msra.mxu0 0.0
  %188 = vmatprep.subr.mxu0 0.0
  %189 = vmatpush2.msra.mxu0 0.0
  %190 = vmatprep.subr.mxu0 0.0
  %191 = vmatpush2.msra.mxu0 0.0
  %192 = vmatprep.subr.mxu0 0.0
  %193 = vmatpush2.msra.mxu0 0.0
  %194 = vmatprep.subr.mxu0 0.0
  %195 = vmatpush2.msra.mxu0 0.0
  %196 = vmatprep.subr.mxu0 0.0
  %197 = vmatpush2.msra.mxu0 0.0
  %198 = vmatprep.subr.mxu0 0.0
  %199 = vmatpush2.msra.mxu0 0.0
  %200 = vmatprep.subr.mxu0 0.0
  %201 = vmatpush2.msra.mxu0 0.0
  %202 = vmatprep.mubr.f32.mxu0 0.0
  %203 = vmatmul.mubr.f32.gmra.mxu0 %v111
  %v204 = vpop.f32.mrf.mxu0
  %v205 = vadd.f32 %v107, %v204
  %v206 = vpop.f32.mrf.mxu0
  %207 = vmatprep.mubr.f32.mxu0 0.0
  %208 = vmatmul.mubr.f32.gmra.mxu0 %v114
  %v209 = vpop.f32.mrf.mxu0
  %v210 = vadd.f32 %v107, %v209
  %v211 = vpop.f32.mrf.mxu0
  %212 = vmatprep.mubr.f32.mxu0 0.0
  %213 = vmatmul.mubr.f32.gmra.mxu0 %v117
  %v214 = vpop.f32.mrf.mxu0
  %v215 = vadd.f32 %v107, %v214
  %v216 = vpop.f32.mrf.mxu0
  %217 = vmatprep.mubr.f32.mxu0 0.0
  %218 = vmatmul.mubr.f32.gmra.mxu0 %v120
  %v219 = vpop.f32.mrf.mxu0
  %v220 = vadd.f32 %v107, %v219
  %v221 = vpop.f32.mrf.mxu0
  %222 = vmatprep.mubr.f32.mxu0 0.0
  %223 = vmatmul.mubr.f32.gmra.mxu0 %v123
  %v224 = vpop.f32.mrf.mxu0
  %v225 = vadd.f32 %v107, %v224
  %v226 = vpop.f32.mrf.mxu0
  %227 = vmatprep.mubr.f32.mxu0 0.0
  %228 = vmatmul.mubr.f32.gmra.mxu0 %v126
  %v229 = vpop.f32.mrf.mxu0
  %v230 = vadd.f32 %v107, %v229
  %v231 = vpop.f32.mrf.mxu0
  %232 = vmatprep.mubr.f32.mxu0 0.0
  %233 = vmatmul.mubr.f32.gmra.mxu0 %v129
  %v234 = vpop.f32.mrf.mxu0
  %v235 = vadd.f32 %v107, %v234
  %v236 = vpop.f32.mrf.mxu0
  %237 = vmatprep.mubr.f32.mxu0 0.0
  %238 = vmatmul.mubr.f32.gmra.mxu0 %v132
  %v239 = vpop.f32.mrf.mxu0
  %v240 = vadd.f32 %v107, %v239
  %v241 = vpop.f32.mrf.mxu0
  %242 = vdwg.mxu0
  %v243 = vmax.f32 %v205, 0.0
  %v244 = vmax.f32 %v210, 0.0
  %v245 = vmax.f32 %v215, 0.0
  %v246 = vmax.f32 %v220, 0.0
  %v247 = vmax.f32 %v225, 0.0
  %v248 = vmax.f32 %v230, 0.0
  %v249 = vmax.f32 %v235, 0.0
  %v250 = vmax.f32 %v240, 0.0
  %v251 = vld [vmem:[%s5] sm:$0x1]
  %253 = vset.pattern.permute.xlu0 0
  %254 = vperm.xlu0 %253, %v85
  %v255 = vpop.permute.xlu0 %254
  %258 = vset.pattern.permute.xlu0 0
  %259 = vperm.xlu0 %258, %v86
  %v260 = vpop.permute.xlu0 %259
  %263 = vset.pattern.permute.xlu0 0
  %264 = vperm.xlu0 %263, %v87
  %v265 = vpop.permute.xlu0 %264
  %268 = vset.pattern.permute.xlu0 0
  %269 = vperm.xlu0 %268, %v88
  %v270 = vpop.permute.xlu0 %269
  %273 = vset.pattern.permute.xlu0 0
  %274 = vperm.xlu0 %273, %v89
  %v275 = vpop.permute.xlu0 %274
  %278 = vset.pattern.permute.xlu0 0
  %279 = vperm.xlu0 %278, %v90
  %v280 = vpop.permute.xlu0 %279
  %283 = vset.pattern.permute.xlu0 0
  %284 = vperm.xlu0 %283, %v91
  %v285 = vpop.permute.xlu0 %284
  %288 = vset.pattern.permute.xlu0 0
  %289 = vperm.xlu0 %288, %v92
  %v290 = vpop.permute.xlu0 %289
  %v293 = vlaneseq
  %v294 = vshrl.u32 %v293, 7
  %v295 = vsub.s32 0, %v294
  %v296 = vrot.slane %v251, %v295
  %v298 = vmul.f32 %v255, %v296
  %v299 = vmul.f32 %v260, %v296
  %v300 = vmul.f32 %v265, %v296
  %v301 = vmul.f32 %v270, %v296
  %v302 = vmul.f32 %v275, %v296
  %v303 = vmul.f32 %v280, %v296
  %v304 = vmul.f32 %v285, %v296
  %v305 = vmul.f32 %v290, %v296
  %v306 = vld [vmem:[%s6] sm:$0x1]
  %v308 = vlaneseq
  %v309 = vshrl.u32 %v308, 7
  %v310 = vsub.s32 0, %v309
  %v311 = vrot.slane %v306, %v310
  %v313 = vadd.f32 %v298, %v311
  %v314 = vadd.f32 %v299, %v311
  %v315 = vadd.f32 %v300, %v311
  %v316 = vadd.f32 %v301, %v311
  %v317 = vadd.f32 %v302, %v311
  %v318 = vadd.f32 %v303, %v311
  %v319 = vadd.f32 %v304, %v311
  %v320 = vadd.f32 %v305, %v311
  %v321 = vmax.f32 %v313, 0.0
  %v322 = vmax.f32 %v314, 0.0
  %v323 = vmax.f32 %v315, 0.0
  %v324 = vmax.f32 %v316, 0.0
  %v325 = vmax.f32 %v317, 0.0
  %v326 = vmax.f32 %v318, 0.0
  %v327 = vmax.f32 %v319, 0.0
  %v328 = vmax.f32 %v320, 0.0
  %v329 = vld [vmem:[%s7] sm:$0xff]
  %v330 = vld [vmem:[%s7 + $0x8] sm:$0xff]
  %v331 = vld [vmem:[%s8] sm:$0x1]
  %v333 = vlaneseq
  %v334 = vshrl.u32 %v333, 7
  %v335 = vsub.s32 0, %v334
  %v336 = vrot.slane %v331, %v335
  %vm338 = vcmask 130048
  %v340 = vsel %vm338, %v93, 0
  %v343 = vsel %vm338, %v94, 0
  %v346 = vsel %vm338, %v95, 0
  %v349 = vsel %vm338, %v96, 0
  %v352 = vsel %vm338, %v97, 0
  %v355 = vsel %vm338, %v98, 0
  %v358 = vsel %vm338, %v99, 0
  %v361 = vsel %vm338, %v100, 0
  %363 = vmatprep.subr.mxu0 0.0
  %364 = vmatpush1.msra.mxu0 0.0
  %365 = vmatprep.subr.mxu0 0.0
  %366 = vmatpush1.msra.mxu0 0.0
  %367 = vmatprep.subr.mxu0 0.0
  %368 = vmatpush1.msra.mxu0 0.0
  %369 = vmatprep.subr.mxu0 0.0
  %370 = vmatpush1.msra.mxu0 0.0
  %371 = vmatprep.subr.mxu0 0.0
  %372 = vmatpush1.msra.mxu0 0.0
  %373 = vmatprep.subr.mxu0 0.0
  %374 = vmatpush1.msra.mxu0 0.0
  %375 = vmatprep.subr.mxu0 0.0
  %376 = vmatpush1.msra.mxu0 0.0
  %377 = vmatprep.subr.mxu0 0.0
  %378 = vmatpush1.msra.mxu0 0.0
  %379 = vmatprep.subr.mxu0 0.0
  %380 = vmatpush1.msra.mxu0 0.0
  %381 = vmatprep.subr.mxu0 0.0
  %382 = vmatpush1.msra.mxu0 0.0
  %383 = vmatprep.subr.mxu0 0.0
  %384 = vmatpush1.msra.mxu0 0.0
  %385 = vmatprep.subr.mxu0 0.0
  %386 = vmatpush1.msra.mxu0 0.0
  %387 = vmatprep.subr.mxu0 0.0
  %388 = vmatpush1.msra.mxu0 0.0
  %389 = vmatprep.subr.mxu0 0.0
  %390 = vmatpush1.msra.mxu0 0.0
  %391 = vmatprep.subr.mxu0 0.0
  %392 = vmatpush1.msra.mxu0 %v330
  %393 = vmatprep.subr.mxu0 0.0
  %394 = vmatpush1.msra.mxu0 %v329
  %395 = vmatprep.subr.mxu0 0.0
  %396 = vmatpush2.msra.mxu0 0.0
  %397 = vmatprep.subr.mxu0 0.0
  %398 = vmatpush2.msra.mxu0 0.0
  %399 = vmatprep.subr.mxu0 0.0
  %400 = vmatpush2.msra.mxu0 0.0
  %401 = vmatprep.subr.mxu0 0.0
  %402 = vmatpush2.msra.mxu0 0.0
  %403 = vmatprep.subr.mxu0 0.0
  %404 = vmatpush2.msra.mxu0 0.0
  %405 = vmatprep.subr.mxu0 0.0
  %406 = vmatpush2.msra.mxu0 0.0
  %407 = vmatprep.subr.mxu0 0.0
  %408 = vmatpush2.msra.mxu0 0.0
  %409 = vmatprep.subr.mxu0 0.0
  %410 = vmatpush2.msra.mxu0 0.0
  %411 = vmatprep.subr.mxu0 0.0
  %412 = vmatpush2.msra.mxu0 0.0
  %413 = vmatprep.subr.mxu0 0.0
  %414 = vmatpush2.msra.mxu0 0.0
  %415 = vmatprep.subr.mxu0 0.0
  %416 = vmatpush2.msra.mxu0 0.0
  %417 = vmatprep.subr.mxu0 0.0
  %418 = vmatpush2.msra.mxu0 0.0
  %419 = vmatprep.subr.mxu0 0.0
  %420 = vmatpush2.msra.mxu0 0.0
  %421 = vmatprep.subr.mxu0 0.0
  %422 = vmatpush2.msra.mxu0 0.0
  %423 = vmatprep.subr.mxu0 0.0
  %424 = vmatpush2.msra.mxu0 0.0
  %425 = vmatprep.subr.mxu0 0.0
  %426 = vmatpush2.msra.mxu0 0.0
  %427 = vmatprep.mubr.f32.mxu0 0.0
  %428 = vmatmul.mubr.f32.gmra.mxu0 %v340
  %v429 = vpop.f32.mrf.mxu0
  %v430 = vadd.f32 %v336, %v429
  %v431 = vpop.f32.mrf.mxu0
  %432 = vmatprep.mubr.f32.mxu0 0.0
  %433 = vmatmul.mubr.f32.gmra.mxu0 %v343
  %v434 = vpop.f32.mrf.mxu0
  %v435 = vadd.f32 %v336, %v434
  %v436 = vpop.f32.mrf.mxu0
  %437 = vmatprep.mubr.f32.mxu0 0.0
  %438 = vmatmul.mubr.f32.gmra.mxu0 %v346
  %v439 = vpop.f32.mrf.mxu0
  %v440 = vadd.f32 %v336, %v439
  %v441 = vpop.f32.mrf.mxu0
  %442 = vmatprep.mubr.f32.mxu0 0.0
  %443 = vmatmul.mubr.f32.gmra.mxu0 %v349
  %v444 = vpop.f32.mrf.mxu0
  %v445 = vadd.f32 %v336, %v444
  %v446 = vpop.f32.mrf.mxu0
  %447 = vmatprep.mubr.f32.mxu0 0.0
  %448 = vmatmul.mubr.f32.gmra.mxu0 %v352
  %v449 = vpop.f32.mrf.mxu0
  %v450 = vadd.f32 %v336, %v449
  %v451 = vpop.f32.mrf.mxu0
  %452 = vmatprep.mubr.f32.mxu0 0.0
  %453 = vmatmul.mubr.f32.gmra.mxu0 %v355
  %v454 = vpop.f32.mrf.mxu0
  %v455 = vadd.f32 %v336, %v454
  %v456 = vpop.f32.mrf.mxu0
  %457 = vmatprep.mubr.f32.mxu0 0.0
  %458 = vmatmul.mubr.f32.gmra.mxu0 %v358
  %v459 = vpop.f32.mrf.mxu0
  %v460 = vadd.f32 %v336, %v459
  %v461 = vpop.f32.mrf.mxu0
  %462 = vmatprep.mubr.f32.mxu0 0.0
  %463 = vmatmul.mubr.f32.gmra.mxu0 %v361
  %v464 = vpop.f32.mrf.mxu0
  %v465 = vadd.f32 %v336, %v464
  %v466 = vpop.f32.mrf.mxu0
  %467 = vdwg.mxu0
  %v468 = vmax.f32 %v430, 0.0
  %v469 = vmax.f32 %v435, 0.0
  %v470 = vmax.f32 %v440, 0.0
  %v471 = vmax.f32 %v445, 0.0
  %v472 = vmax.f32 %v450, 0.0
  %v473 = vmax.f32 %v455, 0.0
  %v474 = vmax.f32 %v460, 0.0
  %v475 = vmax.f32 %v465, 0.0
  %v476 = vld [vmem:[%s9] sm:$0xff]
  %v477 = vld [vmem:[%s10] sm:$0xff]
  %vm478 = vcmask 64512
  %v480 = vsel %vm478, %v321, 0
  %v483 = vsel %vm478, %v322, 0
  %v486 = vsel %vm478, %v323, 0
  %v489 = vsel %vm478, %v324, 0
  %v492 = vsel %vm478, %v325, 0
  %v495 = vsel %vm478, %v326, 0
  %v498 = vsel %vm478, %v327, 0
  %v501 = vsel %vm478, %v328, 0
  %503 = vmatprep.subr.mxu0 0.0
  %504 = vmatpush1.msra.mxu0 0.0
  %505 = vmatprep.subr.mxu0 0.0
  %506 = vmatpush1.msra.mxu0 0.0
  %507 = vmatprep.subr.mxu0 0.0
  %508 = vmatpush1.msra.mxu0 0.0
  %509 = vmatprep.subr.mxu0 0.0
  %510 = vmatpush1.msra.mxu0 0.0
  %511 = vmatprep.subr.mxu0 0.0
  %512 = vmatpush1.msra.mxu0 0.0
  %513 = vmatprep.subr.mxu0 0.0
  %514 = vmatpush1.msra.mxu0 0.0
  %515 = vmatprep.subr.mxu0 0.0
  %516 = vmatpush1.msra.mxu0 0.0
  %517 = vmatprep.subr.mxu0 0.0
  %518 = vmatpush1.msra.mxu0 0.0
  %519 = vmatprep.subr.mxu0 0.0
  %520 = vmatpush1.msra.mxu0 0.0
  %521 = vmatprep.subr.mxu0 0.0
  %522 = vmatpush1.msra.mxu0 0.0
  %523 = vmatprep.subr.mxu0 0.0
  %524 = vmatpush1.msra.mxu0 0.0
  %525 = vmatprep.subr.mxu0 0.0
  %526 = vmatpush1.msra.mxu0 0.0
  %527 = vmatprep.subr.mxu0 0.0
  %528 = vmatpush1.msra.mxu0 0.0
  %529 = vmatprep.subr.mxu0 0.0
  %530 = vmatpush1.msra.mxu0 0.0
  %531 = vmatprep.subr.mxu0 0.0
  %532 = vmatpush1.msra.mxu0 0.0
  %533 = vmatprep.subr.mxu0 0.0
  %534 = vmatpush1.msra.mxu0 %v477
  %535 = vmatprep.subr.mxu0 0.0
  %536 = vmatpush2.msra.mxu0 0.0
  %537 = vmatprep.subr.mxu0 0.0
  %538 = vmatpush2.msra.mxu0 0.0
  %539 = vmatprep.subr.mxu0 0.0
  %540 = vmatpush2.msra.mxu0 0.0
  %541 = vmatprep.subr.mxu0 0.0
  %542 = vmatpush2.msra.mxu0 0.0
  %543 = vmatprep.subr.mxu0 0.0
  %544 = vmatpush2.msra.mxu0 0.0
  %545 = vmatprep.subr.mxu0 0.0
  %546 = vmatpush2.msra.mxu0 0.0
  %547 = vmatprep.subr.mxu0 0.0
  %548 = vmatpush2.msra.mxu0 0.0
  %549 = vmatprep.subr.mxu0 0.0
  %550 = vmatpush2.msra.mxu0 0.0
  %551 = vmatprep.subr.mxu0 0.0
  %552 = vmatpush2.msra.mxu0 0.0
  %553 = vmatprep.subr.mxu0 0.0
  %554 = vmatpush2.msra.mxu0 0.0
  %555 = vmatprep.subr.mxu0 0.0
  %556 = vmatpush2.msra.mxu0 0.0
  %557 = vmatprep.subr.mxu0 0.0
  %558 = vmatpush2.msra.mxu0 0.0
  %559 = vmatprep.subr.mxu0 0.0
  %560 = vmatpush2.msra.mxu0 0.0
  %561 = vmatprep.subr.mxu0 0.0
  %562 = vmatpush2.msra.mxu0 0.0
  %563 = vmatprep.subr.mxu0 0.0
  %564 = vmatpush2.msra.mxu0 0.0
  %565 = vmatprep.subr.mxu0 0.0
  %566 = vmatpush2.msra.mxu0 0.0
  %567 = vmatprep.mubr.f32.mxu0 0.0
  %568 = vmatmul.mubr.f32.gmra.mxu0 %v480
  %v569 = vpop.f32.mrf.mxu0
  %v570 = vadd.f32 0.0, %v569
  %v571 = vpop.f32.mrf.mxu0
  %572 = vmatprep.mubr.f32.mxu0 0.0
  %573 = vmatmul.mubr.f32.gmra.mxu0 %v483
  %v574 = vpop.f32.mrf.mxu0
  %v575 = vadd.f32 0.0, %v574
  %v576 = vpop.f32.mrf.mxu0
  %577 = vmatprep.mubr.f32.mxu0 0.0
  %578 = vmatmul.mubr.f32.gmra.mxu0 %v486
  %v579 = vpop.f32.mrf.mxu0
  %v580 = vadd.f32 0.0, %v579
  %v581 = vpop.f32.mrf.mxu0
  %582 = vmatprep.mubr.f32.mxu0 0.0
  %583 = vmatmul.mubr.f32.gmra.mxu0 %v489
  %v584 = vpop.f32.mrf.mxu0
  %v585 = vadd.f32 0.0, %v584
  %v586 = vpop.f32.mrf.mxu0
  %587 = vmatprep.mubr.f32.mxu0 0.0
  %588 = vmatmul.mubr.f32.gmra.mxu0 %v492
  %v589 = vpop.f32.mrf.mxu0
  %v590 = vadd.f32 0.0, %v589
  %v591 = vpop.f32.mrf.mxu0
  %592 = vmatprep.mubr.f32.mxu0 0.0
  %593 = vmatmul.mubr.f32.gmra.mxu0 %v495
  %v594 = vpop.f32.mrf.mxu0
  %v595 = vadd.f32 0.0, %v594
  %v596 = vpop.f32.mrf.mxu0
  %597 = vmatprep.mubr.f32.mxu0 0.0
  %598 = vmatmul.mubr.f32.gmra.mxu0 %v498
  %v599 = vpop.f32.mrf.mxu0
  %v600 = vadd.f32 0.0, %v599
  %v601 = vpop.f32.mrf.mxu0
  %602 = vmatprep.mubr.f32.mxu0 0.0
  %603 = vmatmul.mubr.f32.gmra.mxu0 %v501
  %v604 = vpop.f32.mrf.mxu0
  %v605 = vadd.f32 0.0, %v604
  %v606 = vpop.f32.mrf.mxu0
  %607 = vdwg.mxu0
  %v609 = vsel %vm478, %v243, 0
  %v612 = vsel %vm478, %v244, 0
  %v615 = vsel %vm478, %v245, 0
  %v618 = vsel %vm478, %v246, 0
  %v621 = vsel %vm478, %v247, 0
  %v624 = vsel %vm478, %v248, 0
  %v627 = vsel %vm478, %v249, 0
  %v630 = vsel %vm478, %v250, 0
  %632 = vmatprep.subr.mxu0 0.0
  %633 = vmatpush1.msra.mxu0 0.0
  %634 = vmatprep.subr.mxu0 0.0
  %635 = vmatpush1.msra.mxu0 0.0
  %636 = vmatprep.subr.mxu0 0.0
  %637 = vmatpush1.msra.mxu0 0.0
  %638 = vmatprep.subr.mxu0 0.0
  %639 = vmatpush1.msra.mxu0 0.0
  %640 = vmatprep.subr.mxu0 0.0
  %641 = vmatpush1.msra.mxu0 0.0
  %642 = vmatprep.subr.mxu0 0.0
  %643 = vmatpush1.msra.mxu0 0.0
  %644 = vmatprep.subr.mxu0 0.0
  %645 = vmatpush1.msra.mxu0 0.0
  %646 = vmatprep.subr.mxu0 0.0
  %647 = vmatpush1.msra.mxu0 0.0
  %648 = vmatprep.subr.mxu0 0.0
  %649 = vmatpush1.msra.mxu0 0.0
  %650 = vmatprep.subr.mxu0 0.0
  %651 = vmatpush1.msra.mxu0 0.0
  %652 = vmatprep.subr.mxu0 0.0
  %653 = vmatpush1.msra.mxu0 0.0
  %654 = vmatprep.subr.mxu0 0.0
  %655 = vmatpush1.msra.mxu0 0.0
  %656 = vmatprep.subr.mxu0 0.0
  %657 = vmatpush1.msra.mxu0 0.0
  %658 = vmatprep.subr.mxu0 0.0
  %659 = vmatpush1.msra.mxu0 0.0
  %660 = vmatprep.subr.mxu0 0.0
  %661 = vmatpush1.msra.mxu0 0.0
  %662 = vmatprep.subr.mxu0 0.0
  %663 = vmatpush1.msra.mxu0 %v476
  %664 = vmatprep.subr.mxu0 0.0
  %665 = vmatpush2.msra.mxu0 0.0
  %666 = vmatprep.subr.mxu0 0.0
  %667 = vmatpush2.msra.mxu0 0.0
  %668 = vmatprep.subr.mxu0 0.0
  %669 = vmatpush2.msra.mxu0 0.0
  %670 = vmatprep.subr.mxu0 0.0
  %671 = vmatpush2.msra.mxu0 0.0
  %672 = vmatprep.subr.mxu0 0.0
  %673 = vmatpush2.msra.mxu0 0.0
  %674 = vmatprep.subr.mxu0 0.0
  %675 = vmatpush2.msra.mxu0 0.0
  %676 = vmatprep.subr.mxu0 0.0
  %677 = vmatpush2.msra.mxu0 0.0
  %678 = vmatprep.subr.mxu0 0.0
  %679 = vmatpush2.msra.mxu0 0.0
  %680 = vmatprep.subr.mxu0 0.0
  %681 = vmatpush2.msra.mxu0 0.0
  %682 = vmatprep.subr.mxu0 0.0
  %683 = vmatpush2.msra.mxu0 0.0
  %684 = vmatprep.subr.mxu0 0.0
  %685 = vmatpush2.msra.mxu0 0.0
  %686 = vmatprep.subr.mxu0 0.0
  %687 = vmatpush2.msra.mxu0 0.0
  %688 = vmatprep.subr.mxu0 0.0
  %689 = vmatpush2.msra.mxu0 0.0
  %690 = vmatprep.subr.mxu0 0.0
  %691 = vmatpush2.msra.mxu0 0.0
  %692 = vmatprep.subr.mxu0 0.0
  %693 = vmatpush2.msra.mxu0 0.0
  %694 = vmatprep.subr.mxu0 0.0
  %695 = vmatpush2.msra.mxu0 0.0
  %696 = vmatprep.mubr.f32.mxu0 0.0
  %697 = vmatmul.mubr.f32.gmra.mxu0 %v609
  %v698 = vpop.f32.mrf.mxu0
  %v699 = vadd.f32 %v570, %v698
  %v700 = vpop.f32.mrf.mxu0
  %701 = vmatprep.mubr.f32.mxu0 0.0
  %702 = vmatmul.mubr.f32.gmra.mxu0 %v612
  %v703 = vpop.f32.mrf.mxu0
  %v704 = vadd.f32 %v575, %v703
  %v705 = vpop.f32.mrf.mxu0
  %706 = vmatprep.mubr.f32.mxu0 0.0
  %707 = vmatmul.mubr.f32.gmra.mxu0 %v615
  %v708 = vpop.f32.mrf.mxu0
  %v709 = vadd.f32 %v580, %v708
  %v710 = vpop.f32.mrf.mxu0
  %711 = vmatprep.mubr.f32.mxu0 0.0
  %712 = vmatmul.mubr.f32.gmra.mxu0 %v618
  %v713 = vpop.f32.mrf.mxu0
  %v714 = vadd.f32 %v585, %v713
  %v715 = vpop.f32.mrf.mxu0
  %716 = vmatprep.mubr.f32.mxu0 0.0
  %717 = vmatmul.mubr.f32.gmra.mxu0 %v621
  %v718 = vpop.f32.mrf.mxu0
  %v719 = vadd.f32 %v590, %v718
  %v720 = vpop.f32.mrf.mxu0
  %721 = vmatprep.mubr.f32.mxu0 0.0
  %722 = vmatmul.mubr.f32.gmra.mxu0 %v624
  %v723 = vpop.f32.mrf.mxu0
  %v724 = vadd.f32 %v595, %v723
  %v725 = vpop.f32.mrf.mxu0
  %726 = vmatprep.mubr.f32.mxu0 0.0
  %727 = vmatmul.mubr.f32.gmra.mxu0 %v627
  %v728 = vpop.f32.mrf.mxu0
  %v729 = vadd.f32 %v600, %v728
  %v730 = vpop.f32.mrf.mxu0
  %731 = vmatprep.mubr.f32.mxu0 0.0
  %732 = vmatmul.mubr.f32.gmra.mxu0 %v630
  %v733 = vpop.f32.mrf.mxu0
  %v734 = vadd.f32 %v605, %v733
  %v735 = vpop.f32.mrf.mxu0
  %736 = vdwg.mxu0
  %v737 = vld [vmem:[%s11] sm:$0xff]
  %v738 = vld [vmem:[%s11 + $0x8] sm:$0xff]
  %v740 = vsel %vm338, %v468, 0
  %v743 = vsel %vm338, %v469, 0
  %v746 = vsel %vm338, %v470, 0
  %v749 = vsel %vm338, %v471, 0
  %v752 = vsel %vm338, %v472, 0
  %v755 = vsel %vm338, %v473, 0
  %v758 = vsel %vm338, %v474, 0
  %v761 = vsel %vm338, %v475, 0
  %763 = vmatprep.subr.mxu0 0.0
  %764 = vmatpush1.msra.mxu0 0.0
  %765 = vmatprep.subr.mxu0 0.0
  %766 = vmatpush1.msra.mxu0 0.0
  %767 = vmatprep.subr.mxu0 0.0
  %768 = vmatpush1.msra.mxu0 0.0
  %769 = vmatprep.subr.mxu0 0.0
  %770 = vmatpush1.msra.mxu0 0.0
  %771 = vmatprep.subr.mxu0 0.0
  %772 = vmatpush1.msra.mxu0 0.0
  %773 = vmatprep.subr.mxu0 0.0
  %774 = vmatpush1.msra.mxu0 0.0
  %775 = vmatprep.subr.mxu0 0.0
  %776 = vmatpush1.msra.mxu0 0.0
  %777 = vmatprep.subr.mxu0 0.0
  %778 = vmatpush1.msra.mxu0 0.0
  %779 = vmatprep.subr.mxu0 0.0
  %780 = vmatpush1.msra.mxu0 0.0
  %781 = vmatprep.subr.mxu0 0.0
  %782 = vmatpush1.msra.mxu0 0.0
  %783 = vmatprep.subr.mxu0 0.0
  %784 = vmatpush1.msra.mxu0 0.0
  %785 = vmatprep.subr.mxu0 0.0
  %786 = vmatpush1.msra.mxu0 0.0
  %787 = vmatprep.subr.mxu0 0.0
  %788 = vmatpush1.msra.mxu0 0.0
  %789 = vmatprep.subr.mxu0 0.0
  %790 = vmatpush1.msra.mxu0 0.0
  %791 = vmatprep.subr.mxu0 0.0
  %792 = vmatpush1.msra.mxu0 %v738
  %793 = vmatprep.subr.mxu0 0.0
  %794 = vmatpush1.msra.mxu0 %v737
  %795 = vmatprep.subr.mxu0 0.0
  %796 = vmatpush2.msra.mxu0 0.0
  %797 = vmatprep.subr.mxu0 0.0
  %798 = vmatpush2.msra.mxu0 0.0
  %799 = vmatprep.subr.mxu0 0.0
  %800 = vmatpush2.msra.mxu0 0.0
  %801 = vmatprep.subr.mxu0 0.0
  %802 = vmatpush2.msra.mxu0 0.0
  %803 = vmatprep.subr.mxu0 0.0
  %804 = vmatpush2.msra.mxu0 0.0
  %805 = vmatprep.subr.mxu0 0.0
  %806 = vmatpush2.msra.mxu0 0.0
  %807 = vmatprep.subr.mxu0 0.0
  %808 = vmatpush2.msra.mxu0 0.0
  %809 = vmatprep.subr.mxu0 0.0
  %810 = vmatpush2.msra.mxu0 0.0
  %811 = vmatprep.subr.mxu0 0.0
  %812 = vmatpush2.msra.mxu0 0.0
  %813 = vmatprep.subr.mxu0 0.0
  %814 = vmatpush2.msra.mxu0 0.0
  %815 = vmatprep.subr.mxu0 0.0
  %816 = vmatpush2.msra.mxu0 0.0
  %817 = vmatprep.subr.mxu0 0.0
  %818 = vmatpush2.msra.mxu0 0.0
  %819 = vmatprep.subr.mxu0 0.0
  %820 = vmatpush2.msra.mxu0 0.0
  %821 = vmatprep.subr.mxu0 0.0
  %822 = vmatpush2.msra.mxu0 0.0
  %823 = vmatprep.subr.mxu0 0.0
  %824 = vmatpush2.msra.mxu0 0.0
  %825 = vmatprep.subr.mxu0 0.0
  %826 = vmatpush2.msra.mxu0 0.0
  %827 = vmatprep.mubr.f32.mxu0 0.0
  %828 = vmatmul.mubr.f32.gmra.mxu0 %v740
  %v829 = vpop.f32.mrf.mxu0
  %v830 = vadd.f32 0.0, %v829
  %v831 = vpop.f32.mrf.mxu0
  %832 = vmatprep.mubr.f32.mxu0 0.0
  %833 = vmatmul.mubr.f32.gmra.mxu0 %v743
  %v834 = vpop.f32.mrf.mxu0
  %v835 = vadd.f32 0.0, %v834
  %v836 = vpop.f32.mrf.mxu0
  %837 = vmatprep.mubr.f32.mxu0 0.0
  %838 = vmatmul.mubr.f32.gmra.mxu0 %v746
  %v839 = vpop.f32.mrf.mxu0
  %v840 = vadd.f32 0.0, %v839
  %v841 = vpop.f32.mrf.mxu0
  %842 = vmatprep.mubr.f32.mxu0 0.0
  %843 = vmatmul.mubr.f32.gmra.mxu0 %v749
  %v844 = vpop.f32.mrf.mxu0
  %v845 = vadd.f32 0.0, %v844
  %v846 = vpop.f32.mrf.mxu0
  %847 = vmatprep.mubr.f32.mxu0 0.0
  %848 = vmatmul.mubr.f32.gmra.mxu0 %v752
  %v849 = vpop.f32.mrf.mxu0
  %v850 = vadd.f32 0.0, %v849
  %v851 = vpop.f32.mrf.mxu0
  %852 = vmatprep.mubr.f32.mxu0 0.0
  %853 = vmatmul.mubr.f32.gmra.mxu0 %v755
  %v854 = vpop.f32.mrf.mxu0
  %v855 = vadd.f32 0.0, %v854
  %v856 = vpop.f32.mrf.mxu0
  %857 = vmatprep.mubr.f32.mxu0 0.0
  %858 = vmatmul.mubr.f32.gmra.mxu0 %v758
  %v859 = vpop.f32.mrf.mxu0
  %v860 = vadd.f32 0.0, %v859
  %v861 = vpop.f32.mrf.mxu0
  %862 = vmatprep.mubr.f32.mxu0 0.0
  %863 = vmatmul.mubr.f32.gmra.mxu0 %v761
  %v864 = vpop.f32.mrf.mxu0
  %v865 = vadd.f32 0.0, %v864
  %v866 = vpop.f32.mrf.mxu0
  %867 = vdwg.mxu0
  %v868 = vadd.f32 %v699, %v830
  %v869 = vadd.f32 %v704, %v835
  %v870 = vadd.f32 %v709, %v840
  %v871 = vadd.f32 %v714, %v845
  %v872 = vadd.f32 %v719, %v850
  %v873 = vadd.f32 %v724, %v855
  %v874 = vadd.f32 %v729, %v860
  %v875 = vadd.f32 %v734, %v865
  %v876 = vld [vmem:[%s12] sm:$0x1]
  %v878 = vlaneseq
  %v879 = vshrl.u32 %v878, 7
  %v880 = vsub.s32 0, %v879
  %v881 = vrot.slane %v876, %v880
  %v883 = vadd.f32 %v868, %v881
  %v884 = vadd.f32 %v869, %v881
  %v885 = vadd.f32 %v870, %v881
  %v886 = vadd.f32 %v871, %v881
  %v887 = vadd.f32 %v872, %v881
  %v888 = vadd.f32 %v873, %v881
  %v889 = vadd.f32 %v874, %v881
  %v890 = vadd.f32 %v875, %v881
  %vm891 = vcmask 785408
  %892 = vst.msk [vmem:[#allocation2] sm:$0xff] %vm891, %v883
  %893 = vst.msk [vmem:[#allocation2 + $0x8] sm:$0xff] %vm891, %v884
  %894 = vst.msk [vmem:[#allocation2 + $0x10] sm:$0xff] %vm891, %v885
  %895 = vst.msk [vmem:[#allocation2 + $0x18] sm:$0xff] %vm891, %v886
  %896 = vst.msk [vmem:[#allocation2 + $0x20] sm:$0xff] %vm891, %v887
  %897 = vst.msk [vmem:[#allocation2 + $0x28] sm:$0xff] %vm891, %v888
  %898 = vst.msk [vmem:[#allocation2 + $0x30] sm:$0xff] %vm891, %v889
  %899 = vst.msk [vmem:[#allocation2 + $0x38] sm:$0xff] %vm891, %v890
  %p900 = scmp.eq.s32.totalorder 0, 0
  // Predicated region
  $region98: #{actor_rnn_forward.1} parent=0 // pred_check
    %p901 = pneg %p900
  $region99: #{actor_rnn_forward.1} parent=0 // pred_check_branch
    %903 = sbr.rel (%p901) target = $region101
  $region100: #{actor_rnn_forward.1} parent=0 // pred_region
    %vm904 = vcmask 261120
    %905 = vst.msk [vmem:[#allocation4] sm:$0xff] %vm904, 0.0
  $region101: #{actor_rnn_forward.1} parent=0 // pred_fallthru
    _
  %v906 = vld [vmem:[%s13] sm:$0xff]
  %v907 = vld [vmem:[%s13 + $0x8] sm:$0xff]
  %v908 = vld [vmem:[%s13 + $0x10] sm:$0xff]
  %v909 = vld [vmem:[%s13 + $0x18] sm:$0xff]
  %v910 = vld [vmem:[%s14] sm:$0x1]
  %v911 = vld [vmem:[#allocation4] sm:$0xff]
  %v913 = vlaneseq
  %v914 = vshrl.u32 %v913, 7
  %v915 = vsub.s32 0, %v914
  %v916 = vrot.slane %v910, %v915
  %vm918 = vcmask 261120
  %v920 = vsel %vm918, %v911, 0
  %922 = vmatprep.subr.mxu0 0.0
  %923 = vmatpush1.msra.mxu0 0.0
  %924 = vmatprep.subr.mxu0 0.0
  %925 = vmatpush1.msra.mxu0 0.0
  %926 = vmatprep.subr.mxu0 0.0
  %927 = vmatpush1.msra.mxu0 0.0
  %928 = vmatprep.subr.mxu0 0.0
  %929 = vmatpush1.msra.mxu0 0.0
  %930 = vmatprep.subr.mxu0 0.0
  %931 = vmatpush1.msra.mxu0 0.0
  %932 = vmatprep.subr.mxu0 0.0
  %933 = vmatpush1.msra.mxu0 0.0
  %934 = vmatprep.subr.mxu0 0.0
  %935 = vmatpush1.msra.mxu0 0.0
  %936 = vmatprep.subr.mxu0 0.0
  %937 = vmatpush1.msra.mxu0 0.0
  %938 = vmatprep.subr.mxu0 0.0
  %939 = vmatpush1.msra.mxu0 0.0
  %940 = vmatprep.subr.mxu0 0.0
  %941 = vmatpush1.msra.mxu0 0.0
  %942 = vmatprep.subr.mxu0 0.0
  %943 = vmatpush1.msra.mxu0 0.0
  %944 = vmatprep.subr.mxu0 0.0
  %945 = vmatpush1.msra.mxu0 0.0
  %946 = vmatprep.subr.mxu0 0.0
  %947 = vmatpush1.msra.mxu0 %v909
  %948 = vmatprep.subr.mxu0 0.0
  %949 = vmatpush1.msra.mxu0 %v908
  %950 = vmatprep.subr.mxu0 0.0
  %951 = vmatpush1.msra.mxu0 %v907
  %952 = vmatprep.subr.mxu0 0.0
  %953 = vmatpush1.msra.mxu0 %v906
  %954 = vmatprep.subr.mxu0 0.0
  %955 = vmatpush2.msra.mxu0 0.0
  %956 = vmatprep.subr.mxu0 0.0
  %957 = vmatpush2.msra.mxu0 0.0
  %958 = vmatprep.subr.mxu0 0.0
  %959 = vmatpush2.msra.mxu0 0.0
  %960 = vmatprep.subr.mxu0 0.0
  %961 = vmatpush2.msra.mxu0 0.0
  %962 = vmatprep.subr.mxu0 0.0
  %963 = vmatpush2.msra.mxu0 0.0
  %964 = vmatprep.subr.mxu0 0.0
  %965 = vmatpush2.msra.mxu0 0.0
  %966 = vmatprep.subr.mxu0 0.0
  %967 = vmatpush2.msra.mxu0 0.0
  %968 = vmatprep.subr.mxu0 0.0
  %969 = vmatpush2.msra.mxu0 0.0
  %970 = vmatprep.subr.mxu0 0.0
  %971 = vmatpush2.msra.mxu0 0.0
  %972 = vmatprep.subr.mxu0 0.0
  %973 = vmatpush2.msra.mxu0 0.0
  %974 = vmatprep.subr.mxu0 0.0
  %975 = vmatpush2.msra.mxu0 0.0
  %976 = vmatprep.subr.mxu0 0.0
  %977 = vmatpush2.msra.mxu0 0.0
  %978 = vmatprep.subr.mxu0 0.0
  %979 = vmatpush2.msra.mxu0 0.0
  %980 = vmatprep.subr.mxu0 0.0
  %981 = vmatpush2.msra.mxu0 0.0
  %982 = vmatprep.subr.mxu0 0.0
  %983 = vmatpush2.msra.mxu0 0.0
  %984 = vmatprep.subr.mxu0 0.0
  %985 = vmatpush2.msra.mxu0 0.0
  %986 = vmatprep.mubr.f32.mxu0 0.0
  %987 = vmatmul.mubr.f32.gmra.mxu0 %v920
  %v988 = vpop.f32.mrf.mxu0
  %v989 = vadd.f32 %v916, %v988
  %v990 = vpop.f32.mrf.mxu0
  %991 = vdwg.mxu0
  %v992 = vld [vmem:[#allocation2] sm:$0xff]
  %v993 = vadd.f32 %v992, %v989
  %v994 = vxor.u32 %v993, 2147483648
  %v995 = vmul.f32 %v994, 1.442695
  %v996 = vpow.pop %v995
  %v997 = vadd.f32 %v996, 1.0
  %v998 = vrcp.pop %v997
  %v999 = vmul.f32 1.0, %v998
  %1001 = vrot.lane.b32.xlu0 %v989, 64
  %v1002 = vpop.permute.xlu0 %1001
  %v1004 = vmul.f32 %v999, %v1002
  %1006 = vrot.lane.b32.xlu0 %v1004, 64
  %v1007 = vpop.permute.xlu0 %1006
  %v1009 = vadd.f32 %v992, %v1007
  %v1010 = vtanh.pop %v1009
  %v1011 = vsub.f32 1.0, %v999
  %1013 = vrot.lane.b32.xlu0 %v1010, 96
  %v1014 = vpop.permute.xlu0 %1013
  %v1016 = vmul.f32 %v1011, %v1014
  %1017 = vrot.lane.b32.xlu0 %v911, 32
  %v1018 = vpop.permute.xlu0 %1017
  %v1020 = vmul.f32 %v999, %v1018
  %v1021 = vadd.f32 %v1016, %v1020
  %1023 = vrot.lane.b32.xlu0 %v1021, 96
  %v1024 = vpop.permute.xlu0 %1023
  %1026 = vst.msk [vmem:[#allocation3] sm:$0xff] %vm918, %v1024
  %v1027 = vsel %vm918, %v1024, 0
  %1029 = vmatprep.subr.mxu0 0.0
  %1030 = vmatpush1.msra.mxu0 0.0
  %1031 = vmatprep.subr.mxu0 0.0
  %1032 = vmatpush1.msra.mxu0 0.0
  %1033 = vmatprep.subr.mxu0 0.0
  %1034 = vmatpush1.msra.mxu0 0.0
  %1035 = vmatprep.subr.mxu0 0.0
  %1036 = vmatpush1.msra.mxu0 0.0
  %1037 = vmatprep.subr.mxu0 0.0
  %1038 = vmatpush1.msra.mxu0 0.0
  %1039 = vmatprep.subr.mxu0 0.0
  %1040 = vmatpush1.msra.mxu0 0.0
  %1041 = vmatprep.subr.mxu0 0.0
  %1042 = vmatpush1.msra.mxu0 0.0
  %1043 = vmatprep.subr.mxu0 0.0
  %1044 = vmatpush1.msra.mxu0 0.0
  %1045 = vmatprep.subr.mxu0 0.0
  %1046 = vmatpush1.msra.mxu0 0.0
  %1047 = vmatprep.subr.mxu0 0.0
  %1048 = vmatpush1.msra.mxu0 0.0
  %1049 = vmatprep.subr.mxu0 0.0
  %1050 = vmatpush1.msra.mxu0 0.0
  %1051 = vmatprep.subr.mxu0 0.0
  %1052 = vmatpush1.msra.mxu0 0.0
  %1053 = vmatprep.subr.mxu0 0.0
  %1054 = vmatpush1.msra.mxu0 %v909
  %1055 = vmatprep.subr.mxu0 0.0
  %1056 = vmatpush1.msra.mxu0 %v908
  %1057 = vmatprep.subr.mxu0 0.0
  %1058 = vmatpush1.msra.mxu0 %v907
  %1059 = vmatprep.subr.mxu0 0.0
  %1060 = vmatpush1.msra.mxu0 %v906
  %1061 = vmatprep.subr.mxu0 0.0
  %1062 = vmatpush2.msra.mxu0 0.0
  %1063 = vmatprep.subr.mxu0 0.0
  %1064 = vmatpush2.msra.mxu0 0.0
  %1065 = vmatprep.subr.mxu0 0.0
  %1066 = vmatpush2.msra.mxu0 0.0
  %1067 = vmatprep.subr.mxu0 0.0
  %1068 = vmatpush2.msra.mxu0 0.0
  %1069 = vmatprep.subr.mxu0 0.0
  %1070 = vmatpush2.msra.mxu0 0.0
  %1071 = vmatprep.subr.mxu0 0.0
  %1072 = vmatpush2.msra.mxu0 0.0
  %1073 = vmatprep.subr.mxu0 0.0
  %1074 = vmatpush2.msra.mxu0 0.0
  %1075 = vmatprep.subr.mxu0 0.0
  %1076 = vmatpush2.msra.mxu0 0.0
  %1077 = vmatprep.subr.mxu0 0.0
  %1078 = vmatpush2.msra.mxu0 0.0
  %1079 = vmatprep.subr.mxu0 0.0
  %1080 = vmatpush2.msra.mxu0 0.0
  %1081 = vmatprep.subr.mxu0 0.0
  %1082 = vmatpush2.msra.mxu0 0.0
  %1083 = vmatprep.subr.mxu0 0.0
  %1084 = vmatpush2.msra.mxu0 0.0
  %1085 = vmatprep.subr.mxu0 0.0
  %1086 = vmatpush2.msra.mxu0 0.0
  %1087 = vmatprep.subr.mxu0 0.0
  %1088 = vmatpush2.msra.mxu0 0.0
  %1089 = vmatprep.subr.mxu0 0.0
  %1090 = vmatpush2.msra.mxu0 0.0
  %1091 = vmatprep.subr.mxu0 0.0
  %1092 = vmatpush2.msra.mxu0 0.0
  %1093 = vmatprep.mubr.f32.mxu0 0.0
  %1094 = vmatmul.mubr.f32.gmra.mxu0 %v1027
  %v1095 = vpop.f32.mrf.mxu0
  %v1096 = vadd.f32 %v916, %v1095
  %v1097 = vpop.f32.mrf.mxu0
  %1098 = vdwg.mxu0
  %s1099 = scalar_lea.vmem [#allocation2], 8
  %v1100 = vld [vmem:[%s1099] sm:$0xff]
  %v1101 = vadd.f32 %v1100, %v1096
  %v1102 = vxor.u32 %v1101, 2147483648
  %v1103 = vmul.f32 %v1102, 1.442695
  %v1104 = vpow.pop %v1103
  %v1105 = vadd.f32 %v1104, 1.0
  %v1106 = vrcp.pop %v1105
  %v1107 = vmul.f32 1.0, %v1106
  %1109 = vrot.lane.b32.xlu0 %v1096, 64
  %v1110 = vpop.permute.xlu0 %1109
  %v1112 = vmul.f32 %v1107, %v1110
  %1114 = vrot.lane.b32.xlu0 %v1112, 64
  %v1115 = vpop.permute.xlu0 %1114
  %v1117 = vadd.f32 %v1100, %v1115
  %v1118 = vtanh.pop %v1117
  %v1119 = vsub.f32 1.0, %v1107
  %1121 = vrot.lane.b32.xlu0 %v1118, 96
  %v1122 = vpop.permute.xlu0 %1121
  %v1124 = vmul.f32 %v1119, %v1122
  %v1125 = vmul.f32 %v1107, %v1021
  %v1126 = vadd.f32 %v1124, %v1125
  %1128 = vrot.lane.b32.xlu0 %v1126, 96
  %v1129 = vpop.permute.xlu0 %1128
  %s1131 = scalar_lea.vmem [#allocation3], 8
  %1132 = vst.msk [vmem:[%s1131] sm:$0xff] %vm918, %v1129
  %v1133 = vsel %vm918, %v1129, 0
  %1135 = vmatprep.subr.mxu0 0.0
  %1136 = vmatpush1.msra.mxu0 0.0
  %1137 = vmatprep.subr.mxu0 0.0
  %1138 = vmatpush1.msra.mxu0 0.0
  %1139 = vmatprep.subr.mxu0 0.0
  %1140 = vmatpush1.msra.mxu0 0.0
  %1141 = vmatprep.subr.mxu0 0.0
  %1142 = vmatpush1.msra.mxu0 0.0
  %1143 = vmatprep.subr.mxu0 0.0
  %1144 = vmatpush1.msra.mxu0 0.0
  %1145 = vmatprep.subr.mxu0 0.0
  %1146 = vmatpush1.msra.mxu0 0.0
  %1147 = vmatprep.subr.mxu0 0.0
  %1148 = vmatpush1.msra.mxu0 0.0
  %1149 = vmatprep.subr.mxu0 0.0
  %1150 = vmatpush1.msra.mxu0 0.0
  %1151 = vmatprep.subr.mxu0 0.0
  %1152 = vmatpush1.msra.mxu0 0.0
  %1153 = vmatprep.subr.mxu0 0.0
  %1154 = vmatpush1.msra.mxu0 0.0
  %1155 = vmatprep.subr.mxu0 0.0
  %1156 = vmatpush1.msra.mxu0 0.0
  %1157 = vmatprep.subr.mxu0 0.0
  %1158 = vmatpush1.msra.mxu0 0.0
  %1159 = vmatprep.subr.mxu0 0.0
  %1160 = vmatpush1.msra.mxu0 %v909
  %1161 = vmatprep.subr.mxu0 0.0
  %1162 = vmatpush1.msra.mxu0 %v908
  %1163 = vmatprep.subr.mxu0 0.0
  %1164 = vmatpush1.msra.mxu0 %v907
  %1165 = vmatprep.subr.mxu0 0.0
  %1166 = vmatpush1.msra.mxu0 %v906
  %1167 = vmatprep.subr.mxu0 0.0
  %1168 = vmatpush2.msra.mxu0 0.0
  %1169 = vmatprep.subr.mxu0 0.0
  %1170 = vmatpush2.msra.mxu0 0.0
  %1171 = vmatprep.subr.mxu0 0.0
  %1172 = vmatpush2.msra.mxu0 0.0
  %1173 = vmatprep.subr.mxu0 0.0
  %1174 = vmatpush2.msra.mxu0 0.0
  %1175 = vmatprep.subr.mxu0 0.0
  %1176 = vmatpush2.msra.mxu0 0.0
  %1177 = vmatprep.subr.mxu0 0.0
  %1178 = vmatpush2.msra.mxu0 0.0
  %1179 = vmatprep.subr.mxu0 0.0
  %1180 = vmatpush2.msra.mxu0 0.0
  %1181 = vmatprep.subr.mxu0 0.0
  %1182 = vmatpush2.msra.mxu0 0.0
  %1183 = vmatprep.subr.mxu0 0.0
  %1184 = vmatpush2.msra.mxu0 0.0
  %1185 = vmatprep.subr.mxu0 0.0
  %1186 = vmatpush2.msra.mxu0 0.0
  %1187 = vmatprep.subr.mxu0 0.0
  %1188 = vmatpush2.msra.mxu0 0.0
  %1189 = vmatprep.subr.mxu0 0.0
  %1190 = vmatpush2.msra.mxu0 0.0
  %1191 = vmatprep.subr.mxu0 0.0
  %1192 = vmatpush2.msra.mxu0 0.0
  %1193 = vmatprep.subr.mxu0 0.0
  %1194 = vmatpush2.msra.mxu0 0.0
  %1195 = vmatprep.subr.mxu0 0.0
  %1196 = vmatpush2.msra.mxu0 0.0
  %1197 = vmatprep.subr.mxu0 0.0
  %1198 = vmatpush2.msra.mxu0 0.0
  %1199 = vmatprep.mubr.f32.mxu0 0.0
  %1200 = vmatmul.mubr.f32.gmra.mxu0 %v1133
  %v1201 = vpop.f32.mrf.mxu0
  %v1202 = vadd.f32 %v916, %v1201
  %v1203 = vpop.f32.mrf.mxu0
  %1204 = vdwg.mxu0
  %s1205 = scalar_lea.vmem [#allocation2], 16
  %v1206 = vld [vmem:[%s1205] sm:$0xff]
  %v1207 = vadd.f32 %v1206, %v1202
  %v1208 = vxor.u32 %v1207, 2147483648
  %v1209 = vmul.f32 %v1208, 1.442695
  %v1210 = vpow.pop %v1209
  %v1211 = vadd.f32 %v1210, 1.0
  %v1212 = vrcp.pop %v1211
  %v1213 = vmul.f32 1.0, %v1212
  %1215 = vrot.lane.b32.xlu0 %v1202, 64
  %v1216 = vpop.permute.xlu0 %1215
  %v1218 = vmul.f32 %v1213, %v1216
  %1220 = vrot.lane.b32.xlu0 %v1218, 64
  %v1221 = vpop.permute.xlu0 %1220
  %v1223 = vadd.f32 %v1206, %v1221
  %v1224 = vtanh.pop %v1223
  %v1225 = vsub.f32 1.0, %v1213
  %1227 = vrot.lane.b32.xlu0 %v1224, 96
  %v1228 = vpop.permute.xlu0 %1227
  %v1230 = vmul.f32 %v1225, %v1228
  %v1231 = vmul.f32 %v1213, %v1126
  %v1232 = vadd.f32 %v1230, %v1231
  %1234 = vrot.lane.b32.xlu0 %v1232, 96
  %v1235 = vpop.permute.xlu0 %1234
  %s1237 = scalar_lea.vmem [#allocation3], 16
  %1238 = vst.msk [vmem:[%s1237] sm:$0xff] %vm918, %v1235
  %v1239 = vsel %vm918, %v1235, 0
  %1241 = vmatprep.subr.mxu0 0.0
  %1242 = vmatpush1.msra.mxu0 0.0
  %1243 = vmatprep.subr.mxu0 0.0
  %1244 = vmatpush1.msra.mxu0 0.0
  %1245 = vmatprep.subr.mxu0 0.0
  %1246 = vmatpush1.msra.mxu0 0.0
  %1247 = vmatprep.subr.mxu0 0.0
  %1248 = vmatpush1.msra.mxu0 0.0
  %1249 = vmatprep.subr.mxu0 0.0
  %1250 = vmatpush1.msra.mxu0 0.0
  %1251 = vmatprep.subr.mxu0 0.0
  %1252 = vmatpush1.msra.mxu0 0.0
  %1253 = vmatprep.subr.mxu0 0.0
  %1254 = vmatpush1.msra.mxu0 0.0
  %1255 = vmatprep.subr.mxu0 0.0
  %1256 = vmatpush1.msra.mxu0 0.0
  %1257 = vmatprep.subr.mxu0 0.0
  %1258 = vmatpush1.msra.mxu0 0.0
  %1259 = vmatprep.subr.mxu0 0.0
  %1260 = vmatpush1.msra.mxu0 0.0
  %1261 = vmatprep.subr.mxu0 0.0
  %1262 = vmatpush1.msra.mxu0 0.0
  %1263 = vmatprep.subr.mxu0 0.0
  %1264 = vmatpush1.msra.mxu0 0.0
  %1265 = vmatprep.subr.mxu0 0.0
  %1266 = vmatpush1.msra.mxu0 %v909
  %1267 = vmatprep.subr.mxu0 0.0
  %1268 = vmatpush1.msra.mxu0 %v908
  %1269 = vmatprep.subr.mxu0 0.0
  %1270 = vmatpush1.msra.mxu0 %v907
  %1271 = vmatprep.subr.mxu0 0.0
  %1272 = vmatpush1.msra.mxu0 %v906
  %1273 = vmatprep.subr.mxu0 0.0
  %1274 = vmatpush2.msra.mxu0 0.0
  %1275 = vmatprep.subr.mxu0 0.0
  %1276 = vmatpush2.msra.mxu0 0.0
  %1277 = vmatprep.subr.mxu0 0.0
  %1278 = vmatpush2.msra.mxu0 0.0
  %1279 = vmatprep.subr.mxu0 0.0
  %1280 = vmatpush2.msra.mxu0 0.0
  %1281 = vmatprep.subr.mxu0 0.0
  %1282 = vmatpush2.msra.mxu0 0.0
  %1283 = vmatprep.subr.mxu0 0.0
  %1284 = vmatpush2.msra.mxu0 0.0
  %1285 = vmatprep.subr.mxu0 0.0
  %1286 = vmatpush2.msra.mxu0 0.0
  %1287 = vmatprep.subr.mxu0 0.0
  %1288 = vmatpush2.msra.mxu0 0.0
  %1289 = vmatprep.subr.mxu0 0.0
  %1290 = vmatpush2.msra.mxu0 0.0
  %1291 = vmatprep.subr.mxu0 0.0
  %1292 = vmatpush2.msra.mxu0 0.0
  %1293 = vmatprep.subr.mxu0 0.0
  %1294 = vmatpush2.msra.mxu0 0.0
  %1295 = vmatprep.subr.mxu0 0.0
  %1296 = vmatpush2.msra.mxu0 0.0
  %1297 = vmatprep.subr.mxu0 0.0
  %1298 = vmatpush2.msra.mxu0 0.0
  %1299 = vmatprep.subr.mxu0 0.0
  %1300 = vmatpush2.msra.mxu0 0.0
  %1301 = vmatprep.subr.mxu0 0.0
  %1302 = vmatpush2.msra.mxu0 0.0
  %1303 = vmatprep.subr.mxu0 0.0
  %1304 = vmatpush2.msra.mxu0 0.0
  %1305 = vmatprep.mubr.f32.mxu0 0.0
  %1306 = vmatmul.mubr.f32.gmra.mxu0 %v1239
  %v1307 = vpop.f32.mrf.mxu0
  %v1308 = vadd.f32 %v916, %v1307
  %v1309 = vpop.f32.mrf.mxu0
  %1310 = vdwg.mxu0
  %s1311 = scalar_lea.vmem [#allocation2], 24
  %v1312 = vld [vmem:[%s1311] sm:$0xff]
  %v1313 = vadd.f32 %v1312, %v1308
  %v1314 = vxor.u32 %v1313, 2147483648
  %v1315 = vmul.f32 %v1314, 1.442695
  %v1316 = vpow.pop %v1315
  %v1317 = vadd.f32 %v1316, 1.0
  %v1318 = vrcp.pop %v1317
  %v1319 = vmul.f32 1.0, %v1318
  %1321 = vrot.lane.b32.xlu0 %v1308, 64
  %v1322 = vpop.permute.xlu0 %1321
  %v1324 = vmul.f32 %v1319, %v1322
  %1326 = vrot.lane.b32.xlu0 %v1324, 64
  %v1327 = vpop.permute.xlu0 %1326
  %v1329 = vadd.f32 %v1312, %v1327
  %v1330 = vtanh.pop %v1329
  %v1331 = vsub.f32 1.0, %v1319
  %1333 = vrot.lane.b32.xlu0 %v1330, 96
  %v1334 = vpop.permute.xlu0 %1333
  %v1336 = vmul.f32 %v1331, %v1334
  %v1337 = vmul.f32 %v1319, %v1232
  %v1338 = vadd.f32 %v1336, %v1337
  %1340 = vrot.lane.b32.xlu0 %v1338, 96
  %v1341 = vpop.permute.xlu0 %1340
  %s1343 = scalar_lea.vmem [#allocation3], 24
  %1344 = vst.msk [vmem:[%s1343] sm:$0xff] %vm918, %v1341
  %v1345 = vsel %vm918, %v1341, 0
  %1347 = vmatprep.subr.mxu0 0.0
  %1348 = vmatpush1.msra.mxu0 0.0
  %1349 = vmatprep.subr.mxu0 0.0
  %1350 = vmatpush1.msra.mxu0 0.0
  %1351 = vmatprep.subr.mxu0 0.0
  %1352 = vmatpush1.msra.mxu0 0.0
  %1353 = vmatprep.subr.mxu0 0.0
  %1354 = vmatpush1.msra.mxu0 0.0
  %1355 = vmatprep.subr.mxu0 0.0
  %1356 = vmatpush1.msra.mxu0 0.0
  %1357 = vmatprep.subr.mxu0 0.0
  %1358 = vmatpush1.msra.mxu0 0.0
  %1359 = vmatprep.subr.mxu0 0.0
  %1360 = vmatpush1.msra.mxu0 0.0
  %1361 = vmatprep.subr.mxu0 0.0
  %1362 = vmatpush1.msra.mxu0 0.0
  %1363 = vmatprep.subr.mxu0 0.0
  %1364 = vmatpush1.msra.mxu0 0.0
  %1365 = vmatprep.subr.mxu0 0.0
  %1366 = vmatpush1.msra.mxu0 0.0
  %1367 = vmatprep.subr.mxu0 0.0
  %1368 = vmatpush1.msra.mxu0 0.0
  %1369 = vmatprep.subr.mxu0 0.0
  %1370 = vmatpush1.msra.mxu0 0.0
  %1371 = vmatprep.subr.mxu0 0.0
  %1372 = vmatpush1.msra.mxu0 %v909
  %1373 = vmatprep.subr.mxu0 0.0
  %1374 = vmatpush1.msra.mxu0 %v908
  %1375 = vmatprep.subr.mxu0 0.0
  %1376 = vmatpush1.msra.mxu0 %v907
  %1377 = vmatprep.subr.mxu0 0.0
  %1378 = vmatpush1.msra.mxu0 %v906
  %1379 = vmatprep.subr.mxu0 0.0
  %1380 = vmatpush2.msra.mxu0 0.0
  %1381 = vmatprep.subr.mxu0 0.0
  %1382 = vmatpush2.msra.mxu0 0.0
  %1383 = vmatprep.subr.mxu0 0.0
  %1384 = vmatpush2.msra.mxu0 0.0
  %1385 = vmatprep.subr.mxu0 0.0
  %1386 = vmatpush2.msra.mxu0 0.0
  %1387 = vmatprep.subr.mxu0 0.0
  %1388 = vmatpush2.msra.mxu0 0.0
  %1389 = vmatprep.subr.mxu0 0.0
  %1390 = vmatpush2.msra.mxu0 0.0
  %1391 = vmatprep.subr.mxu0 0.0
  %1392 = vmatpush2.msra.mxu0 0.0
  %1393 = vmatprep.subr.mxu0 0.0
  %1394 = vmatpush2.msra.mxu0 0.0
  %1395 = vmatprep.subr.mxu0 0.0
  %1396 = vmatpush2.msra.mxu0 0.0
  %1397 = vmatprep.subr.mxu0 0.0
  %1398 = vmatpush2.msra.mxu0 0.0
  %1399 = vmatprep.subr.mxu0 0.0
  %1400 = vmatpush2.msra.mxu0 0.0
  %1401 = vmatprep.subr.mxu0 0.0
  %1402 = vmatpush2.msra.mxu0 0.0
  %1403 = vmatprep.subr.mxu0 0.0
  %1404 = vmatpush2.msra.mxu0 0.0
  %1405 = vmatprep.subr.mxu0 0.0
  %1406 = vmatpush2.msra.mxu0 0.0
  %1407 = vmatprep.subr.mxu0 0.0
  %1408 = vmatpush2.msra.mxu0 0.0
  %1409 = vmatprep.subr.mxu0 0.0
  %1410 = vmatpush2.msra.mxu0 0.0
  %1411 = vmatprep.mubr.f32.mxu0 0.0
  %1412 = vmatmul.mubr.f32.gmra.mxu0 %v1345
  %v1413 = vpop.f32.mrf.mxu0
  %v1414 = vadd.f32 %v916, %v1413
  %v1415 = vpop.f32.mrf.mxu0
  %1416 = vdwg.mxu0
  %s1417 = scalar_lea.vmem [#allocation2], 32
  %v1418 = vld [vmem:[%s1417] sm:$0xff]
  %v1419 = vadd.f32 %v1418, %v1414
  %v1420 = vxor.u32 %v1419, 2147483648
  %v1421 = vmul.f32 %v1420, 1.442695
  %v1422 = vpow.pop %v1421
  %v1423 = vadd.f32 %v1422, 1.0
  %v1424 = vrcp.pop %v1423
  %v1425 = vmul.f32 1.0, %v1424
  %1427 = vrot.lane.b32.xlu0 %v1414, 64
  %v1428 = vpop.permute.xlu0 %1427
  %v1430 = vmul.f32 %v1425, %v1428
  %1432 = vrot.lane.b32.xlu0 %v1430, 64
  %v1433 = vpop.permute.xlu0 %1432
  %v1435 = vadd.f32 %v1418, %v1433
  %v1436 = vtanh.pop %v1435
  %v1437 = vsub.f32 1.0, %v1425
  %1439 = vrot.lane.b32.xlu0 %v1436, 96
  %v1440 = vpop.permute.xlu0 %1439
  %v1442 = vmul.f32 %v1437, %v1440
  %v1443 = vmul.f32 %v1425, %v1338
  %v1444 = vadd.f32 %v1442, %v1443
  %1446 = vrot.lane.b32.xlu0 %v1444, 96
  %v1447 = vpop.permute.xlu0 %1446
  %s1449 = scalar_lea.vmem [#allocation3], 32
  %1450 = vst.msk [vmem:[%s1449] sm:$0xff] %vm918, %v1447
  %v1451 = vsel %vm918, %v1447, 0
  %1453 = vmatprep.subr.mxu0 0.0
  %1454 = vmatpush1.msra.mxu0 0.0
  %1455 = vmatprep.subr.mxu0 0.0
  %1456 = vmatpush1.msra.mxu0 0.0
  %1457 = vmatprep.subr.mxu0 0.0
  %1458 = vmatpush1.msra.mxu0 0.0
  %1459 = vmatprep.subr.mxu0 0.0
  %1460 = vmatpush1.msra.mxu0 0.0
  %1461 = vmatprep.subr.mxu0 0.0
  %1462 = vmatpush1.msra.mxu0 0.0
  %1463 = vmatprep.subr.mxu0 0.0
  %1464 = vmatpush1.msra.mxu0 0.0
  %1465 = vmatprep.subr.mxu0 0.0
  %1466 = vmatpush1.msra.mxu0 0.0
  %1467 = vmatprep.subr.mxu0 0.0
  %1468 = vmatpush1.msra.mxu0 0.0
  %1469 = vmatprep.subr.mxu0 0.0
  %1470 = vmatpush1.msra.mxu0 0.0
  %1471 = vmatprep.subr.mxu0 0.0
  %1472 = vmatpush1.msra.mxu0 0.0
  %1473 = vmatprep.subr.mxu0 0.0
  %1474 = vmatpush1.msra.mxu0 0.0
  %1475 = vmatprep.subr.mxu0 0.0
  %1476 = vmatpush1.msra.mxu0 0.0
  %1477 = vmatprep.subr.mxu0 0.0
  %1478 = vmatpush1.msra.mxu0 %v909
  %1479 = vmatprep.subr.mxu0 0.0
  %1480 = vmatpush1.msra.mxu0 %v908
  %1481 = vmatprep.subr.mxu0 0.0
  %1482 = vmatpush1.msra.mxu0 %v907
  %1483 = vmatprep.subr.mxu0 0.0
  %1484 = vmatpush1.msra.mxu0 %v906
  %1485 = vmatprep.subr.mxu0 0.0
  %1486 = vmatpush2.msra.mxu0 0.0
  %1487 = vmatprep.subr.mxu0 0.0
  %1488 = vmatpush2.msra.mxu0 0.0
  %1489 = vmatprep.subr.mxu0 0.0
  %1490 = vmatpush2.msra.mxu0 0.0
  %1491 = vmatprep.subr.mxu0 0.0
  %1492 = vmatpush2.msra.mxu0 0.0
  %1493 = vmatprep.subr.mxu0 0.0
  %1494 = vmatpush2.msra.mxu0 0.0
  %1495 = vmatprep.subr.mxu0 0.0
  %1496 = vmatpush2.msra.mxu0 0.0
  %1497 = vmatprep.subr.mxu0 0.0
  %1498 = vmatpush2.msra.mxu0 0.0
  %1499 = vmatprep.subr.mxu0 0.0
  %1500 = vmatpush2.msra.mxu0 0.0
  %1501 = vmatprep.subr.mxu0 0.0
  %1502 = vmatpush2.msra.mxu0 0.0
  %1503 = vmatprep.subr.mxu0 0.0
  %1504 = vmatpush2.msra.mxu0 0.0
  %1505 = vmatprep.subr.mxu0 0.0
  %1506 = vmatpush2.msra.mxu0 0.0
  %1507 = vmatprep.subr.mxu0 0.0
  %1508 = vmatpush2.msra.mxu0 0.0
  %1509 = vmatprep.subr.mxu0 0.0
  %1510 = vmatpush2.msra.mxu0 0.0
  %1511 = vmatprep.subr.mxu0 0.0
  %1512 = vmatpush2.msra.mxu0 0.0
  %1513 = vmatprep.subr.mxu0 0.0
  %1514 = vmatpush2.msra.mxu0 0.0
  %1515 = vmatprep.subr.mxu0 0.0
  %1516 = vmatpush2.msra.mxu0 0.0
  %1517 = vmatprep.mubr.f32.mxu0 0.0
  %1518 = vmatmul.mubr.f32.gmra.mxu0 %v1451
  %v1519 = vpop.f32.mrf.mxu0
  %v1520 = vadd.f32 %v916, %v1519
  %v1521 = vpop.f32.mrf.mxu0
  %1522 = vdwg.mxu0
  %s1523 = scalar_lea.vmem [#allocation2], 40
  %v1524 = vld [vmem:[%s1523] sm:$0xff]
  %v1525 = vadd.f32 %v1524, %v1520
  %v1526 = vxor.u32 %v1525, 2147483648
  %v1527 = vmul.f32 %v1526, 1.442695
  %v1528 = vpow.pop %v1527
  %v1529 = vadd.f32 %v1528, 1.0
  %v1530 = vrcp.pop %v1529
  %v1531 = vmul.f32 1.0, %v1530
  %1533 = vrot.lane.b32.xlu0 %v1520, 64
  %v1534 = vpop.permute.xlu0 %1533
  %v1536 = vmul.f32 %v1531, %v1534
  %1538 = vrot.lane.b32.xlu0 %v1536, 64
  %v1539 = vpop.permute.xlu0 %1538
  %v1541 = vadd.f32 %v1524, %v1539
  %v1542 = vtanh.pop %v1541
  %v1543 = vsub.f32 1.0, %v1531
  %1545 = vrot.lane.b32.xlu0 %v1542, 96
  %v1546 = vpop.permute.xlu0 %1545
  %v1548 = vmul.f32 %v1543, %v1546
  %v1549 = vmul.f32 %v1531, %v1444
  %v1550 = vadd.f32 %v1548, %v1549
  %1552 = vrot.lane.b32.xlu0 %v1550, 96
  %v1553 = vpop.permute.xlu0 %1552
  %s1555 = scalar_lea.vmem [#allocation3], 40
  %1556 = vst.msk [vmem:[%s1555] sm:$0xff] %vm918, %v1553
  %v1557 = vsel %vm918, %v1553, 0
  %1559 = vmatprep.subr.mxu0 0.0
  %1560 = vmatpush1.msra.mxu0 0.0
  %1561 = vmatprep.subr.mxu0 0.0
  %1562 = vmatpush1.msra.mxu0 0.0
  %1563 = vmatprep.subr.mxu0 0.0
  %1564 = vmatpush1.msra.mxu0 0.0
  %1565 = vmatprep.subr.mxu0 0.0
  %1566 = vmatpush1.msra.mxu0 0.0
  %1567 = vmatprep.subr.mxu0 0.0
  %1568 = vmatpush1.msra.mxu0 0.0
  %1569 = vmatprep.subr.mxu0 0.0
  %1570 = vmatpush1.msra.mxu0 0.0
  %1571 = vmatprep.subr.mxu0 0.0
  %1572 = vmatpush1.msra.mxu0 0.0
  %1573 = vmatprep.subr.mxu0 0.0
  %1574 = vmatpush1.msra.mxu0 0.0
  %1575 = vmatprep.subr.mxu0 0.0
  %1576 = vmatpush1.msra.mxu0 0.0
  %1577 = vmatprep.subr.mxu0 0.0
  %1578 = vmatpush1.msra.mxu0 0.0
  %1579 = vmatprep.subr.mxu0 0.0
  %1580 = vmatpush1.msra.mxu0 0.0
  %1581 = vmatprep.subr.mxu0 0.0
  %1582 = vmatpush1.msra.mxu0 0.0
  %1583 = vmatprep.subr.mxu0 0.0
  %1584 = vmatpush1.msra.mxu0 %v909
  %1585 = vmatprep.subr.mxu0 0.0
  %1586 = vmatpush1.msra.mxu0 %v908
  %1587 = vmatprep.subr.mxu0 0.0
  %1588 = vmatpush1.msra.mxu0 %v907
  %1589 = vmatprep.subr.mxu0 0.0
  %1590 = vmatpush1.msra.mxu0 %v906
  %1591 = vmatprep.subr.mxu0 0.0
  %1592 = vmatpush2.msra.mxu0 0.0
  %1593 = vmatprep.subr.mxu0 0.0
  %1594 = vmatpush2.msra.mxu0 0.0
  %1595 = vmatprep.subr.mxu0 0.0
  %1596 = vmatpush2.msra.mxu0 0.0
  %1597 = vmatprep.subr.mxu0 0.0
  %1598 = vmatpush2.msra.mxu0 0.0
  %1599 = vmatprep.subr.mxu0 0.0
  %1600 = vmatpush2.msra.mxu0 0.0
  %1601 = vmatprep.subr.mxu0 0.0
  %1602 = vmatpush2.msra.mxu0 0.0
  %1603 = vmatprep.subr.mxu0 0.0
  %1604 = vmatpush2.msra.mxu0 0.0
  %1605 = vmatprep.subr.mxu0 0.0
  %1606 = vmatpush2.msra.mxu0 0.0
  %1607 = vmatprep.subr.mxu0 0.0
  %1608 = vmatpush2.msra.mxu0 0.0
  %1609 = vmatprep.subr.mxu0 0.0
  %1610 = vmatpush2.msra.mxu0 0.0
  %1611 = vmatprep.subr.mxu0 0.0
  %1612 = vmatpush2.msra.mxu0 0.0
  %1613 = vmatprep.subr.mxu0 0.0
  %1614 = vmatpush2.msra.mxu0 0.0
  %1615 = vmatprep.subr.mxu0 0.0
  %1616 = vmatpush2.msra.mxu0 0.0
  %1617 = vmatprep.subr.mxu0 0.0
  %1618 = vmatpush2.msra.mxu0 0.0
  %1619 = vmatprep.subr.mxu0 0.0
  %1620 = vmatpush2.msra.mxu0 0.0
  %1621 = vmatprep.subr.mxu0 0.0
  %1622 = vmatpush2.msra.mxu0 0.0
  %1623 = vmatprep.mubr.f32.mxu0 0.0
  %1624 = vmatmul.mubr.f32.gmra.mxu0 %v1557
  %v1625 = vpop.f32.mrf.mxu0
  %v1626 = vadd.f32 %v916, %v1625
  %v1627 = vpop.f32.mrf.mxu0
  %1628 = vdwg.mxu0
  %s1629 = scalar_lea.vmem [#allocation2], 48
  %v1630 = vld [vmem:[%s1629] sm:$0xff]
  %v1631 = vadd.f32 %v1630, %v1626
  %v1632 = vxor.u32 %v1631, 2147483648
  %v1633 = vmul.f32 %v1632, 1.442695
  %v1634 = vpow.pop %v1633
  %v1635 = vadd.f32 %v1634, 1.0
  %v1636 = vrcp.pop %v1635
  %v1637 = vmul.f32 1.0, %v1636
  %1639 = vrot.lane.b32.xlu0 %v1626, 64
  %v1640 = vpop.permute.xlu0 %1639
  %v1642 = vmul.f32 %v1637, %v1640
  %1644 = vrot.lane.b32.xlu0 %v1642, 64
  %v1645 = vpop.permute.xlu0 %1644
  %v1647 = vadd.f32 %v1630, %v1645
  %v1648 = vtanh.pop %v1647
  %v1649 = vsub.f32 1.0, %v1637
  %1651 = vrot.lane.b32.xlu0 %v1648, 96
  %v1652 = vpop.permute.xlu0 %1651
  %v1654 = vmul.f32 %v1649, %v1652
  %v1655 = vmul.f32 %v1637, %v1550
  %v1656 = vadd.f32 %v1654, %v1655
  %1658 = vrot.lane.b32.xlu0 %v1656, 96
  %v1659 = vpop.permute.xlu0 %1658
  %s1661 = scalar_lea.vmem [#allocation3], 48
  %1662 = vst.msk [vmem:[%s1661] sm:$0xff] %vm918, %v1659
  %v1663 = vsel %vm918, %v1659, 0
  %1665 = vmatprep.subr.mxu0 0.0
  %1666 = vmatpush1.msra.mxu0 0.0
  %1667 = vmatprep.subr.mxu0 0.0
  %1668 = vmatpush1.msra.mxu0 0.0
  %1669 = vmatprep.subr.mxu0 0.0
  %1670 = vmatpush1.msra.mxu0 0.0
  %1671 = vmatprep.subr.mxu0 0.0
  %1672 = vmatpush1.msra.mxu0 0.0
  %1673 = vmatprep.subr.mxu0 0.0
  %1674 = vmatpush1.msra.mxu0 0.0
  %1675 = vmatprep.subr.mxu0 0.0
  %1676 = vmatpush1.msra.mxu0 0.0
  %1677 = vmatprep.subr.mxu0 0.0
  %1678 = vmatpush1.msra.mxu0 0.0
  %1679 = vmatprep.subr.mxu0 0.0
  %1680 = vmatpush1.msra.mxu0 0.0
  %1681 = vmatprep.subr.mxu0 0.0
  %1682 = vmatpush1.msra.mxu0 0.0
  %1683 = vmatprep.subr.mxu0 0.0
  %1684 = vmatpush1.msra.mxu0 0.0
  %1685 = vmatprep.subr.mxu0 0.0
  %1686 = vmatpush1.msra.mxu0 0.0
  %1687 = vmatprep.subr.mxu0 0.0
  %1688 = vmatpush1.msra.mxu0 0.0
  %1689 = vmatprep.subr.mxu0 0.0
  %1690 = vmatpush1.msra.mxu0 %v909
  %1691 = vmatprep.subr.mxu0 0.0
  %1692 = vmatpush1.msra.mxu0 %v908
  %1693 = vmatprep.subr.mxu0 0.0
  %1694 = vmatpush1.msra.mxu0 %v907
  %1695 = vmatprep.subr.mxu0 0.0
  %1696 = vmatpush1.msra.mxu0 %v906
  %1697 = vmatprep.subr.mxu0 0.0
  %1698 = vmatpush2.msra.mxu0 0.0
  %1699 = vmatprep.subr.mxu0 0.0
  %1700 = vmatpush2.msra.mxu0 0.0
  %1701 = vmatprep.subr.mxu0 0.0
  %1702 = vmatpush2.msra.mxu0 0.0
  %1703 = vmatprep.subr.mxu0 0.0
  %1704 = vmatpush2.msra.mxu0 0.0
  %1705 = vmatprep.subr.mxu0 0.0
  %1706 = vmatpush2.msra.mxu0 0.0
  %1707 = vmatprep.subr.mxu0 0.0
  %1708 = vmatpush2.msra.mxu0 0.0
  %1709 = vmatprep.subr.mxu0 0.0
  %1710 = vmatpush2.msra.mxu0 0.0
  %1711 = vmatprep.subr.mxu0 0.0
  %1712 = vmatpush2.msra.mxu0 0.0
  %1713 = vmatprep.subr.mxu0 0.0
  %1714 = vmatpush2.msra.mxu0 0.0
  %1715 = vmatprep.subr.mxu0 0.0
  %1716 = vmatpush2.msra.mxu0 0.0
  %1717 = vmatprep.subr.mxu0 0.0
  %1718 = vmatpush2.msra.mxu0 0.0
  %1719 = vmatprep.subr.mxu0 0.0
  %1720 = vmatpush2.msra.mxu0 0.0
  %1721 = vmatprep.subr.mxu0 0.0
  %1722 = vmatpush2.msra.mxu0 0.0
  %1723 = vmatprep.subr.mxu0 0.0
  %1724 = vmatpush2.msra.mxu0 0.0
  %1725 = vmatprep.subr.mxu0 0.0
  %1726 = vmatpush2.msra.mxu0 0.0
  %1727 = vmatprep.subr.mxu0 0.0
  %1728 = vmatpush2.msra.mxu0 0.0
  %1729 = vmatprep.mubr.f32.mxu0 0.0
  %1730 = vmatmul.mubr.f32.gmra.mxu0 %v1663
  %v1731 = vpop.f32.mrf.mxu0
  %v1732 = vadd.f32 %v916, %v1731
  %v1733 = vpop.f32.mrf.mxu0
  %1734 = vdwg.mxu0
  %s1735 = scalar_lea.vmem [#allocation2], 56
  %v1736 = vld [vmem:[%s1735] sm:$0xff]
  %v1737 = vadd.f32 %v1736, %v1732
  %v1738 = vxor.u32 %v1737, 2147483648
  %v1739 = vmul.f32 %v1738, 1.442695
  %v1740 = vpow.pop %v1739
  %v1741 = vadd.f32 %v1740, 1.0
  %v1742 = vrcp.pop %v1741
  %v1743 = vmul.f32 1.0, %v1742
  %1745 = vrot.lane.b32.xlu0 %v1732, 64
  %v1746 = vpop.permute.xlu0 %1745
  %v1748 = vmul.f32 %v1743, %v1746
  %1750 = vrot.lane.b32.xlu0 %v1748, 64
  %v1751 = vpop.permute.xlu0 %1750
  %v1753 = vadd.f32 %v1736, %v1751
  %v1754 = vtanh.pop %v1753
  %v1755 = vsub.f32 1.0, %v1743
  %1757 = vrot.lane.b32.xlu0 %v1754, 96
  %v1758 = vpop.permute.xlu0 %1757
  %v1760 = vmul.f32 %v1755, %v1758
  %v1761 = vmul.f32 %v1743, %v1656
  %v1762 = vadd.f32 %v1760, %v1761
  %1764 = vrot.lane.b32.xlu0 %v1762, 96
  %v1765 = vpop.permute.xlu0 %1764
  %s1767 = scalar_lea.vmem [#allocation3], 56
  %1768 = vst.msk [vmem:[%s1767] sm:$0xff] %vm918, %v1765
  %1769 = vst.msk [vmem:[#allocation4] sm:$0xff] %vm918, %v1765
  %v1770 = vld [vmem:[%s15] sm:$0xff]
  %v1771 = vld [vmem:[%s15 + $0x8] sm:$0xff]
  %v1772 = vld [vmem:[%s16] sm:$0x1]
  %v1774 = vlaneseq
  %v1775 = vshrl.u32 %v1774, 7
  %v1776 = vsub.s32 0, %v1775
  %v1777 = vrot.slane %v1772, %v1776
  %1779 = vmatprep.subr.mxu0 0.0
  %1780 = vmatpush1.msra.mxu0 0.0
  %1781 = vmatprep.subr.mxu0 0.0
  %1782 = vmatpush1.msra.mxu0 0.0
  %1783 = vmatprep.subr.mxu0 0.0
  %1784 = vmatpush1.msra.mxu0 0.0
  %1785 = vmatprep.subr.mxu0 0.0
  %1786 = vmatpush1.msra.mxu0 0.0
  %1787 = vmatprep.subr.mxu0 0.0
  %1788 = vmatpush1.msra.mxu0 0.0
  %1789 = vmatprep.subr.mxu0 0.0
  %1790 = vmatpush1.msra.mxu0 0.0
  %1791 = vmatprep.subr.mxu0 0.0
  %1792 = vmatpush1.msra.mxu0 0.0
  %1793 = vmatprep.subr.mxu0 0.0
  %1794 = vmatpush1.msra.mxu0 0.0
  %1795 = vmatprep.subr.mxu0 0.0
  %1796 = vmatpush1.msra.mxu0 0.0
  %1797 = vmatprep.subr.mxu0 0.0
  %1798 = vmatpush1.msra.mxu0 0.0
  %1799 = vmatprep.subr.mxu0 0.0
  %1800 = vmatpush1.msra.mxu0 0.0
  %1801 = vmatprep.subr.mxu0 0.0
  %1802 = vmatpush1.msra.mxu0 0.0
  %1803 = vmatprep.subr.mxu0 0.0
  %1804 = vmatpush1.msra.mxu0 0.0
  %1805 = vmatprep.subr.mxu0 0.0
  %1806 = vmatpush1.msra.mxu0 0.0
  %1807 = vmatprep.subr.mxu0 0.0
  %1808 = vmatpush1.msra.mxu0 %v1771
  %1809 = vmatprep.subr.mxu0 0.0
  %1810 = vmatpush1.msra.mxu0 %v1770
  %1811 = vmatprep.subr.mxu0 0.0
  %1812 = vmatpush2.msra.mxu0 0.0
  %1813 = vmatprep.subr.mxu0 0.0
  %1814 = vmatpush2.msra.mxu0 0.0
  %1815 = vmatprep.subr.mxu0 0.0
  %1816 = vmatpush2.msra.mxu0 0.0
  %1817 = vmatprep.subr.mxu0 0.0
  %1818 = vmatpush2.msra.mxu0 0.0
  %1819 = vmatprep.subr.mxu0 0.0
  %1820 = vmatpush2.msra.mxu0 0.0
  %1821 = vmatprep.subr.mxu0 0.0
  %1822 = vmatpush2.msra.mxu0 0.0
  %1823 = vmatprep.subr.mxu0 0.0
  %1824 = vmatpush2.msra.mxu0 0.0
  %1825 = vmatprep.subr.mxu0 0.0
  %1826 = vmatpush2.msra.mxu0 0.0
  %1827 = vmatprep.subr.mxu0 0.0
  %1828 = vmatpush2.msra.mxu0 0.0
  %1829 = vmatprep.subr.mxu0 0.0
  %1830 = vmatpush2.msra.mxu0 0.0
  %1831 = vmatprep.subr.mxu0 0.0
  %1832 = vmatpush2.msra.mxu0 0.0
  %1833 = vmatprep.subr.mxu0 0.0
  %1834 = vmatpush2.msra.mxu0 0.0
  %1835 = vmatprep.subr.mxu0 0.0
  %1836 = vmatpush2.msra.mxu0 0.0
  %1837 = vmatprep.subr.mxu0 0.0
  %1838 = vmatpush2.msra.mxu0 0.0
  %1839 = vmatprep.subr.mxu0 0.0
  %1840 = vmatpush2.msra.mxu0 0.0
  %1841 = vmatprep.subr.mxu0 0.0
  %1842 = vmatpush2.msra.mxu0 0.0
  %1843 = vmatprep.mubr.f32.mxu0 0.0
  %1844 = vmatmul.mubr.f32.gmra.mxu0 %v340
  %v1845 = vpop.f32.mrf.mxu0
  %v1846 = vadd.f32 %v1777, %v1845
  %v1847 = vpop.f32.mrf.mxu0
  %1848 = vmatprep.mubr.f32.mxu0 0.0
  %1849 = vmatmul.mubr.f32.gmra.mxu0 %v343
  %v1850 = vpop.f32.mrf.mxu0
  %v1851 = vadd.f32 %v1777, %v1850
  %v1852 = vpop.f32.mrf.mxu0
  %1853 = vmatprep.mubr.f32.mxu0 0.0
  %1854 = vmatmul.mubr.f32.gmra.mxu0 %v346
  %v1855 = vpop.f32.mrf.mxu0
  %v1856 = vadd.f32 %v1777, %v1855
  %v1857 = vpop.f32.mrf.mxu0
  %1858 = vmatprep.mubr.f32.mxu0 0.0
  %1859 = vmatmul.mubr.f32.gmra.mxu0 %v349
  %v1860 = vpop.f32.mrf.mxu0
  %v1861 = vadd.f32 %v1777, %v1860
  %v1862 = vpop.f32.mrf.mxu0
  %1863 = vmatprep.mubr.f32.mxu0 0.0
  %1864 = vmatmul.mubr.f32.gmra.mxu0 %v352
  %v1865 = vpop.f32.mrf.mxu0
  %v1866 = vadd.f32 %v1777, %v1865
  %v1867 = vpop.f32.mrf.mxu0
  %1868 = vmatprep.mubr.f32.mxu0 0.0
  %1869 = vmatmul.mubr.f32.gmra.mxu0 %v355
  %v1870 = vpop.f32.mrf.mxu0
  %v1871 = vadd.f32 %v1777, %v1870
  %v1872 = vpop.f32.mrf.mxu0
  %1873 = vmatprep.mubr.f32.mxu0 0.0
  %1874 = vmatmul.mubr.f32.gmra.mxu0 %v358
  %v1875 = vpop.f32.mrf.mxu0
  %v1876 = vadd.f32 %v1777, %v1875
  %v1877 = vpop.f32.mrf.mxu0
  %1878 = vmatprep.mubr.f32.mxu0 0.0
  %1879 = vmatmul.mubr.f32.gmra.mxu0 %v361
  %v1880 = vpop.f32.mrf.mxu0
  %v1881 = vadd.f32 %v1777, %v1880
  %v1882 = vpop.f32.mrf.mxu0
  %1883 = vdwg.mxu0
  %v1884 = vmax.f32 %v1846, 0.0
  %v1885 = vmax.f32 %v1851, 0.0
  %v1886 = vmax.f32 %v1856, 0.0
  %v1887 = vmax.f32 %v1861, 0.0
  %v1888 = vmax.f32 %v1866, 0.0
  %v1889 = vmax.f32 %v1871, 0.0
  %v1890 = vmax.f32 %v1876, 0.0
  %v1891 = vmax.f32 %v1881, 0.0
  %v1892 = vld [vmem:[#allocation3] sm:$0xff]
  %v1893 = vld [vmem:[#allocation3 + $0x8] sm:$0xff]
  %v1894 = vld [vmem:[#allocation3 + $0x10] sm:$0xff]
  %v1895 = vld [vmem:[#allocation3 + $0x18] sm:$0xff]
  %v1896 = vld [vmem:[#allocation3 + $0x20] sm:$0xff]
  %v1897 = vld [vmem:[#allocation3 + $0x28] sm:$0xff]
  %v1898 = vld [vmem:[#allocation3 + $0x30] sm:$0xff]
  %v1899 = vld [vmem:[#allocation3 + $0x38] sm:$0xff]
  %v1900 = vld [vmem:[%s17] sm:$0xff]
  %v1901 = vld [vmem:[%s17 + $0x8] sm:$0xff]
  %v1902 = vld [vmem:[%s17 + $0x10] sm:$0xff]
  %v1903 = vld [vmem:[%s17 + $0x18] sm:$0xff]
  %v1904 = vld [vmem:[%s18] sm:$0xff]
  %v1905 = vld [vmem:[%s18 + $0x8] sm:$0xff]
  %v1907 = vsel %vm338, %v1884, 0
  %v1910 = vsel %vm338, %v1885, 0
  %v1913 = vsel %vm338, %v1886, 0
  %v1916 = vsel %vm338, %v1887, 0
  %v1919 = vsel %vm338, %v1888, 0
  %v1922 = vsel %vm338, %v1889, 0
  %v1925 = vsel %vm338, %v1890, 0
  %v1928 = vsel %vm338, %v1891, 0
  %1930 = vmatprep.subr.mxu0 0.0
  %1931 = vmatpush1.msra.mxu0 0.0
  %1932 = vmatprep.subr.mxu0 0.0
  %1933 = vmatpush1.msra.mxu0 0.0
  %1934 = vmatprep.subr.mxu0 0.0
  %1935 = vmatpush1.msra.mxu0 0.0
  %1936 = vmatprep.subr.mxu0 0.0
  %1937 = vmatpush1.msra.mxu0 0.0
  %1938 = vmatprep.subr.mxu0 0.0
  %1939 = vmatpush1.msra.mxu0 0.0
  %1940 = vmatprep.subr.mxu0 0.0
  %1941 = vmatpush1.msra.mxu0 0.0
  %1942 = vmatprep.subr.mxu0 0.0
  %1943 = vmatpush1.msra.mxu0 0.0
  %1944 = vmatprep.subr.mxu0 0.0
  %1945 = vmatpush1.msra.mxu0 0.0
  %1946 = vmatprep.subr.mxu0 0.0
  %1947 = vmatpush1.msra.mxu0 0.0
  %1948 = vmatprep.subr.mxu0 0.0
  %1949 = vmatpush1.msra.mxu0 0.0
  %1950 = vmatprep.subr.mxu0 0.0
  %1951 = vmatpush1.msra.mxu0 0.0
  %1952 = vmatprep.subr.mxu0 0.0
  %1953 = vmatpush1.msra.mxu0 0.0
  %1954 = vmatprep.subr.mxu0 0.0
  %1955 = vmatpush1.msra.mxu0 0.0
  %1956 = vmatprep.subr.mxu0 0.0
  %1957 = vmatpush1.msra.mxu0 0.0
  %1958 = vmatprep.subr.mxu0 0.0
  %1959 = vmatpush1.msra.mxu0 %v1905
  %1960 = vmatprep.subr.mxu0 0.0
  %1961 = vmatpush1.msra.mxu0 %v1904
  %1962 = vmatprep.subr.mxu0 0.0
  %1963 = vmatpush2.msra.mxu0 0.0
  %1964 = vmatprep.subr.mxu0 0.0
  %1965 = vmatpush2.msra.mxu0 0.0
  %1966 = vmatprep.subr.mxu0 0.0
  %1967 = vmatpush2.msra.mxu0 0.0
  %1968 = vmatprep.subr.mxu0 0.0
  %1969 = vmatpush2.msra.mxu0 0.0
  %1970 = vmatprep.subr.mxu0 0.0
  %1971 = vmatpush2.msra.mxu0 0.0
  %1972 = vmatprep.subr.mxu0 0.0
  %1973 = vmatpush2.msra.mxu0 0.0
  %1974 = vmatprep.subr.mxu0 0.0
  %1975 = vmatpush2.msra.mxu0 0.0
  %1976 = vmatprep.subr.mxu0 0.0
  %1977 = vmatpush2.msra.mxu0 0.0
  %1978 = vmatprep.subr.mxu0 0.0
  %1979 = vmatpush2.msra.mxu0 0.0
  %1980 = vmatprep.subr.mxu0 0.0
  %1981 = vmatpush2.msra.mxu0 0.0
  %1982 = vmatprep.subr.mxu0 0.0
  %1983 = vmatpush2.msra.mxu0 0.0
  %1984 = vmatprep.subr.mxu0 0.0
  %1985 = vmatpush2.msra.mxu0 0.0
  %1986 = vmatprep.subr.mxu0 0.0
  %1987 = vmatpush2.msra.mxu0 0.0
  %1988 = vmatprep.subr.mxu0 0.0
  %1989 = vmatpush2.msra.mxu0 0.0
  %1990 = vmatprep.subr.mxu0 0.0
  %1991 = vmatpush2.msra.mxu0 0.0
  %1992 = vmatprep.subr.mxu0 0.0
  %1993 = vmatpush2.msra.mxu0 0.0
  %1994 = vmatprep.mubr.f32.mxu0 0.0
  %1995 = vmatmul.mubr.f32.gmra.mxu0 %v1907
  %v1996 = vpop.f32.mrf.mxu0
  %v1997 = vadd.f32 0.0, %v1996
  %v1998 = vpop.f32.mrf.mxu0
  %1999 = vmatprep.mubr.f32.mxu0 0.0
  %2000 = vmatmul.mubr.f32.gmra.mxu0 %v1910
  %v2001 = vpop.f32.mrf.mxu0
  %v2002 = vadd.f32 0.0, %v2001
  %v2003 = vpop.f32.mrf.mxu0
  %2004 = vmatprep.mubr.f32.mxu0 0.0
  %2005 = vmatmul.mubr.f32.gmra.mxu0 %v1913
  %v2006 = vpop.f32.mrf.mxu0
  %v2007 = vadd.f32 0.0, %v2006
  %v2008 = vpop.f32.mrf.mxu0
  %2009 = vmatprep.mubr.f32.mxu0 0.0
  %2010 = vmatmul.mubr.f32.gmra.mxu0 %v1916
  %v2011 = vpop.f32.mrf.mxu0
  %v2012 = vadd.f32 0.0, %v2011
  %v2013 = vpop.f32.mrf.mxu0
  %2014 = vmatprep.mubr.f32.mxu0 0.0
  %2015 = vmatmul.mubr.f32.gmra.mxu0 %v1919
  %v2016 = vpop.f32.mrf.mxu0
  %v2017 = vadd.f32 0.0, %v2016
  %v2018 = vpop.f32.mrf.mxu0
  %2019 = vmatprep.mubr.f32.mxu0 0.0
  %2020 = vmatmul.mubr.f32.gmra.mxu0 %v1922
  %v2021 = vpop.f32.mrf.mxu0
  %v2022 = vadd.f32 0.0, %v2021
  %v2023 = vpop.f32.mrf.mxu0
  %2024 = vmatprep.mubr.f32.mxu0 0.0
  %2025 = vmatmul.mubr.f32.gmra.mxu0 %v1925
  %v2026 = vpop.f32.mrf.mxu0
  %v2027 = vadd.f32 0.0, %v2026
  %v2028 = vpop.f32.mrf.mxu0
  %2029 = vmatprep.mubr.f32.mxu0 0.0
  %2030 = vmatmul.mubr.f32.gmra.mxu0 %v1928
  %v2031 = vpop.f32.mrf.mxu0
  %v2032 = vadd.f32 0.0, %v2031
  %v2033 = vpop.f32.mrf.mxu0
  %2034 = vdwg.mxu0
  %v2036 = vsel %vm918, %v1892, 0
  %v2039 = vsel %vm918, %v1893, 0
  %v2042 = vsel %vm918, %v1894, 0
  %v2045 = vsel %vm918, %v1895, 0
  %v2048 = vsel %vm918, %v1896, 0
  %v2051 = vsel %vm918, %v1897, 0
  %v2054 = vsel %vm918, %v1898, 0
  %v2057 = vsel %vm918, %v1899, 0
  %2059 = vmatprep.subr.mxu0 0.0
  %2060 = vmatpush1.msra.mxu0 0.0
  %2061 = vmatprep.subr.mxu0 0.0
  %2062 = vmatpush1.msra.mxu0 0.0
  %2063 = vmatprep.subr.mxu0 0.0
  %2064 = vmatpush1.msra.mxu0 0.0
  %2065 = vmatprep.subr.mxu0 0.0
  %2066 = vmatpush1.msra.mxu0 0.0
  %2067 = vmatprep.subr.mxu0 0.0
  %2068 = vmatpush1.msra.mxu0 0.0
  %2069 = vmatprep.subr.mxu0 0.0
  %2070 = vmatpush1.msra.mxu0 0.0
  %2071 = vmatprep.subr.mxu0 0.0
  %2072 = vmatpush1.msra.mxu0 0.0
  %2073 = vmatprep.subr.mxu0 0.0
  %2074 = vmatpush1.msra.mxu0 0.0
  %2075 = vmatprep.subr.mxu0 0.0
  %2076 = vmatpush1.msra.mxu0 0.0
  %2077 = vmatprep.subr.mxu0 0.0
  %2078 = vmatpush1.msra.mxu0 0.0
  %2079 = vmatprep.subr.mxu0 0.0
  %2080 = vmatpush1.msra.mxu0 0.0
  %2081 = vmatprep.subr.mxu0 0.0
  %2082 = vmatpush1.msra.mxu0 0.0
  %2083 = vmatprep.subr.mxu0 0.0
  %2084 = vmatpush1.msra.mxu0 %v1903
  %2085 = vmatprep.subr.mxu0 0.0
  %2086 = vmatpush1.msra.mxu0 %v1902
  %2087 = vmatprep.subr.mxu0 0.0
  %2088 = vmatpush1.msra.mxu0 %v1901
  %2089 = vmatprep.subr.mxu0 0.0
  %2090 = vmatpush1.msra.mxu0 %v1900
  %2091 = vmatprep.subr.mxu0 0.0
  %2092 = vmatpush2.msra.mxu0 0.0
  %2093 = vmatprep.subr.mxu0 0.0
  %2094 = vmatpush2.msra.mxu0 0.0
  %2095 = vmatprep.subr.mxu0 0.0
  %2096 = vmatpush2.msra.mxu0 0.0
  %2097 = vmatprep.subr.mxu0 0.0
  %2098 = vmatpush2.msra.mxu0 0.0
  %2099 = vmatprep.subr.mxu0 0.0
  %2100 = vmatpush2.msra.mxu0 0.0
  %2101 = vmatprep.subr.mxu0 0.0
  %2102 = vmatpush2.msra.mxu0 0.0
  %2103 = vmatprep.subr.mxu0 0.0
  %2104 = vmatpush2.msra.mxu0 0.0
  %2105 = vmatprep.subr.mxu0 0.0
  %2106 = vmatpush2.msra.mxu0 0.0
  %2107 = vmatprep.subr.mxu0 0.0
  %2108 = vmatpush2.msra.mxu0 0.0
  %2109 = vmatprep.subr.mxu0 0.0
  %2110 = vmatpush2.msra.mxu0 0.0
  %2111 = vmatprep.subr.mxu0 0.0
  %2112 = vmatpush2.msra.mxu0 0.0
  %2113 = vmatprep.subr.mxu0 0.0
  %2114 = vmatpush2.msra.mxu0 0.0
  %2115 = vmatprep.subr.mxu0 0.0
  %2116 = vmatpush2.msra.mxu0 0.0
  %2117 = vmatprep.subr.mxu0 0.0
  %2118 = vmatpush2.msra.mxu0 0.0
  %2119 = vmatprep.subr.mxu0 0.0
  %2120 = vmatpush2.msra.mxu0 0.0
  %2121 = vmatprep.subr.mxu0 0.0
  %2122 = vmatpush2.msra.mxu0 0.0
  %2123 = vmatprep.mubr.f32.mxu0 0.0
  %2124 = vmatmul.mubr.f32.gmra.mxu0 %v2036
  %v2125 = vpop.f32.mrf.mxu0
  %v2126 = vadd.f32 %v1997, %v2125
  %v2127 = vpop.f32.mrf.mxu0
  %2128 = vmatprep.mubr.f32.mxu0 0.0
  %2129 = vmatmul.mubr.f32.gmra.mxu0 %v2039
  %v2130 = vpop.f32.mrf.mxu0
  %v2131 = vadd.f32 %v2002, %v2130
  %v2132 = vpop.f32.mrf.mxu0
  %2133 = vmatprep.mubr.f32.mxu0 0.0
  %2134 = vmatmul.mubr.f32.gmra.mxu0 %v2042
  %v2135 = vpop.f32.mrf.mxu0
  %v2136 = vadd.f32 %v2007, %v2135
  %v2137 = vpop.f32.mrf.mxu0
  %2138 = vmatprep.mubr.f32.mxu0 0.0
  %2139 = vmatmul.mubr.f32.gmra.mxu0 %v2045
  %v2140 = vpop.f32.mrf.mxu0
  %v2141 = vadd.f32 %v2012, %v2140
  %v2142 = vpop.f32.mrf.mxu0
  %2143 = vmatprep.mubr.f32.mxu0 0.0
  %2144 = vmatmul.mubr.f32.gmra.mxu0 %v2048
  %v2145 = vpop.f32.mrf.mxu0
  %v2146 = vadd.f32 %v2017, %v2145
  %v2147 = vpop.f32.mrf.mxu0
  %2148 = vmatprep.mubr.f32.mxu0 0.0
  %2149 = vmatmul.mubr.f32.gmra.mxu0 %v2051
  %v2150 = vpop.f32.mrf.mxu0
  %v2151 = vadd.f32 %v2022, %v2150
  %v2152 = vpop.f32.mrf.mxu0
  %2153 = vmatprep.mubr.f32.mxu0 0.0
  %2154 = vmatmul.mubr.f32.gmra.mxu0 %v2054
  %v2155 = vpop.f32.mrf.mxu0
  %v2156 = vadd.f32 %v2027, %v2155
  %v2157 = vpop.f32.mrf.mxu0
  %2158 = vmatprep.mubr.f32.mxu0 0.0
  %2159 = vmatmul.mubr.f32.gmra.mxu0 %v2057
  %v2160 = vpop.f32.mrf.mxu0
  %v2161 = vadd.f32 %v2032, %v2160
  %v2162 = vpop.f32.mrf.mxu0
  %2163 = vdwg.mxu0
  %v2164 = vld [vmem:[%s19] sm:$0x1]
  %v2166 = vlaneseq
  %v2167 = vshrl.u32 %v2166, 7
  %v2168 = vsub.s32 0, %v2167
  %v2169 = vrot.slane %v2164, %v2168
  %v2171 = vadd.f32 %v2126, %v2169
  %v2172 = vadd.f32 %v2131, %v2169
  %v2173 = vadd.f32 %v2136, %v2169
  %v2174 = vadd.f32 %v2141, %v2169
  %v2175 = vadd.f32 %v2146, %v2169
  %v2176 = vadd.f32 %v2151, %v2169
  %v2177 = vadd.f32 %v2156, %v2169
  %v2178 = vadd.f32 %v2161, %v2169
  %v2179 = vmax.f32 %v2171, 0.0
  %v2180 = vmax.f32 %v2172, 0.0
  %v2181 = vmax.f32 %v2173, 0.0
  %v2182 = vmax.f32 %v2174, 0.0
  %v2183 = vmax.f32 %v2175, 0.0
  %v2184 = vmax.f32 %v2176, 0.0
  %v2185 = vmax.f32 %v2177, 0.0
  %v2186 = vmax.f32 %v2178, 0.0
  %v2187 = vld [vmem:[%s20] sm:$0xff]
  %v2188 = vld [vmem:[%s20 + $0x8] sm:$0xff]
  %v2189 = vld [vmem:[%s20 + $0x10] sm:$0xff]
  %v2190 = vld [vmem:[%s20 + $0x18] sm:$0xff]
  %v2191 = vld [vmem:[%s21] sm:$0x1]
  %v2193 = vlaneseq
  %v2194 = vshrl.u32 %v2193, 7
  %v2195 = vsub.s32 0, %v2194
  %v2196 = vrot.slane %v2191, %v2195
  %v2199 = vsel %vm918, %v2179, 0
  %v2202 = vsel %vm918, %v2180, 0
  %v2205 = vsel %vm918, %v2181, 0
  %v2208 = vsel %vm918, %v2182, 0
  %v2211 = vsel %vm918, %v2183, 0
  %v2214 = vsel %vm918, %v2184, 0
  %v2217 = vsel %vm918, %v2185, 0
  %v2220 = vsel %vm918, %v2186, 0
  %2222 = vmatprep.subr.mxu0 0.0
  %2223 = vmatpush1.msra.mxu0 0.0
  %2224 = vmatprep.subr.mxu0 0.0
  %2225 = vmatpush1.msra.mxu0 0.0
  %2226 = vmatprep.subr.mxu0 0.0
  %2227 = vmatpush1.msra.mxu0 0.0
  %2228 = vmatprep.subr.mxu0 0.0
  %2229 = vmatpush1.msra.mxu0 0.0
  %2230 = vmatprep.subr.mxu0 0.0
  %2231 = vmatpush1.msra.mxu0 0.0
  %2232 = vmatprep.subr.mxu0 0.0
  %2233 = vmatpush1.msra.mxu0 0.0
  %2234 = vmatprep.subr.mxu0 0.0
  %2235 = vmatpush1.msra.mxu0 0.0
  %2236 = vmatprep.subr.mxu0 0.0
  %2237 = vmatpush1.msra.mxu0 0.0
  %2238 = vmatprep.subr.mxu0 0.0
  %2239 = vmatpush1.msra.mxu0 0.0
  %2240 = vmatprep.subr.mxu0 0.0
  %2241 = vmatpush1.msra.mxu0 0.0
  %2242 = vmatprep.subr.mxu0 0.0
  %2243 = vmatpush1.msra.mxu0 0.0
  %2244 = vmatprep.subr.mxu0 0.0
  %2245 = vmatpush1.msra.mxu0 0.0
  %2246 = vmatprep.subr.mxu0 0.0
  %2247 = vmatpush1.msra.mxu0 %v2190
  %2248 = vmatprep.subr.mxu0 0.0
  %2249 = vmatpush1.msra.mxu0 %v2189
  %2250 = vmatprep.subr.mxu0 0.0
  %2251 = vmatpush1.msra.mxu0 %v2188
  %2252 = vmatprep.subr.mxu0 0.0
  %2253 = vmatpush1.msra.mxu0 %v2187
  %2254 = vmatprep.subr.mxu0 0.0
  %2255 = vmatpush2.msra.mxu0 0.0
  %2256 = vmatprep.subr.mxu0 0.0
  %2257 = vmatpush2.msra.mxu0 0.0
  %2258 = vmatprep.subr.mxu0 0.0
  %2259 = vmatpush2.msra.mxu0 0.0
  %2260 = vmatprep.subr.mxu0 0.0
  %2261 = vmatpush2.msra.mxu0 0.0
  %2262 = vmatprep.subr.mxu0 0.0
  %2263 = vmatpush2.msra.mxu0 0.0
  %2264 = vmatprep.subr.mxu0 0.0
  %2265 = vmatpush2.msra.mxu0 0.0
  %2266 = vmatprep.subr.mxu0 0.0
  %2267 = vmatpush2.msra.mxu0 0.0
  %2268 = vmatprep.subr.mxu0 0.0
  %2269 = vmatpush2.msra.mxu0 0.0
  %2270 = vmatprep.subr.mxu0 0.0
  %2271 = vmatpush2.msra.mxu0 0.0
  %2272 = vmatprep.subr.mxu0 0.0
  %2273 = vmatpush2.msra.mxu0 0.0
  %2274 = vmatprep.subr.mxu0 0.0
  %2275 = vmatpush2.msra.mxu0 0.0
  %2276 = vmatprep.subr.mxu0 0.0
  %2277 = vmatpush2.msra.mxu0 0.0
  %2278 = vmatprep.subr.mxu0 0.0
  %2279 = vmatpush2.msra.mxu0 0.0
  %2280 = vmatprep.subr.mxu0 0.0
  %2281 = vmatpush2.msra.mxu0 0.0
  %2282 = vmatprep.subr.mxu0 0.0
  %2283 = vmatpush2.msra.mxu0 0.0
  %2284 = vmatprep.subr.mxu0 0.0
  %2285 = vmatpush2.msra.mxu0 0.0
  %2286 = vmatprep.mubr.f32.mxu0 0.0
  %2287 = vmatmul.mubr.f32.gmra.mxu0 %v2199
  %v2288 = vpop.f32.mrf.mxu0
  %v2289 = vadd.f32 %v2196, %v2288
  %v2290 = vpop.f32.mrf.mxu0
  %2291 = vmatprep.mubr.f32.mxu0 0.0
  %2292 = vmatmul.mubr.f32.gmra.mxu0 %v2202
  %v2293 = vpop.f32.mrf.mxu0
  %v2294 = vadd.f32 %v2196, %v2293
  %v2295 = vpop.f32.mrf.mxu0
  %2296 = vmatprep.mubr.f32.mxu0 0.0
  %2297 = vmatmul.mubr.f32.gmra.mxu0 %v2205
  %v2298 = vpop.f32.mrf.mxu0
  %v2299 = vadd.f32 %v2196, %v2298
  %v2300 = vpop.f32.mrf.mxu0
  %2301 = vmatprep.mubr.f32.mxu0 0.0
  %2302 = vmatmul.mubr.f32.gmra.mxu0 %v2208
  %v2303 = vpop.f32.mrf.mxu0
  %v2304 = vadd.f32 %v2196, %v2303
  %v2305 = vpop.f32.mrf.mxu0
  %2306 = vmatprep.mubr.f32.mxu0 0.0
  %2307 = vmatmul.mubr.f32.gmra.mxu0 %v2211
  %v2308 = vpop.f32.mrf.mxu0
  %v2309 = vadd.f32 %v2196, %v2308
  %v2310 = vpop.f32.mrf.mxu0
  %2311 = vmatprep.mubr.f32.mxu0 0.0
  %2312 = vmatmul.mubr.f32.gmra.mxu0 %v2214
  %v2313 = vpop.f32.mrf.mxu0
  %v2314 = vadd.f32 %v2196, %v2313
  %v2315 = vpop.f32.mrf.mxu0
  %2316 = vmatprep.mubr.f32.mxu0 0.0
  %2317 = vmatmul.mubr.f32.gmra.mxu0 %v2217
  %v2318 = vpop.f32.mrf.mxu0
  %v2319 = vadd.f32 %v2196, %v2318
  %v2320 = vpop.f32.mrf.mxu0
  %2321 = vmatprep.mubr.f32.mxu0 0.0
  %2322 = vmatmul.mubr.f32.gmra.mxu0 %v2220
  %v2323 = vpop.f32.mrf.mxu0
  %v2324 = vadd.f32 %v2196, %v2323
  %v2325 = vpop.f32.mrf.mxu0
  %2326 = vdwg.mxu0
  %v2327 = vmax.f32 %v2289, 0.0
  %v2328 = vmax.f32 %v2294, 0.0
  %v2329 = vmax.f32 %v2299, 0.0
  %v2330 = vmax.f32 %v2304, 0.0
  %v2331 = vmax.f32 %v2309, 0.0
  %v2332 = vmax.f32 %v2314, 0.0
  %v2333 = vmax.f32 %v2319, 0.0
  %v2334 = vmax.f32 %v2324, 0.0
  %v2335 = vld [vmem:[%s22] sm:$0xff]
  %v2336 = vld [vmem:[%s22 + $0x8] sm:$0xff]
  %v2337 = vld [vmem:[%s22 + $0x10] sm:$0xff]
  %v2338 = vld [vmem:[%s22 + $0x18] sm:$0xff]
  %v2339 = vld [vmem:[%s23] sm:$0x1]
  %v2341 = vlaneseq
  %v2342 = vshrl.u32 %v2341, 7
  %v2343 = vsub.s32 0, %v2342
  %v2344 = vrot.slane %v2339, %v2343
  %v2347 = vsel %vm918, %v2327, 0
  %v2350 = vsel %vm918, %v2328, 0
  %v2353 = vsel %vm918, %v2329, 0
  %v2356 = vsel %vm918, %v2330, 0
  %v2359 = vsel %vm918, %v2331, 0
  %v2362 = vsel %vm918, %v2332, 0
  %v2365 = vsel %vm918, %v2333, 0
  %v2368 = vsel %vm918, %v2334, 0
  %2370 = vmatprep.subr.mxu0 0.0
  %2371 = vmatpush1.msra.mxu0 0.0
  %2372 = vmatprep.subr.mxu0 0.0
  %2373 = vmatpush1.msra.mxu0 0.0
  %2374 = vmatprep.subr.mxu0 0.0
  %2375 = vmatpush1.msra.mxu0 0.0
  %2376 = vmatprep.subr.mxu0 0.0
  %2377 = vmatpush1.msra.mxu0 0.0
  %2378 = vmatprep.subr.mxu0 0.0
  %2379 = vmatpush1.msra.mxu0 0.0
  %2380 = vmatprep.subr.mxu0 0.0
  %2381 = vmatpush1.msra.mxu0 0.0
  %2382 = vmatprep.subr.mxu0 0.0
  %2383 = vmatpush1.msra.mxu0 0.0
  %2384 = vmatprep.subr.mxu0 0.0
  %2385 = vmatpush1.msra.mxu0 0.0
  %2386 = vmatprep.subr.mxu0 0.0
  %2387 = vmatpush1.msra.mxu0 0.0
  %2388 = vmatprep.subr.mxu0 0.0
  %2389 = vmatpush1.msra.mxu0 0.0
  %2390 = vmatprep.subr.mxu0 0.0
  %2391 = vmatpush1.msra.mxu0 0.0
  %2392 = vmatprep.subr.mxu0 0.0
  %2393 = vmatpush1.msra.mxu0 0.0
  %2394 = vmatprep.subr.mxu0 0.0
  %2395 = vmatpush1.msra.mxu0 %v2338
  %2396 = vmatprep.subr.mxu0 0.0
  %2397 = vmatpush1.msra.mxu0 %v2337
  %2398 = vmatprep.subr.mxu0 0.0
  %2399 = vmatpush1.msra.mxu0 %v2336
  %2400 = vmatprep.subr.mxu0 0.0
  %2401 = vmatpush1.msra.mxu0 %v2335
  %2402 = vmatprep.subr.mxu0 0.0
  %2403 = vmatpush2.msra.mxu0 0.0
  %2404 = vmatprep.subr.mxu0 0.0
  %2405 = vmatpush2.msra.mxu0 0.0
  %2406 = vmatprep.subr.mxu0 0.0
  %2407 = vmatpush2.msra.mxu0 0.0
  %2408 = vmatprep.subr.mxu0 0.0
  %2409 = vmatpush2.msra.mxu0 0.0
  %2410 = vmatprep.subr.mxu0 0.0
  %2411 = vmatpush2.msra.mxu0 0.0
  %2412 = vmatprep.subr.mxu0 0.0
  %2413 = vmatpush2.msra.mxu0 0.0
  %2414 = vmatprep.subr.mxu0 0.0
  %2415 = vmatpush2.msra.mxu0 0.0
  %2416 = vmatprep.subr.mxu0 0.0
  %2417 = vmatpush2.msra.mxu0 0.0
  %2418 = vmatprep.subr.mxu0 0.0
  %2419 = vmatpush2.msra.mxu0 0.0
  %2420 = vmatprep.subr.mxu0 0.0
  %2421 = vmatpush2.msra.mxu0 0.0
  %2422 = vmatprep.subr.mxu0 0.0
  %2423 = vmatpush2.msra.mxu0 0.0
  %2424 = vmatprep.subr.mxu0 0.0
  %2425 = vmatpush2.msra.mxu0 0.0
  %2426 = vmatprep.subr.mxu0 0.0
  %2427 = vmatpush2.msra.mxu0 0.0
  %2428 = vmatprep.subr.mxu0 0.0
  %2429 = vmatpush2.msra.mxu0 0.0
  %2430 = vmatprep.subr.mxu0 0.0
  %2431 = vmatpush2.msra.mxu0 0.0
  %2432 = vmatprep.subr.mxu0 0.0
  %2433 = vmatpush2.msra.mxu0 0.0
  %2434 = vmatprep.mubr.f32.mxu0 0.0
  %2435 = vmatmul.mubr.f32.gmra.mxu0 %v2347
  %v2436 = vpop.f32.mrf.mxu0
  %v2437 = vadd.f32 %v2344, %v2436
  %v2438 = vpop.f32.mrf.mxu0
  %2439 = vmatprep.mubr.f32.mxu0 0.0
  %2440 = vmatmul.mubr.f32.gmra.mxu0 %v2350
  %v2441 = vpop.f32.mrf.mxu0
  %v2442 = vadd.f32 %v2344, %v2441
  %v2443 = vpop.f32.mrf.mxu0
  %2444 = vmatprep.mubr.f32.mxu0 0.0
  %2445 = vmatmul.mubr.f32.gmra.mxu0 %v2353
  %v2446 = vpop.f32.mrf.mxu0
  %v2447 = vadd.f32 %v2344, %v2446
  %v2448 = vpop.f32.mrf.mxu0
  %2449 = vmatprep.mubr.f32.mxu0 0.0
  %2450 = vmatmul.mubr.f32.gmra.mxu0 %v2356
  %v2451 = vpop.f32.mrf.mxu0
  %v2452 = vadd.f32 %v2344, %v2451
  %v2453 = vpop.f32.mrf.mxu0
  %2454 = vmatprep.mubr.f32.mxu0 0.0
  %2455 = vmatmul.mubr.f32.gmra.mxu0 %v2359
  %v2456 = vpop.f32.mrf.mxu0
  %v2457 = vadd.f32 %v2344, %v2456
  %v2458 = vpop.f32.mrf.mxu0
  %2459 = vmatprep.mubr.f32.mxu0 0.0
  %2460 = vmatmul.mubr.f32.gmra.mxu0 %v2362
  %v2461 = vpop.f32.mrf.mxu0
  %v2462 = vadd.f32 %v2344, %v2461
  %v2463 = vpop.f32.mrf.mxu0
  %2464 = vmatprep.mubr.f32.mxu0 0.0
  %2465 = vmatmul.mubr.f32.gmra.mxu0 %v2365
  %v2466 = vpop.f32.mrf.mxu0
  %v2467 = vadd.f32 %v2344, %v2466
  %v2468 = vpop.f32.mrf.mxu0
  %2469 = vmatprep.mubr.f32.mxu0 0.0
  %2470 = vmatmul.mubr.f32.gmra.mxu0 %v2368
  %v2471 = vpop.f32.mrf.mxu0
  %v2472 = vadd.f32 %v2344, %v2471
  %v2473 = vpop.f32.mrf.mxu0
  %2474 = vdwg.mxu0
  %v2475 = vtanh.pop %v2437
  %v2476 = vtanh.pop %v2442
  %v2477 = vtanh.pop %v2447
  %v2478 = vtanh.pop %v2452
  %v2479 = vtanh.pop %v2457
  %v2480 = vtanh.pop %v2462
  %v2481 = vtanh.pop %v2467
  %v2482 = vtanh.pop %v2472
  %2483 = vst.msk [vmem:[%s24] sm:$0xff] %vm109, %v2475
  %2484 = vst.msk [vmem:[%s24 + $0x8] sm:$0xff] %vm109, %v2476
  %2485 = vst.msk [vmem:[%s24 + $0x10] sm:$0xff] %vm109, %v2477
  %2486 = vst.msk [vmem:[%s24 + $0x18] sm:$0xff] %vm109, %v2478
  %2487 = vst.msk [vmem:[%s24 + $0x20] sm:$0xff] %vm109, %v2479
  %2488 = vst.msk [vmem:[%s24 + $0x28] sm:$0xff] %vm109, %v2480
  %2489 = vst.msk [vmem:[%s24 + $0x30] sm:$0xff] %vm109, %v2481
  %2490 = vst.msk [vmem:[%s24 + $0x38] sm:$0xff] %vm109, %v2482
  // Predicated region
  $region102: #{actor_rnn_forward.1} parent=0 // pred_check
    _
  $region103: #{actor_rnn_forward.1} parent=0 // pred_check_branch
    %2492 = sbr.rel (0) target = $region105
  $region104: #{actor_rnn_forward.1} parent=0 // pred_region
    _
  $region105: #{actor_rnn_forward.1} parent=0 // pred_fallthru
    _
  // Predicated region
  $region106: #{actor_rnn_forward.1} parent=0 // pred_check
    _
  $region107: #{actor_rnn_forward.1} parent=0 // pred_check_branch
    %2494 = sbr.rel (0) target = $region109
  $region108: #{actor_rnn_forward.1} parent=0 // pred_region
    _
  $region109: #{actor_rnn_forward.1} parent=0 // pred_fallthru
    _

</llo_original>
